<compile_context>
chip_gen: v7x
topology: tpu7x:2x2x1
jax: 0.10.0
libtpu: 0.0.40
codegen_flags: <defaults>
</compile_context>

<pallas_src>
import math
import jax
import jax.numpy as jnp
from jax.experimental import pallas as pl
from jax.experimental.pallas import tpu as pltpu

INPUT_DIM = 8 * 6 * 2   # 96
H1, H2, H3, OUT = 512, 512, 256, 1
NEG_SLOPE = 0.01        # F.leaky_relu default


def _round_up(n, m):
    return (n + m - 1) // m * m


def _leaky_relu(x):
    return jnp.where(x > 0, x, NEG_SLOPE * x)


def _mlp_kernel(x_ref,
                w1_ref, b1_ref,
                w2_ref, b2_ref,
                w3_ref, b3_ref,
                w4_ref, b4_ref,
                o_ref):
    # Matmuls run at the weight dtype (f32 or bf16) with f32 MXU accumulation.
    # Bias add + LeakyReLU are kept in f32 (v5e has no bf16 VPU).
    wdt = w1_ref.dtype
    x = x_ref[...]
    h = jnp.dot(x.astype(wdt), w1_ref[...], preferred_element_type=jnp.float32)
    h = _leaky_relu(h + b1_ref[...])
    h = jnp.dot(h.astype(wdt), w2_ref[...], preferred_element_type=jnp.float32)
    h = _leaky_relu(h + b2_ref[...])
    h = jnp.dot(h.astype(wdt), w3_ref[...], preferred_element_type=jnp.float32)
    h = _leaky_relu(h + b3_ref[...])                      # [bm, 256] f32
    # Final layer has N=1: a matmul would use 1/128 (1/256) of the MXU lanes
    # and still pay full systolic fill.  Do it on the VPU + XLU reduce instead.
    w4 = w4_ref[...].astype(jnp.float32)                  # [1, 256]
    out = jnp.sum(h * w4, axis=-1, keepdims=True) + b4_ref[...]
    o_ref[...] = out.astype(o_ref.dtype)
    # TODO(synk): if profiling shows vst.msk stalls on the lane-1 output,
    # write a lane-dense [bm, 128] slab and slice in the wrapper instead.


def _build_forward(Bp, bm, x_dtype, w_dtype, single_buffer):
    """Construct the pallas_call for a padded batch Bp tiled in bm-row blocks."""

    def const_spec(shape):
        # Weights/biases are grid-invariant: single-buffer them so we don't
        # burn VMEM / DMA bookkeeping on a second (never used) buffer.
        if single_buffer:
            return pl.BlockSpec(shape, lambda i: (0, 0),
                                pipeline_mode=pl.Buffered(1))
        return pl.BlockSpec(shape, lambda i: (0, 0))

    n_weight_elems = INPUT_DIM * H1 + H1 * H2 + H2 * H3 + H3 * OUT
    flops = 2 * Bp * n_weight_elems
    bytes_accessed = (
        n_weight_elems * jnp.dtype(w_dtype).itemsize
        + (H1 + H2 + H3 + OUT) * 4
        + Bp * INPUT_DIM * jnp.dtype(x_dtype).itemsize
        + Bp * OUT * 4
    )
    cost = pl.CostEstimate(flops=flops, transcendentals=0,
                           bytes_accessed=bytes_accessed)

    return pl.pallas_call(
        _mlp_kernel,
        out_shape=jax.ShapeDtypeStruct((Bp, OUT), jnp.float32),
        grid_spec=pltpu.PrefetchScalarGridSpec(
            num_scalar_prefetch=0,
            grid=(Bp // bm,),
            in_specs=[
                pl.BlockSpec((bm, INPUT_DIM), lambda i: (i, 0)),
                const_spec((INPUT_DIM, H1)), const_spec((1, H1)),
                const_spec((H1, H2)), const_spec((1, H2)),
                const_spec((H2, H3)), const_spec((1, H3)),
                const_spec((1, H3)), const_spec((1, OUT)),
            ],
            out_specs=pl.BlockSpec((bm, OUT), lambda i: (i, 0)),
        ),
        compiler_params=pltpu.CompilerParams(
            dimension_semantics=("parallel",)),
        cost_estimate=cost,
    )


def discriminator_forward(x, params, *, block_b=256):
    """x: [B, INPUT_DIM] f32.  Returns [B, 1] f32.

    block_b: target batch tile.  256 fills the v6e/v7x MXU in M and gives the
    2 v7x TensorCores parallel grid steps; 128-multiples are ideal on v5e.
    Small batches run as a single grid step; uneven batches are zero-padded.
    """
    (w1, b1), (w2, b2), (w3, b3), (w4, b4) = params
    B = x.shape[0]

    # Bias adds / final layer run in f32 on the VPU regardless of weight dtype.
    b1, b2, b3, b4 = (b.astype(jnp.float32) for b in (b1, b2, b3, b4))
    w4_row = w4.reshape(1, H3)        # [256,1] -> [1,256] row for VPU reduce

    # Choose the batch tile: nearly-equal tiles <= block_b, rounded to the
    # 8-row sublane granule; pad the batch to fill the last tile.
    n_tiles = pl.cdiv(B, block_b)
    bm = _round_up(pl.cdiv(B, n_tiles), 8)
    Bp = bm * n_tiles
    if Bp != B:
        x = jnp.pad(x, ((0, Bp - B), (0, 0)))

    args = (x, w1, b1, w2, b2, w3, b3, w4_row, b4)
    try:
        out = _build_forward(Bp, bm, x.dtype, w1.dtype, single_buffer=True)(*args)
    except Exception:
        # pipeline_mode=pl.Buffered(1) not supported on this jax build; the
        # default double-buffered specs are correct, just slightly more VMEM.
        out = _build_forward(Bp, bm, x.dtype, w1.dtype, single_buffer=False)(*args)
    return out[:B]


def _kaiming_uniform(key, fan_in, fan_out):
    # Mimics nn.init.kaiming_uniform_(a=0, mode='fan_in', nonlinearity='leaky_relu'):
    # gain = sqrt(2), bound = gain * sqrt(3 / fan_in).  Weight stored as [in, out].
    bound = math.sqrt(2.0) * math.sqrt(3.0 / fan_in)
    return jax.random.uniform(key, (fan_in, fan_out), jnp.float32,
                              minval=-bound, maxval=bound)


def init_params(key):
    dims = [(INPUT_DIM, H1), (H1, H2), (H2, H3), (H3, OUT)]
    keys = jax.random.split(key, len(dims))
    params = []
    for k, (fi, fo) in zip(keys, dims):
        w = _kaiming_uniform(k, fi, fo)
        b = jnp.full((1, fo), 0.01, jnp.float32)   # nn.init.constant_(bias, 0.01)
        params.append((w, b))
    return params


def cast_weights(params, dtype):
    """Cast weights (not biases) — e.g. bf16 for the v6e/v7x MXU fast path."""
    return [(w.astype(dtype), b) for (w, b) in params]


if __name__ == "__main__":
    key = jax.random.PRNGKey(0)
    pkey, xkey, xkey2 = jax.random.split(key, 3)
    params = init_params(pkey)

    # Reference in plain JAX (same math path as the PyTorch module).
    def ref(x, params):
        h = x
        for i, (w, b) in enumerate(params):
            h = h @ w + b
            if i < 3:
                h = jnp.where(h > 0, h, NEG_SLOPE * h)
        return h

    # 1) f32 path, small batch -> single grid step covering the whole batch.
    B = 16
    x = jax.random.normal(xkey, (B, INPUT_DIM), jnp.float32)
    out = jax.block_until_ready(discriminator_forward(x, params))
    assert out.shape == (B, OUT)
    assert jnp.allclose(out, ref(x, params), atol=1e-4, rtol=1e-4)

    # 2) bf16-weight path + ragged batch (exercises padding and multi-step grid).
    B2 = 19
    x2 = jax.random.normal(xkey2, (B2, INPUT_DIM), jnp.float32)
    out2 = jax.block_until_ready(
        discriminator_forward(x2, cast_weights(params, jnp.bfloat16), block_b=8))
    assert out2.shape == (B2, OUT)
    assert jnp.allclose(out2, ref(x2, params), atol=5e-2, rtol=5e-2)

    print("KERNEL_OK")
</pallas_src>

<mosaic_0001>
module attributes {stable_mosaic.version = 11 : i64} {
  func.func @_mlp_kernel(%arg0: i32, %arg1: memref<16x96xf32, #tpu.memory_space<vmem>>, %arg2: memref<96x512xf32, #tpu.memory_space<vmem>>, %arg3: memref<1x512xf32, #tpu.memory_space<vmem>>, %arg4: memref<512x512xf32, #tpu.memory_space<vmem>>, %arg5: memref<1x512xf32, #tpu.memory_space<vmem>>, %arg6: memref<512x256xf32, #tpu.memory_space<vmem>>, %arg7: memref<1x256xf32, #tpu.memory_space<vmem>>, %arg8: memref<1x256xf32, #tpu.memory_space<vmem>>, %arg9: memref<1x1xf32, #tpu.memory_space<vmem>>, %arg10: memref<16x1xf32, #tpu.memory_space<vmem>>) attributes {dimension_semantics = [#tpu.dimension_semantics<parallel>], iteration_bounds = array<i64: 1>, scalar_prefetch = 0 : i64, scratch_operands = 0 : i64, tpu.core_type = #tpu.core_type<tc>, window_params = [{transform_indices = @transform_0, window_bounds = array<i64: 16, 96>}, {pipeline_mode = #tpu.pipeline_mode<synchronous>, transform_indices = @transform_1, window_bounds = array<i64: 96, 512>}, {pipeline_mode = #tpu.pipeline_mode<synchronous>, transform_indices = @transform_2, window_bounds = array<i64: 1, 512>}, {pipeline_mode = #tpu.pipeline_mode<synchronous>, transform_indices = @transform_3, window_bounds = array<i64: 512, 512>}, {pipeline_mode = #tpu.pipeline_mode<synchronous>, transform_indices = @transform_4, window_bounds = array<i64: 1, 512>}, {pipeline_mode = #tpu.pipeline_mode<synchronous>, transform_indices = @transform_5, window_bounds = array<i64: 512, 256>}, {pipeline_mode = #tpu.pipeline_mode<synchronous>, transform_indices = @transform_6, window_bounds = array<i64: 1, 256>}, {pipeline_mode = #tpu.pipeline_mode<synchronous>, transform_indices = @transform_7, window_bounds = array<i64: 1, 256>}, {pipeline_mode = #tpu.pipeline_mode<synchronous>, transform_indices = @transform_8, window_bounds = array<i64: 1, 1>}, {transform_indices = @transform_9, window_bounds = array<i64: 16, 1>}]} {
    %c0 = arith.constant 0 : index
    %c0_0 = arith.constant 0 : index
    %0 = vector.load %arg1[%c0, %c0_0] : memref<16x96xf32, #tpu.memory_space<vmem>>, vector<16x96xf32>
    %c0_1 = arith.constant 0 : index
    %c0_2 = arith.constant 0 : index
    %1 = vector.load %arg2[%c0_1, %c0_2] : memref<96x512xf32, #tpu.memory_space<vmem>>, vector<96x512xf32>
    %cst = arith.constant dense<0.000000e+00> : vector<16x512xf32>
    %2 = tpu.matmul %0, %1, %cst {dimension_numbers = #tpu.dot_dimension_numbers<[1], [0], [0], [1], [0, 0, 1, 1], [], []>} : vector<16x96xf32>, vector<96x512xf32>, vector<16x512xf32> -> vector<16x512xf32>
    %c0_3 = arith.constant 0 : index
    %c0_4 = arith.constant 0 : index
    %3 = vector.load %arg3[%c0_3, %c0_4] : memref<1x512xf32, #tpu.memory_space<vmem>>, vector<1x512xf32>
    %4 = vector.broadcast %3 : vector<1x512xf32> to vector<16x512xf32>
    %5 = arith.addf %2, %4 : vector<16x512xf32>
    %cst_5 = arith.constant 0.000000e+00 : f32
    %6 = vector.broadcast %cst_5 : f32 to vector<16x512xf32>
    %7 = arith.cmpf ogt, %5, %6 : vector<16x512xf32>
    %cst_6 = arith.constant 0.00999999977 : f32
    %8 = vector.broadcast %cst_6 : f32 to vector<16x512xf32>
    %9 = arith.mulf %8, %5 : vector<16x512xf32>
    %10 = arith.select %7, %5, %9 : vector<16x512xi1>, vector<16x512xf32>
    %c0_7 = arith.constant 0 : index
    %c0_8 = arith.constant 0 : index
    %11 = vector.load %arg4[%c0_7, %c0_8] : memref<512x512xf32, #tpu.memory_space<vmem>>, vector<512x512xf32>
    %cst_9 = arith.constant dense<0.000000e+00> : vector<16x512xf32>
    %12 = tpu.matmul %10, %11, %cst_9 {dimension_numbers = #tpu.dot_dimension_numbers<[1], [0], [0], [1], [0, 0, 1, 1], [], []>} : vector<16x512xf32>, vector<512x512xf32>, vector<16x512xf32> -> vector<16x512xf32>
    %c0_10 = arith.constant 0 : index
    %c0_11 = arith.constant 0 : index
    %13 = vector.load %arg5[%c0_10, %c0_11] : memref<1x512xf32, #tpu.memory_space<vmem>>, vector<1x512xf32>
    %14 = vector.broadcast %13 : vector<1x512xf32> to vector<16x512xf32>
    %15 = arith.addf %12, %14 : vector<16x512xf32>
    %cst_12 = arith.constant 0.000000e+00 : f32
    %16 = vector.broadcast %cst_12 : f32 to vector<16x512xf32>
    %17 = arith.cmpf ogt, %15, %16 : vector<16x512xf32>
    %cst_13 = arith.constant 0.00999999977 : f32
    %18 = vector.broadcast %cst_13 : f32 to vector<16x512xf32>
    %19 = arith.mulf %18, %15 : vector<16x512xf32>
    %20 = arith.select %17, %15, %19 : vector<16x512xi1>, vector<16x512xf32>
    %c0_14 = arith.constant 0 : index
    %c0_15 = arith.constant 0 : index
    %21 = vector.load %arg6[%c0_14, %c0_15] : memref<512x256xf32, #tpu.memory_space<vmem>>, vector<512x256xf32>
    %cst_16 = arith.constant dense<0.000000e+00> : vector<16x256xf32>
    %22 = tpu.matmul %20, %21, %cst_16 {dimension_numbers = #tpu.dot_dimension_numbers<[1], [0], [0], [1], [0, 0, 1, 1], [], []>} : vector<16x512xf32>, vector<512x256xf32>, vector<16x256xf32> -> vector<16x256xf32>
    %c0_17 = arith.constant 0 : index
    %c0_18 = arith.constant 0 : index
    %23 = vector.load %arg7[%c0_17, %c0_18] : memref<1x256xf32, #tpu.memory_space<vmem>>, vector<1x256xf32>
    %24 = vector.broadcast %23 : vector<1x256xf32> to vector<16x256xf32>
    %25 = arith.addf %22, %24 : vector<16x256xf32>
    %cst_19 = arith.constant 0.000000e+00 : f32
    %26 = vector.broadcast %cst_19 : f32 to vector<16x256xf32>
    %27 = arith.cmpf ogt, %25, %26 : vector<16x256xf32>
    %cst_20 = arith.constant 0.00999999977 : f32
    %28 = vector.broadcast %cst_20 : f32 to vector<16x256xf32>
    %29 = arith.mulf %28, %25 : vector<16x256xf32>
    %30 = arith.select %27, %25, %29 : vector<16x256xi1>, vector<16x256xf32>
    %c0_21 = arith.constant 0 : index
    %c0_22 = arith.constant 0 : index
    %31 = vector.load %arg8[%c0_21, %c0_22] : memref<1x256xf32, #tpu.memory_space<vmem>>, vector<1x256xf32>
    %32 = vector.broadcast %31 : vector<1x256xf32> to vector<16x256xf32>
    %33 = arith.mulf %30, %32 : vector<16x256xf32>
    %cst_23 = arith.constant dense<0.000000e+00> : vector<16xf32>
    %34 = vector.multi_reduction <add>, %33, %cst_23 [1] : vector<16x256xf32> to vector<16xf32>
    %35 = vector.shape_cast %34 : vector<16xf32> to vector<16x1xf32>
    %c0_24 = arith.constant 0 : index
    %c0_25 = arith.constant 0 : index
    %36 = vector.load %arg9[%c0_24, %c0_25] : memref<1x1xf32, #tpu.memory_space<vmem>>, vector<1x1xf32>
    %37 = vector.broadcast %36 : vector<1x1xf32> to vector<16x1xf32>
    %38 = arith.addf %35, %37 : vector<16x1xf32>
    %c0_26 = arith.constant 0 : index
    %c0_27 = arith.constant 0 : index
    %39 = vector.load %arg10[%c0_26, %c0_27] : memref<16x1xf32, #tpu.memory_space<vmem>>, vector<16x1xf32>
    tpu.vector_store %arg10[%c0_26, %c0_27], %38 {strides = array<i32>} : memref<16x1xf32, #tpu.memory_space<vmem>>, vector<16x1xf32>,
    return
  }
  func.func @transform_0(%arg0: i32) -> (i32, i32) {
    %c0_i32 = arith.constant 0 : i32
    %c0_i32_0 = arith.constant 0 : i32
    return %arg0, %c0_i32 : i32, i32
  }
  func.func @transform_1(%arg0: i32) -> (i32, i32) {
    %c0_i32 = arith.constant 0 : i32
    %c0_i32_0 = arith.constant 0 : i32
    %c0_i32_1 = arith.constant 0 : i32
    return %c0_i32, %c0_i32_0 : i32, i32
  }
  func.func @transform_2(%arg0: i32) -> (i32, i32) {
    %c0_i32 = arith.constant 0 : i32
    %c0_i32_0 = arith.constant 0 : i32
    %c0_i32_1 = arith.constant 0 : i32
    return %c0_i32, %c0_i32_0 : i32, i32
  }
  func.func @transform_3(%arg0: i32) -> (i32, i32) {
    %c0_i32 = arith.constant 0 : i32
    %c0_i32_0 = arith.constant 0 : i32
    %c0_i32_1 = arith.constant 0 : i32
    return %c0_i32, %c0_i32_0 : i32, i32
  }
  func.func @transform_4(%arg0: i32) -> (i32, i32) {
    %c0_i32 = arith.constant 0 : i32
    %c0_i32_0 = arith.constant 0 : i32
    %c0_i32_1 = arith.constant 0 : i32
    return %c0_i32, %c0_i32_0 : i32, i32
  }
  func.func @transform_5(%arg0: i32) -> (i32, i32) {
    %c0_i32 = arith.constant 0 : i32
    %c0_i32_0 = arith.constant 0 : i32
    %c0_i32_1 = arith.constant 0 : i32
    return %c0_i32, %c0_i32_0 : i32, i32
  }
  func.func @transform_6(%arg0: i32) -> (i32, i32) {
    %c0_i32 = arith.constant 0 : i32
    %c0_i32_0 = arith.constant 0 : i32
    %c0_i32_1 = arith.constant 0 : i32
    return %c0_i32, %c0_i32_0 : i32, i32
  }
  func.func @transform_7(%arg0: i32) -> (i32, i32) {
    %c0_i32 = arith.constant 0 : i32
    %c0_i32_0 = arith.constant 0 : i32
    %c0_i32_1 = arith.constant 0 : i32
    return %c0_i32, %c0_i32_0 : i32, i32
  }
  func.func @transform_8(%arg0: i32) -> (i32, i32) {
    %c0_i32 = arith.constant 0 : i32
    %c0_i32_0 = arith.constant 0 : i32
    %c0_i32_1 = arith.constant 0 : i32
    return %c0_i32, %c0_i32_0 : i32, i32
  }
  func.func @transform_9(%arg0: i32) -> (i32, i32) {
    %c0_i32 = arith.constant 0 : i32
    %c0_i32_0 = arith.constant 0 : i32
    return %arg0, %c0_i32 : i32, i32
  }
}

module attributes {stable_mosaic.version = 11 : i64} {
  func.func @_mlp_kernel(%arg0: i32, %arg1: memref<16x96xf32, #tpu.memory_space<vmem>>, %arg2: memref<96x512xf32, #tpu.memory_space<vmem>>, %arg3: memref<1x512xf32, #tpu.memory_space<vmem>>, %arg4: memref<512x512xf32, #tpu.memory_space<vmem>>, %arg5: memref<1x512xf32, #tpu.memory_space<vmem>>, %arg6: memref<512x256xf32, #tpu.memory_space<vmem>>, %arg7: memref<1x256xf32, #tpu.memory_space<vmem>>, %arg8: memref<1x256xf32, #tpu.memory_space<vmem>>, %arg9: memref<1x1xf32, #tpu.memory_space<vmem>>, %arg10: memref<16x1xf32, #tpu.memory_space<vmem>>) attributes {dimension_semantics = [#tpu.dimension_semantics<parallel>], iteration_bounds = array<i64: 1>, scalar_prefetch = 0 : i64, scratch_operands = 0 : i64, tpu.core_type = #tpu.core_type<tc>, window_params = [{transform_indices = @transform_0, window_bounds = array<i64: 16, 96>}, {pipeline_mode = #tpu.pipeline_mode<synchronous>, transform_indices = @transform_1, window_bounds = array<i64: 96, 512>}, {pipeline_mode = #tpu.pipeline_mode<synchronous>, transform_indices = @transform_2, window_bounds = array<i64: 1, 512>}, {pipeline_mode = #tpu.pipeline_mode<synchronous>, transform_indices = @transform_3, window_bounds = array<i64: 512, 512>}, {pipeline_mode = #tpu.pipeline_mode<synchronous>, transform_indices = @transform_4, window_bounds = array<i64: 1, 512>}, {pipeline_mode = #tpu.pipeline_mode<synchronous>, transform_indices = @transform_5, window_bounds = array<i64: 512, 256>}, {pipeline_mode = #tpu.pipeline_mode<synchronous>, transform_indices = @transform_6, window_bounds = array<i64: 1, 256>}, {pipeline_mode = #tpu.pipeline_mode<synchronous>, transform_indices = @transform_7, window_bounds = array<i64: 1, 256>}, {pipeline_mode = #tpu.pipeline_mode<synchronous>, transform_indices = @transform_8, window_bounds = array<i64: 1, 1>}, {transform_indices = @transform_9, window_bounds = array<i64: 16, 1>}]} {
    %c0 = arith.constant 0 : index
    %c0_0 = arith.constant 0 : index
    %0 = vector.load %arg1[%c0, %c0_0] : memref<16x96xf32, #tpu.memory_space<vmem>>, vector<16x96xf32>
    %c0_1 = arith.constant 0 : index
    %c0_2 = arith.constant 0 : index
    %1 = vector.load %arg2[%c0_1, %c0_2] : memref<96x512xf32, #tpu.memory_space<vmem>>, vector<96x512xf32>
    %cst = arith.constant dense<0.000000e+00> : vector<16x512xf32>
    %2 = tpu.matmul %0, %1, %cst {dimension_numbers = #tpu.dot_dimension_numbers<[1], [0], [0], [1], [0, 0, 1, 1], [], []>} : vector<16x96xf32>, vector<96x512xf32>, vector<16x512xf32> -> vector<16x512xf32>
    %c0_3 = arith.constant 0 : index
    %c0_4 = arith.constant 0 : index
    %3 = vector.load %arg3[%c0_3, %c0_4] : memref<1x512xf32, #tpu.memory_space<vmem>>, vector<1x512xf32>
    %4 = vector.broadcast %3 : vector<1x512xf32> to vector<16x512xf32>
    %5 = arith.addf %2, %4 : vector<16x512xf32>
    %cst_5 = arith.constant 0.000000e+00 : f32
    %6 = vector.broadcast %cst_5 : f32 to vector<16x512xf32>
    %7 = arith.cmpf ogt, %5, %6 : vector<16x512xf32>
    %cst_6 = arith.constant 0.00999999977 : f32
    %8 = vector.broadcast %cst_6 : f32 to vector<16x512xf32>
    %9 = arith.mulf %8, %5 : vector<16x512xf32>
    %10 = arith.select %7, %5, %9 : vector<16x512xi1>, vector<16x512xf32>
    %c0_7 = arith.constant 0 : index
    %c0_8 = arith.constant 0 : index
    %11 = vector.load %arg4[%c0_7, %c0_8] : memref<512x512xf32, #tpu.memory_space<vmem>>, vector<512x512xf32>
    %cst_9 = arith.constant dense<0.000000e+00> : vector<16x512xf32>
    %12 = tpu.matmul %10, %11, %cst_9 {dimension_numbers = #tpu.dot_dimension_numbers<[1], [0], [0], [1], [0, 0, 1, 1], [], []>} : vector<16x512xf32>, vector<512x512xf32>, vector<16x512xf32> -> vector<16x512xf32>
    %c0_10 = arith.constant 0 : index
    %c0_11 = arith.constant 0 : index
    %13 = vector.load %arg5[%c0_10, %c0_11] : memref<1x512xf32, #tpu.memory_space<vmem>>, vector<1x512xf32>
    %14 = vector.broadcast %13 : vector<1x512xf32> to vector<16x512xf32>
    %15 = arith.addf %12, %14 : vector<16x512xf32>
    %cst_12 = arith.constant 0.000000e+00 : f32
    %16 = vector.broadcast %cst_12 : f32 to vector<16x512xf32>
    %17 = arith.cmpf ogt, %15, %16 : vector<16x512xf32>
    %cst_13 = arith.constant 0.00999999977 : f32
    %18 = vector.broadcast %cst_13 : f32 to vector<16x512xf32>
    %19 = arith.mulf %18, %15 : vector<16x512xf32>
    %20 = arith.select %17, %15, %19 : vector<16x512xi1>, vector<16x512xf32>
    %c0_14 = arith.constant 0 : index
    %c0_15 = arith.constant 0 : index
    %21 = vector.load %arg6[%c0_14, %c0_15] : memref<512x256xf32, #tpu.memory_space<vmem>>, vector<512x256xf32>
    %cst_16 = arith.constant dense<0.000000e+00> : vector<16x256xf32>
    %22 = tpu.matmul %20, %21, %cst_16 {dimension_numbers = #tpu.dot_dimension_numbers<[1], [0], [0], [1], [0, 0, 1, 1], [], []>} : vector<16x512xf32>, vector<512x256xf32>, vector<16x256xf32> -> vector<16x256xf32>
    %c0_17 = arith.constant 0 : index
    %c0_18 = arith.constant 0 : index
    %23 = vector.load %arg7[%c0_17, %c0_18] : memref<1x256xf32, #tpu.memory_space<vmem>>, vector<1x256xf32>
    %24 = vector.broadcast %23 : vector<1x256xf32> to vector<16x256xf32>
    %25 = arith.addf %22, %24 : vector<16x256xf32>
    %cst_19 = arith.constant 0.000000e+00 : f32
    %26 = vector.broadcast %cst_19 : f32 to vector<16x256xf32>
    %27 = arith.cmpf ogt, %25, %26 : vector<16x256xf32>
    %cst_20 = arith.constant 0.00999999977 : f32
    %28 = vector.broadcast %cst_20 : f32 to vector<16x256xf32>
    %29 = arith.mulf %28, %25 : vector<16x256xf32>
    %30 = arith.select %27, %25, %29 : vector<16x256xi1>, vector<16x256xf32>
    %c0_21 = arith.constant 0 : index
    %c0_22 = arith.constant 0 : index
    %31 = vector.load %arg8[%c0_21, %c0_22] : memref<1x256xf32, #tpu.memory_space<vmem>>, vector<1x256xf32>
    %32 = vector.broadcast %31 : vector<1x256xf32> to vector<16x256xf32>
    %33 = arith.mulf %30, %32 : vector<16x256xf32>
    %cst_23 = arith.constant dense<0.000000e+00> : vector<16xf32>
    %34 = vector.multi_reduction <add>, %33, %cst_23 [1] : vector<16x256xf32> to vector<16xf32>
    %35 = vector.shape_cast %34 : vector<16xf32> to vector<16x1xf32>
    %c0_24 = arith.constant 0 : index
    %c0_25 = arith.constant 0 : index
    %36 = vector.load %arg9[%c0_24, %c0_25] : memref<1x1xf32, #tpu.memory_space<vmem>>, vector<1x1xf32>
    %37 = vector.broadcast %36 : vector<1x1xf32> to vector<16x1xf32>
    %38 = arith.addf %35, %37 : vector<16x1xf32>
    %c0_26 = arith.constant 0 : index
    %c0_27 = arith.constant 0 : index
    %39 = vector.load %arg10[%c0_26, %c0_27] : memref<16x1xf32, #tpu.memory_space<vmem>>, vector<16x1xf32>
    tpu.vector_store %arg10[%c0_26, %c0_27], %38 {strides = array<i32>} : memref<16x1xf32, #tpu.memory_space<vmem>>, vector<16x1xf32>,
    return
  }
  func.func @transform_0(%arg0: i32) -> (i32, i32) {
    %c0_i32 = arith.constant 0 : i32
    %c0_i32_0 = arith.constant 0 : i32
    return %arg0, %c0_i32 : i32, i32
  }
  func.func @transform_1(%arg0: i32) -> (i32, i32) {
    %c0_i32 = arith.constant 0 : i32
    %c0_i32_0 = arith.constant 0 : i32
    %c0_i32_1 = arith.constant 0 : i32
    return %c0_i32, %c0_i32_0 : i32, i32
  }
  func.func @transform_2(%arg0: i32) -> (i32, i32) {
    %c0_i32 = arith.constant 0 : i32
    %c0_i32_0 = arith.constant 0 : i32
    %c0_i32_1 = arith.constant 0 : i32
    return %c0_i32, %c0_i32_0 : i32, i32
  }
  func.func @transform_3(%arg0: i32) -> (i32, i32) {
    %c0_i32 = arith.constant 0 : i32
    %c0_i32_0 = arith.constant 0 : i32
    %c0_i32_1 = arith.constant 0 : i32
    return %c0_i32, %c0_i32_0 : i32, i32
  }
  func.func @transform_4(%arg0: i32) -> (i32, i32) {
    %c0_i32 = arith.constant 0 : i32
    %c0_i32_0 = arith.constant 0 : i32
    %c0_i32_1 = arith.constant 0 : i32
    return %c0_i32, %c0_i32_0 : i32, i32
  }
  func.func @transform_5(%arg0: i32) -> (i32, i32) {
    %c0_i32 = arith.constant 0 : i32
    %c0_i32_0 = arith.constant 0 : i32
    %c0_i32_1 = arith.constant 0 : i32
    return %c0_i32, %c0_i32_0 : i32, i32
  }
  func.func @transform_6(%arg0: i32) -> (i32, i32) {
    %c0_i32 = arith.constant 0 : i32
    %c0_i32_0 = arith.constant 0 : i32
    %c0_i32_1 = arith.constant 0 : i32
    return %c0_i32, %c0_i32_0 : i32, i32
  }
  func.func @transform_7(%arg0: i32) -> (i32, i32) {
    %c0_i32 = arith.constant 0 : i32
    %c0_i32_0 = arith.constant 0 : i32
    %c0_i32_1 = arith.constant 0 : i32
    return %c0_i32, %c0_i32_0 : i32, i32
  }
  func.func @transform_8(%arg0: i32) -> (i32, i32) {
    %c0_i32 = arith.constant 0 : i32
    %c0_i32_0 = arith.constant 0 : i32
    %c0_i32_1 = arith.constant 0 : i32
    return %c0_i32, %c0_i32_0 : i32, i32
  }
  func.func @transform_9(%arg0: i32) -> (i32, i32) {
    %c0_i32 = arith.constant 0 : i32
    %c0_i32_0 = arith.constant 0 : i32
    return %arg0, %c0_i32 : i32, i32
  }
}

</mosaic_0001>

<llo_original>
// kernel: tpu_custom_call.1
$region0: #{tpu_custom_call.1}
  #allocation0 [shape = 'u32[]', space=smem, size = 0x4, offset = 0x4, fixed_abs, tag = 'smem constant byte address 0x4 - core index']
  #allocation1 [shape = 'u32[144,128]{1,0:T(1,128)}', space=vmem, size = 0x12000, scoped, tag = 'internal scratch']
  #allocation2 [shape = 'f32[1,1]{1,0:T(1,128)S(1)}', space=vmem, size = 0x200, scoped, tag = 'scoped memory for tpu_custom_call.1']
  %s0 = inlined_call_operand.hbm [shape: f32[16,96], index: 0, kind: input, shape index: {}]
  %s1 = inlined_call_operand.hbm [shape: f32[96,512], index: 1, kind: input, shape index: {}]
  %s2 = inlined_call_operand.vmem [shape: f32[1,512], index: 2, kind: input, shape index: {}]
  %s3 = inlined_call_operand.hbm [shape: f32[512,512], index: 3, kind: input, shape index: {}]
  %s4 = inlined_call_operand.vmem [shape: f32[1,512], index: 4, kind: input, shape index: {}]
  %s5 = inlined_call_operand.hbm [shape: f32[512,256], index: 5, kind: input, shape index: {}]
  %s6 = inlined_call_operand.vmem [shape: f32[1,256], index: 6, kind: input, shape index: {}]
  %s7 = inlined_call_operand.vmem [shape: f32[1,256], index: 7, kind: input, shape index: {}]
  %s8 = inlined_call_operand.<no memory space> [shape: f32[1,1], index: 8, kind: input, shape index: {}]
  %s9 = inlined_call_operand.vmem [shape: f32[16,1], index: 9, kind: output, shape index: {}]
  %s10 = sld [smem:[#allocation0]]
  $region62: #{tpu_custom_call.1} parent=0
    _
  %s12 = ssub.s32 1, %s10
  %s13 = scalar_select 0, %s12, %s10
  %v14 = vstv %s8
  %15 = vst [vmem:[#allocation2] sm:$0x1] %v14
  $region1: #{tpu_custom_call.1} parent=0
    #allocation3 [shape = 'u8[8192]{0}', space=vmem, size = 0x2000, scoped, tag = 'input window, operand 0, single buffered']
    #allocation4 [shape = 's32[1]{0}', space=sflag, size = 0x4, scoped, tag = 'scoped memory for tpu_custom_call.1']
    #allocation5 [shape = 'u8[196608]{0}', space=vmem, size = 0x30000, scoped, tag = 'input window, operand 1, single buffered']
    #allocation6 [shape = 's32[1]{0}', space=sflag, size = 0x4, scoped, tag = 'scoped memory for tpu_custom_call.1']
    #allocation7 [shape = 'u8[1048576]{0}', space=vmem, size = 0x100000, scoped, tag = 'input window, operand 3, single buffered']
    #allocation8 [shape = 'u8[524288]{0}', space=vmem, size = 0x80000, scoped, tag = 'input window, operand 5, single buffered']
    #allocation9 [shape = 's32[1]{0}', space=sflag, size = 0x4, scoped, tag = 'scoped memory for tpu_custom_call.1']
    %16 = vsyncpa [#allocation4], 0
    %17 = vsyncpa [#allocation6], 0
    %18 = vsyncpa [#allocation9], 0
    // Predicated region
    $region2: #{tpu_custom_call.1} parent=1 // pred_check
      _
    $region3: #{tpu_custom_call.1} parent=1 // pred_check_branch
      %20 = sbr.rel (0) target = $region5
    $region4: #{tpu_custom_call.1} parent=1 // pred_region
      %s22 = ssub.s32 256, 256
      %23 = vsyncadd [#allocation4], %s22
      %s24 = sshll.u32 [#allocation3], 4
      %s25 = int_to_ptr.vmem [resolvable:$true] %s24
      %30 = dma.hbm_to_vmem [thread:$0]  %s0, 256, %s25, [#allocation4], 128, 128, 8
    $region5: #{tpu_custom_call.1} parent=1 // pred_fallthru
      _
    // Predicated region
    $region6: #{tpu_custom_call.1} parent=1 // pred_check
      _
    $region7: #{tpu_custom_call.1} parent=1 // pred_check_branch
      %32 = sbr.rel (0) target = $region9
    $region8: #{tpu_custom_call.1} parent=1 // pred_region
      %s34 = ssub.s32 6144, 6144
      %35 = vsyncadd [#allocation6], %s34
      %s36 = sshll.u32 [#allocation5], 4
      %s37 = int_to_ptr.vmem [resolvable:$true] %s36
      %42 = dma.hbm_to_vmem [thread:$0]  %s1, 6144, %s37, [#allocation6], 512, 512, 32
    $region9: #{tpu_custom_call.1} parent=1 // pred_fallthru
      _
    // Predicated region
    $region10: #{tpu_custom_call.1} parent=1 // pred_check
      _
    $region11: #{tpu_custom_call.1} parent=1 // pred_check_branch
      %44 = sbr.rel (0) target = $region13
    $region12: #{tpu_custom_call.1} parent=1 // pred_region
      _
    $region13: #{tpu_custom_call.1} parent=1 // pred_fallthru
      _
    // Predicated region
    $region14: #{tpu_custom_call.1} parent=1 // pred_check
      _
    $region15: #{tpu_custom_call.1} parent=1 // pred_check_branch
      %46 = sbr.rel (0) target = $region17
    $region16: #{tpu_custom_call.1} parent=1 // pred_region
      %s48 = ssub.s32 32768, 32768
      %49 = vsyncadd [#allocation6], %s48
      %s50 = sshll.u32 [#allocation7], 4
      %s51 = int_to_ptr.vmem [resolvable:$true] %s50
      %56 = dma.hbm_to_vmem [thread:$0]  %s3, 32768, %s51, [#allocation6], 512, 512, 32
    $region17: #{tpu_custom_call.1} parent=1 // pred_fallthru
      _
    // Predicated region
    $region18: #{tpu_custom_call.1} parent=1 // pred_check
      _
    $region19: #{tpu_custom_call.1} parent=1 // pred_check_branch
      %58 = sbr.rel (0) target = $region21
    $region20: #{tpu_custom_call.1} parent=1 // pred_region
      _
    $region21: #{tpu_custom_call.1} parent=1 // pred_fallthru
      _
    // Predicated region
    $region22: #{tpu_custom_call.1} parent=1 // pred_check
      _
    $region23: #{tpu_custom_call.1} parent=1 // pred_check_branch
      %60 = sbr.rel (0) target = $region25
    $region24: #{tpu_custom_call.1} parent=1 // pred_region
      %s62 = ssub.s32 16384, 16384
      %63 = vsyncadd [#allocation9], %s62
      %s64 = sshll.u32 [#allocation8], 4
      %s65 = int_to_ptr.vmem [resolvable:$true] %s64
      %70 = dma.hbm_to_vmem [thread:$0]  %s5, 16384, %s65, [#allocation9], 256, 256, 16
    $region25: #{tpu_custom_call.1} parent=1 // pred_fallthru
      _
    // Predicated region
    $region26: #{tpu_custom_call.1} parent=1 // pred_check
      _
    $region27: #{tpu_custom_call.1} parent=1 // pred_check_branch
      %72 = sbr.rel (0) target = $region29
    $region28: #{tpu_custom_call.1} parent=1 // pred_region
      _
    $region29: #{tpu_custom_call.1} parent=1 // pred_fallthru
      _
    // Predicated region
    $region30: #{tpu_custom_call.1} parent=1 // pred_check
      _
    $region31: #{tpu_custom_call.1} parent=1 // pred_check_branch
      %74 = sbr.rel (0) target = $region33
    $region32: #{tpu_custom_call.1} parent=1 // pred_region
      _
    $region33: #{tpu_custom_call.1} parent=1 // pred_fallthru
      _
    // Predicated region
    $region34: #{tpu_custom_call.1} parent=1 // pred_check
      _
    $region35: #{tpu_custom_call.1} parent=1 // pred_check_branch
      %76 = sbr.rel (0) target = $region37
    $region36: #{tpu_custom_call.1} parent=1 // pred_region
      _
    $region37: #{tpu_custom_call.1} parent=1 // pred_fallthru
      _
    // Predicated region
    $region38: #{tpu_custom_call.1} parent=1 // pred_check
      _
    $region39: #{tpu_custom_call.1} parent=1 // pred_check_branch
      %78 = sbr.rel (0) target = $region41
    $region40: #{tpu_custom_call.1} parent=1 // pred_region
      %79 = dma.done [#allocation4], 256
    $region41: #{tpu_custom_call.1} parent=1 // pred_fallthru
      _
    // Predicated region
    $region42: #{tpu_custom_call.1} parent=1 // pred_check
      _
    $region43: #{tpu_custom_call.1} parent=1 // pred_check_branch
      %81 = sbr.rel (0) target = $region45
    $region44: #{tpu_custom_call.1} parent=1 // pred_region
      %82 = dma.done [#allocation6], 6144
    $region45: #{tpu_custom_call.1} parent=1 // pred_fallthru
      _
    // Predicated region
    $region46: #{tpu_custom_call.1} parent=1 // pred_check
      _
    $region47: #{tpu_custom_call.1} parent=1 // pred_check_branch
      %84 = sbr.rel (0) target = $region49
    $region48: #{tpu_custom_call.1} parent=1 // pred_region
      %85 = dma.done [#allocation6], 32768
    $region49: #{tpu_custom_call.1} parent=1 // pred_fallthru
      _
    // Predicated region
    $region50: #{tpu_custom_call.1} parent=1 // pred_check
      _
    $region51: #{tpu_custom_call.1} parent=1 // pred_check_branch
      %87 = sbr.rel (0) target = $region53
    $region52: #{tpu_custom_call.1} parent=1 // pred_region
      %88 = dma.done [#allocation9], 16384
    $region53: #{tpu_custom_call.1} parent=1 // pred_fallthru
      _
    %v89 = vld [vmem:[#allocation3] sm:$0xff]
    %v90 = vld [vmem:[#allocation3 + $0x8] sm:$0xff]
    %v91 = vld [vmem:[#allocation5] sm:$0xff]
    %v92 = vld [vmem:[#allocation5 + $0x8] sm:$0xff]
    %v93 = vld [vmem:[#allocation5 + $0x10] sm:$0xff]
    %v94 = vld [vmem:[#allocation5 + $0x18] sm:$0xff]
    %v95 = vld [vmem:[#allocation5 + $0x20] sm:$0xff]
    %v96 = vld [vmem:[#allocation5 + $0x28] sm:$0xff]
    %v97 = vld [vmem:[#allocation5 + $0x30] sm:$0xff]
    %v98 = vld [vmem:[#allocation5 + $0x38] sm:$0xff]
    %v99 = vld [vmem:[#allocation5 + $0x40] sm:$0xff]
    %v100 = vld [vmem:[#allocation5 + $0x48] sm:$0xff]
    %v101 = vld [vmem:[#allocation5 + $0x50] sm:$0xff]
    %v102 = vld [vmem:[#allocation5 + $0x58] sm:$0xff]
    %v103 = vld [vmem:[#allocation5 + $0x60] sm:$0xff]
    %v104 = vld [vmem:[#allocation5 + $0x68] sm:$0xff]
    %v105 = vld [vmem:[#allocation5 + $0x70] sm:$0xff]
    %v106 = vld [vmem:[#allocation5 + $0x78] sm:$0xff]
    %v107 = vld [vmem:[#allocation5 + $0x80] sm:$0xff]
    %v108 = vld [vmem:[#allocation5 + $0x88] sm:$0xff]
    %v109 = vld [vmem:[#allocation5 + $0x90] sm:$0xff]
    %v110 = vld [vmem:[#allocation5 + $0x98] sm:$0xff]
    %v111 = vld [vmem:[#allocation5 + $0xa0] sm:$0xff]
    %v112 = vld [vmem:[#allocation5 + $0xa8] sm:$0xff]
    %v113 = vld [vmem:[#allocation5 + $0xb0] sm:$0xff]
    %v114 = vld [vmem:[#allocation5 + $0xb8] sm:$0xff]
    %v115 = vld [vmem:[#allocation5 + $0xc0] sm:$0xff]
    %v116 = vld [vmem:[#allocation5 + $0xc8] sm:$0xff]
    %v117 = vld [vmem:[#allocation5 + $0xd0] sm:$0xff]
    %v118 = vld [vmem:[#allocation5 + $0xd8] sm:$0xff]
    %v119 = vld [vmem:[#allocation5 + $0xe0] sm:$0xff]
    %v120 = vld [vmem:[#allocation5 + $0xe8] sm:$0xff]
    %v121 = vld [vmem:[#allocation5 + $0xf0] sm:$0xff]
    %v122 = vld [vmem:[#allocation5 + $0xf8] sm:$0xff]
    %v123 = vld [vmem:[#allocation5 + $0x100] sm:$0xff]
    %v124 = vld [vmem:[#allocation5 + $0x108] sm:$0xff]
    %v125 = vld [vmem:[#allocation5 + $0x110] sm:$0xff]
    %v126 = vld [vmem:[#allocation5 + $0x118] sm:$0xff]
    %v127 = vld [vmem:[#allocation5 + $0x120] sm:$0xff]
    %v128 = vld [vmem:[#allocation5 + $0x128] sm:$0xff]
    %v129 = vld [vmem:[#allocation5 + $0x130] sm:$0xff]
    %v130 = vld [vmem:[#allocation5 + $0x138] sm:$0xff]
    %v131 = vld [vmem:[#allocation5 + $0x140] sm:$0xff]
    %v132 = vld [vmem:[#allocation5 + $0x148] sm:$0xff]
    %v133 = vld [vmem:[#allocation5 + $0x150] sm:$0xff]
    %v134 = vld [vmem:[#allocation5 + $0x158] sm:$0xff]
    %v135 = vld [vmem:[#allocation5 + $0x160] sm:$0xff]
    %v136 = vld [vmem:[#allocation5 + $0x168] sm:$0xff]
    %v137 = vld [vmem:[#allocation5 + $0x170] sm:$0xff]
    %v138 = vld [vmem:[#allocation5 + $0x178] sm:$0xff]
    %v139 = vld [vmem:[%s2] sm:$0xf]
    %v141 = vlaneseq
    %v142 = vshrl.u32 %v141, 7
    %v143 = vsub.s32 0, %v142
    %v144 = vrot.slane %v139, %v143
    %v145 = vlaneseq
    %v146 = vshrl.u32 %v145, 7
    %v147 = vsub.s32 1, %v146
    %v148 = vrot.slane %v139, %v147
    %v149 = vlaneseq
    %v150 = vshrl.u32 %v149, 7
    %v151 = vsub.s32 2, %v150
    %v152 = vrot.slane %v139, %v151
    %v153 = vlaneseq
    %v154 = vshrl.u32 %v153, 7
    %v155 = vsub.s32 3, %v154
    %v156 = vrot.slane %v139, %v155
    %vm161 = vcmask 785408
    %v163 = vsel %vm161, %v89, 0
    %v166 = vsel %vm161, %v90, 0
    %168 = vmatprep.subr.mxu0 %v92
    %169 = vmatpush1.msra.mxu0 %v91
    %170 = vmatprep.subr.mxu0 %v96
    %171 = vmatpush1.msra.mxu0 %v95
    %172 = vmatprep.subr.mxu0 %v100
    %173 = vmatpush1.msra.mxu0 %v99
    %174 = vmatprep.subr.mxu0 %v104
    %175 = vmatpush1.msra.mxu0 %v103
    %176 = vmatprep.subr.mxu0 %v108
    %177 = vmatpush1.msra.mxu0 %v107
    %178 = vmatprep.subr.mxu0 %v112
    %179 = vmatpush1.msra.mxu0 %v111
    %180 = vmatprep.subr.mxu0 %v116
    %181 = vmatpush1.msra.mxu0 %v115
    %182 = vmatprep.subr.mxu0 %v120
    %183 = vmatpush1.msra.mxu0 %v119
    %184 = vmatprep.subr.mxu0 %v124
    %185 = vmatpush1.msra.mxu0 %v123
    %186 = vmatprep.subr.mxu0 %v128
    %187 = vmatpush1.msra.mxu0 %v127
    %188 = vmatprep.subr.mxu0 %v132
    %189 = vmatpush1.msra.mxu0 %v131
    %190 = vmatprep.subr.mxu0 %v136
    %191 = vmatpush1.msra.mxu0 %v135
    %192 = vmatprep.subr.mxu0 0.0
    %193 = vmatpush1.msra.mxu0 0.0
    %194 = vmatprep.subr.mxu0 0.0
    %195 = vmatpush1.msra.mxu0 0.0
    %196 = vmatprep.subr.mxu0 0.0
    %197 = vmatpush1.msra.mxu0 0.0
    %198 = vmatprep.subr.mxu0 0.0
    %199 = vmatpush1.msra.mxu0 0.0
    %200 = vmatprep.subr.mxu0 0.0
    %201 = vmatpush1.msra.mxu0 0.0
    %202 = vmatprep.subr.mxu0 0.0
    %203 = vmatpush1.msra.mxu0 0.0
    %204 = vmatprep.subr.mxu0 0.0
    %205 = vmatpush1.msra.mxu0 0.0
    %206 = vmatprep.subr.mxu0 0.0
    %207 = vmatpush1.msra.mxu0 0.0
    %208 = vmatprep.subr.mxu0 0.0
    %209 = vmatpush1.msra.mxu0 0.0
    %210 = vmatprep.subr.mxu0 0.0
    %211 = vmatpush1.msra.mxu0 0.0
    %212 = vmatprep.subr.mxu0 0.0
    %213 = vmatpush1.msra.mxu0 0.0
    %214 = vmatprep.subr.mxu0 0.0
    %215 = vmatpush1.msra.mxu0 0.0
    %216 = vmatprep.subr.mxu0 0.0
    %217 = vmatpush1.msra.mxu0 0.0
    %218 = vmatprep.subr.mxu0 0.0
    %219 = vmatpush1.msra.mxu0 0.0
    %220 = vmatprep.subr.mxu0 0.0
    %221 = vmatpush1.msra.mxu0 0.0
    %222 = vmatprep.subr.mxu0 0.0
    %223 = vmatpush1.msra.mxu0 0.0
    %224 = vmatprep.subr.mxu0 0.0
    %225 = vmatpush1.msra.mxu0 0.0
    %226 = vmatprep.subr.mxu0 0.0
    %227 = vmatpush1.msra.mxu0 0.0
    %228 = vmatprep.subr.mxu0 0.0
    %229 = vmatpush1.msra.mxu0 0.0
    %230 = vmatprep.subr.mxu0 0.0
    %231 = vmatpush1.msra.mxu0 0.0
    %232 = vmatprep.mubr.f32.mxu0 0.0
    %233 = vmatmul.mubr.f32.gmra.mrb[0].mxu0 %v163
    %v234 = vpop.f32.mrb[0].mxu0
    %v235 = vadd.f32 %v144, %v234
    %v236 = vpop.f32.mrb[0].mxu0
    %v237 = vadd.f32 %v148, %v236
    %238 = vmatprep.mubr.f32.mxu0 0.0
    %239 = vmatmul.mubr.f32.gmra.mrb[0].mxu0 %v166
    %v240 = vpop.f32.mrb[0].mxu0
    %v241 = vadd.f32 %v144, %v240
    %v242 = vpop.f32.mrb[0].mxu0
    %v243 = vadd.f32 %v148, %v242
    %244 = vdwg.mxu0
    %245 = vmatprep.subr.mxu0 %v94
    %246 = vmatpush1.msra.mxu0 %v93
    %247 = vmatprep.subr.mxu0 %v98
    %248 = vmatpush1.msra.mxu0 %v97
    %249 = vmatprep.subr.mxu0 %v102
    %250 = vmatpush1.msra.mxu0 %v101
    %251 = vmatprep.subr.mxu0 %v106
    %252 = vmatpush1.msra.mxu0 %v105
    %253 = vmatprep.subr.mxu0 %v110
    %254 = vmatpush1.msra.mxu0 %v109
    %255 = vmatprep.subr.mxu0 %v114
    %256 = vmatpush1.msra.mxu0 %v113
    %257 = vmatprep.subr.mxu0 %v118
    %258 = vmatpush1.msra.mxu0 %v117
    %259 = vmatprep.subr.mxu0 %v122
    %260 = vmatpush1.msra.mxu0 %v121
    %261 = vmatprep.subr.mxu0 %v126
    %262 = vmatpush1.msra.mxu0 %v125
    %263 = vmatprep.subr.mxu0 %v130
    %264 = vmatpush1.msra.mxu0 %v129
    %265 = vmatprep.subr.mxu0 %v134
    %266 = vmatpush1.msra.mxu0 %v133
    %267 = vmatprep.subr.mxu0 %v138
    %268 = vmatpush1.msra.mxu0 %v137
    %269 = vmatprep.subr.mxu0 0.0
    %270 = vmatpush1.msra.mxu0 0.0
    %271 = vmatprep.subr.mxu0 0.0
    %272 = vmatpush1.msra.mxu0 0.0
    %273 = vmatprep.subr.mxu0 0.0
    %274 = vmatpush1.msra.mxu0 0.0
    %275 = vmatprep.subr.mxu0 0.0
    %276 = vmatpush1.msra.mxu0 0.0
    %277 = vmatprep.subr.mxu0 0.0
    %278 = vmatpush1.msra.mxu0 0.0
    %279 = vmatprep.subr.mxu0 0.0
    %280 = vmatpush1.msra.mxu0 0.0
    %281 = vmatprep.subr.mxu0 0.0
    %282 = vmatpush1.msra.mxu0 0.0
    %283 = vmatprep.subr.mxu0 0.0
    %284 = vmatpush1.msra.mxu0 0.0
    %285 = vmatprep.subr.mxu0 0.0
    %286 = vmatpush1.msra.mxu0 0.0
    %287 = vmatprep.subr.mxu0 0.0
    %288 = vmatpush1.msra.mxu0 0.0
    %289 = vmatprep.subr.mxu0 0.0
    %290 = vmatpush1.msra.mxu0 0.0
    %291 = vmatprep.subr.mxu0 0.0
    %292 = vmatpush1.msra.mxu0 0.0
    %293 = vmatprep.subr.mxu0 0.0
    %294 = vmatpush1.msra.mxu0 0.0
    %295 = vmatprep.subr.mxu0 0.0
    %296 = vmatpush1.msra.mxu0 0.0
    %297 = vmatprep.subr.mxu0 0.0
    %298 = vmatpush1.msra.mxu0 0.0
    %299 = vmatprep.subr.mxu0 0.0
    %300 = vmatpush1.msra.mxu0 0.0
    %301 = vmatprep.subr.mxu0 0.0
    %302 = vmatpush1.msra.mxu0 0.0
    %303 = vmatprep.subr.mxu0 0.0
    %304 = vmatpush1.msra.mxu0 0.0
    %305 = vmatprep.subr.mxu0 0.0
    %306 = vmatpush1.msra.mxu0 0.0
    %307 = vmatprep.subr.mxu0 0.0
    %308 = vmatpush1.msra.mxu0 0.0
    %309 = vmatprep.mubr.f32.mxu0 0.0
    %310 = vmatmul.mubr.f32.gmra.mrb[0].mxu0 %v163
    %v311 = vpop.f32.mrb[0].mxu0
    %v312 = vadd.f32 %v152, %v311
    %v313 = vpop.f32.mrb[0].mxu0
    %v314 = vadd.f32 %v156, %v313
    %315 = vmatprep.mubr.f32.mxu0 0.0
    %316 = vmatmul.mubr.f32.gmra.mrb[0].mxu0 %v166
    %v317 = vpop.f32.mrb[0].mxu0
    %v318 = vadd.f32 %v152, %v317
    %v319 = vpop.f32.mrb[0].mxu0
    %v320 = vadd.f32 %v156, %v319
    %321 = vdwg.mxu0
    %vm322 = vcmp.gt.f32.partialorder %v235, 0.0
    %vm323 = vcmp.gt.f32.partialorder %v237, 0.0
    %vm324 = vcmp.gt.f32.partialorder %v312, 0.0
    %vm325 = vcmp.gt.f32.partialorder %v314, 0.0
    %vm326 = vcmp.gt.f32.partialorder %v241, 0.0
    %vm327 = vcmp.gt.f32.partialorder %v243, 0.0
    %vm328 = vcmp.gt.f32.partialorder %v318, 0.0
    %vm329 = vcmp.gt.f32.partialorder %v320, 0.0
    %v330 = vmul.f32 %v235, 0.01
    %v331 = vmul.f32 %v237, 0.01
    %v332 = vmul.f32 %v312, 0.01
    %v333 = vmul.f32 %v314, 0.01
    %v334 = vmul.f32 %v241, 0.01
    %v335 = vmul.f32 %v243, 0.01
    %v336 = vmul.f32 %v318, 0.01
    %v337 = vmul.f32 %v320, 0.01
    %v338 = vsel %vm322, %v235, %v330
    %v339 = vsel %vm323, %v237, %v331
    %v340 = vsel %vm324, %v312, %v332
    %v341 = vsel %vm325, %v314, %v333
    %v342 = vsel %vm326, %v241, %v334
    %v343 = vsel %vm327, %v243, %v335
    %v344 = vsel %vm328, %v318, %v336
    %v345 = vsel %vm329, %v320, %v337
    %v346 = vld [vmem:[#allocation7] sm:$0xff]
    %v347 = vld [vmem:[#allocation7 + $0x8] sm:$0xff]
    %v348 = vld [vmem:[#allocation7 + $0x10] sm:$0xff]
    %v349 = vld [vmem:[#allocation7 + $0x18] sm:$0xff]
    %v350 = vld [vmem:[#allocation7 + $0x20] sm:$0xff]
    %v351 = vld [vmem:[#allocation7 + $0x28] sm:$0xff]
    %v352 = vld [vmem:[#allocation7 + $0x30] sm:$0xff]
    %v353 = vld [vmem:[#allocation7 + $0x38] sm:$0xff]
    %v354 = vld [vmem:[#allocation7 + $0x40] sm:$0xff]
    %v355 = vld [vmem:[#allocation7 + $0x48] sm:$0xff]
    %v356 = vld [vmem:[#allocation7 + $0x50] sm:$0xff]
    %v357 = vld [vmem:[#allocation7 + $0x58] sm:$0xff]
    %v358 = vld [vmem:[#allocation7 + $0x60] sm:$0xff]
    %v359 = vld [vmem:[#allocation7 + $0x68] sm:$0xff]
    %v360 = vld [vmem:[#allocation7 + $0x70] sm:$0xff]
    %v361 = vld [vmem:[#allocation7 + $0x78] sm:$0xff]
    %v362 = vld [vmem:[#allocation7 + $0x80] sm:$0xff]
    %v363 = vld [vmem:[#allocation7 + $0x88] sm:$0xff]
    %v364 = vld [vmem:[#allocation7 + $0x90] sm:$0xff]
    %v365 = vld [vmem:[#allocation7 + $0x98] sm:$0xff]
    %v366 = vld [vmem:[#allocation7 + $0xa0] sm:$0xff]
    %v367 = vld [vmem:[#allocation7 + $0xa8] sm:$0xff]
    %v368 = vld [vmem:[#allocation7 + $0xb0] sm:$0xff]
    %v369 = vld [vmem:[#allocation7 + $0xb8] sm:$0xff]
    %v370 = vld [vmem:[#allocation7 + $0xc0] sm:$0xff]
    %v371 = vld [vmem:[#allocation7 + $0xc8] sm:$0xff]
    %v372 = vld [vmem:[#allocation7 + $0xd0] sm:$0xff]
    %v373 = vld [vmem:[#allocation7 + $0xd8] sm:$0xff]
    %v374 = vld [vmem:[#allocation7 + $0xe0] sm:$0xff]
    %v375 = vld [vmem:[#allocation7 + $0xe8] sm:$0xff]
    %v376 = vld [vmem:[#allocation7 + $0xf0] sm:$0xff]
    %v377 = vld [vmem:[#allocation7 + $0xf8] sm:$0xff]
    %v378 = vld [vmem:[#allocation7 + $0x100] sm:$0xff]
    %v379 = vld [vmem:[#allocation7 + $0x108] sm:$0xff]
    %v380 = vld [vmem:[#allocation7 + $0x110] sm:$0xff]
    %v381 = vld [vmem:[#allocation7 + $0x118] sm:$0xff]
    %v382 = vld [vmem:[#allocation7 + $0x120] sm:$0xff]
    %v383 = vld [vmem:[#allocation7 + $0x128] sm:$0xff]
    %v384 = vld [vmem:[#allocation7 + $0x130] sm:$0xff]
    %v385 = vld [vmem:[#allocation7 + $0x138] sm:$0xff]
    %v386 = vld [vmem:[#allocation7 + $0x140] sm:$0xff]
    %v387 = vld [vmem:[#allocation7 + $0x148] sm:$0xff]
    %v388 = vld [vmem:[#allocation7 + $0x150] sm:$0xff]
    %v389 = vld [vmem:[#allocation7 + $0x158] sm:$0xff]
    %v390 = vld [vmem:[#allocation7 + $0x160] sm:$0xff]
    %v391 = vld [vmem:[#allocation7 + $0x168] sm:$0xff]
    %v392 = vld [vmem:[#allocation7 + $0x170] sm:$0xff]
    %v393 = vld [vmem:[#allocation7 + $0x178] sm:$0xff]
    %v394 = vld [vmem:[#allocation7 + $0x180] sm:$0xff]
    %v395 = vld [vmem:[#allocation7 + $0x188] sm:$0xff]
    %v396 = vld [vmem:[#allocation7 + $0x190] sm:$0xff]
    %v397 = vld [vmem:[#allocation7 + $0x198] sm:$0xff]
    %v398 = vld [vmem:[#allocation7 + $0x1a0] sm:$0xff]
    %v399 = vld [vmem:[#allocation7 + $0x1a8] sm:$0xff]
    %v400 = vld [vmem:[#allocation7 + $0x1b0] sm:$0xff]
    %v401 = vld [vmem:[#allocation7 + $0x1b8] sm:$0xff]
    %v402 = vld [vmem:[#allocation7 + $0x1c0] sm:$0xff]
    %v403 = vld [vmem:[#allocation7 + $0x1c8] sm:$0xff]
    %v404 = vld [vmem:[#allocation7 + $0x1d0] sm:$0xff]
    %v405 = vld [vmem:[#allocation7 + $0x1d8] sm:$0xff]
    %v406 = vld [vmem:[#allocation7 + $0x1e0] sm:$0xff]
    %v407 = vld [vmem:[#allocation7 + $0x1e8] sm:$0xff]
    %v408 = vld [vmem:[#allocation7 + $0x1f0] sm:$0xff]
    %v409 = vld [vmem:[#allocation7 + $0x1f8] sm:$0xff]
    %v410 = vld [vmem:[#allocation7 + $0x200] sm:$0xff]
    %v411 = vld [vmem:[#allocation7 + $0x208] sm:$0xff]
    %v412 = vld [vmem:[#allocation7 + $0x210] sm:$0xff]
    %v413 = vld [vmem:[#allocation7 + $0x218] sm:$0xff]
    %v414 = vld [vmem:[#allocation7 + $0x220] sm:$0xff]
    %v415 = vld [vmem:[#allocation7 + $0x228] sm:$0xff]
    %v416 = vld [vmem:[#allocation7 + $0x230] sm:$0xff]
    %v417 = vld [vmem:[#allocation7 + $0x238] sm:$0xff]
    %v418 = vld [vmem:[#allocation7 + $0x240] sm:$0xff]
    %v419 = vld [vmem:[#allocation7 + $0x248] sm:$0xff]
    %v420 = vld [vmem:[#allocation7 + $0x250] sm:$0xff]
    %v421 = vld [vmem:[#allocation7 + $0x258] sm:$0xff]
    %v422 = vld [vmem:[#allocation7 + $0x260] sm:$0xff]
    %v423 = vld [vmem:[#allocation7 + $0x268] sm:$0xff]
    %v424 = vld [vmem:[#allocation7 + $0x270] sm:$0xff]
    %v425 = vld [vmem:[#allocation7 + $0x278] sm:$0xff]
    %v426 = vld [vmem:[#allocation7 + $0x280] sm:$0xff]
    %v427 = vld [vmem:[#allocation7 + $0x288] sm:$0xff]
    %v428 = vld [vmem:[#allocation7 + $0x290] sm:$0xff]
    %v429 = vld [vmem:[#allocation7 + $0x298] sm:$0xff]
    %v430 = vld [vmem:[#allocation7 + $0x2a0] sm:$0xff]
    %v431 = vld [vmem:[#allocation7 + $0x2a8] sm:$0xff]
    %v432 = vld [vmem:[#allocation7 + $0x2b0] sm:$0xff]
    %v433 = vld [vmem:[#allocation7 + $0x2b8] sm:$0xff]
    %v434 = vld [vmem:[#allocation7 + $0x2c0] sm:$0xff]
    %v435 = vld [vmem:[#allocation7 + $0x2c8] sm:$0xff]
    %v436 = vld [vmem:[#allocation7 + $0x2d0] sm:$0xff]
    %v437 = vld [vmem:[#allocation7 + $0x2d8] sm:$0xff]
    %v438 = vld [vmem:[#allocation7 + $0x2e0] sm:$0xff]
    %v439 = vld [vmem:[#allocation7 + $0x2e8] sm:$0xff]
    %v440 = vld [vmem:[#allocation7 + $0x2f0] sm:$0xff]
    %v441 = vld [vmem:[#allocation7 + $0x2f8] sm:$0xff]
    %v442 = vld [vmem:[#allocation7 + $0x300] sm:$0xff]
    %v443 = vld [vmem:[#allocation7 + $0x308] sm:$0xff]
    %v444 = vld [vmem:[#allocation7 + $0x310] sm:$0xff]
    %v445 = vld [vmem:[#allocation7 + $0x318] sm:$0xff]
    %v446 = vld [vmem:[#allocation7 + $0x320] sm:$0xff]
    %v447 = vld [vmem:[#allocation7 + $0x328] sm:$0xff]
    %v448 = vld [vmem:[#allocation7 + $0x330] sm:$0xff]
    %v449 = vld [vmem:[#allocation7 + $0x338] sm:$0xff]
    %v450 = vld [vmem:[#allocation7 + $0x340] sm:$0xff]
    %v451 = vld [vmem:[#allocation7 + $0x348] sm:$0xff]
    %v452 = vld [vmem:[#allocation7 + $0x350] sm:$0xff]
    %v453 = vld [vmem:[#allocation7 + $0x358] sm:$0xff]
    %v454 = vld [vmem:[#allocation7 + $0x360] sm:$0xff]
    %v455 = vld [vmem:[#allocation7 + $0x368] sm:$0xff]
    %v456 = vld [vmem:[#allocation7 + $0x370] sm:$0xff]
    %v457 = vld [vmem:[#allocation7 + $0x378] sm:$0xff]
    %v458 = vld [vmem:[#allocation7 + $0x380] sm:$0xff]
    %v459 = vld [vmem:[#allocation7 + $0x388] sm:$0xff]
    %v460 = vld [vmem:[#allocation7 + $0x390] sm:$0xff]
    %v461 = vld [vmem:[#allocation7 + $0x398] sm:$0xff]
    %v462 = vld [vmem:[#allocation7 + $0x3a0] sm:$0xff]
    %v463 = vld [vmem:[#allocation7 + $0x3a8] sm:$0xff]
    %v464 = vld [vmem:[#allocation7 + $0x3b0] sm:$0xff]
    %v465 = vld [vmem:[#allocation7 + $0x3b8] sm:$0xff]
    %v466 = vld [vmem:[#allocation7 + $0x3c0] sm:$0xff]
    %v467 = vld [vmem:[#allocation7 + $0x3c8] sm:$0xff]
    %v468 = vld [vmem:[#allocation7 + $0x3d0] sm:$0xff]
    %v469 = vld [vmem:[#allocation7 + $0x3d8] sm:$0xff]
    %v470 = vld [vmem:[#allocation7 + $0x3e0] sm:$0xff]
    %v471 = vld [vmem:[#allocation7 + $0x3e8] sm:$0xff]
    %v472 = vld [vmem:[#allocation7 + $0x3f0] sm:$0xff]
    %v473 = vld [vmem:[#allocation7 + $0x3f8] sm:$0xff]
    %v474 = vld [vmem:[#allocation7 + $0x400] sm:$0xff]
    %v475 = vld [vmem:[#allocation7 + $0x408] sm:$0xff]
    %v476 = vld [vmem:[#allocation7 + $0x410] sm:$0xff]
    %v477 = vld [vmem:[#allocation7 + $0x418] sm:$0xff]
    %v478 = vld [vmem:[#allocation7 + $0x420] sm:$0xff]
    %v479 = vld [vmem:[#allocation7 + $0x428] sm:$0xff]
    %v480 = vld [vmem:[#allocation7 + $0x430] sm:$0xff]
    %v481 = vld [vmem:[#allocation7 + $0x438] sm:$0xff]
    %v482 = vld [vmem:[#allocation7 + $0x440] sm:$0xff]
    %v483 = vld [vmem:[#allocation7 + $0x448] sm:$0xff]
    %v484 = vld [vmem:[#allocation7 + $0x450] sm:$0xff]
    %v485 = vld [vmem:[#allocation7 + $0x458] sm:$0xff]
    %v486 = vld [vmem:[#allocation7 + $0x460] sm:$0xff]
    %v487 = vld [vmem:[#allocation7 + $0x468] sm:$0xff]
    %v488 = vld [vmem:[#allocation7 + $0x470] sm:$0xff]
    %v489 = vld [vmem:[#allocation7 + $0x478] sm:$0xff]
    %v490 = vld [vmem:[#allocation7 + $0x480] sm:$0xff]
    %v491 = vld [vmem:[#allocation7 + $0x488] sm:$0xff]
    %v492 = vld [vmem:[#allocation7 + $0x490] sm:$0xff]
    %v493 = vld [vmem:[#allocation7 + $0x498] sm:$0xff]
    %v494 = vld [vmem:[#allocation7 + $0x4a0] sm:$0xff]
    %v495 = vld [vmem:[#allocation7 + $0x4a8] sm:$0xff]
    %v496 = vld [vmem:[#allocation7 + $0x4b0] sm:$0xff]
    %v497 = vld [vmem:[#allocation7 + $0x4b8] sm:$0xff]
    %v498 = vld [vmem:[#allocation7 + $0x4c0] sm:$0xff]
    %v499 = vld [vmem:[#allocation7 + $0x4c8] sm:$0xff]
    %v500 = vld [vmem:[#allocation7 + $0x4d0] sm:$0xff]
    %v501 = vld [vmem:[#allocation7 + $0x4d8] sm:$0xff]
    %v502 = vld [vmem:[#allocation7 + $0x4e0] sm:$0xff]
    %v503 = vld [vmem:[#allocation7 + $0x4e8] sm:$0xff]
    %v504 = vld [vmem:[#allocation7 + $0x4f0] sm:$0xff]
    %v505 = vld [vmem:[#allocation7 + $0x4f8] sm:$0xff]
    %v506 = vld [vmem:[#allocation7 + $0x500] sm:$0xff]
    %v507 = vld [vmem:[#allocation7 + $0x508] sm:$0xff]
    %v508 = vld [vmem:[#allocation7 + $0x510] sm:$0xff]
    %v509 = vld [vmem:[#allocation7 + $0x518] sm:$0xff]
    %v510 = vld [vmem:[#allocation7 + $0x520] sm:$0xff]
    %v511 = vld [vmem:[#allocation7 + $0x528] sm:$0xff]
    %v512 = vld [vmem:[#allocation7 + $0x530] sm:$0xff]
    %v513 = vld [vmem:[#allocation7 + $0x538] sm:$0xff]
    %v514 = vld [vmem:[#allocation7 + $0x540] sm:$0xff]
    %v515 = vld [vmem:[#allocation7 + $0x548] sm:$0xff]
    %v516 = vld [vmem:[#allocation7 + $0x550] sm:$0xff]
    %v517 = vld [vmem:[#allocation7 + $0x558] sm:$0xff]
    %v518 = vld [vmem:[#allocation7 + $0x560] sm:$0xff]
    %v519 = vld [vmem:[#allocation7 + $0x568] sm:$0xff]
    %v520 = vld [vmem:[#allocation7 + $0x570] sm:$0xff]
    %v521 = vld [vmem:[#allocation7 + $0x578] sm:$0xff]
    %v522 = vld [vmem:[#allocation7 + $0x580] sm:$0xff]
    %v523 = vld [vmem:[#allocation7 + $0x588] sm:$0xff]
    %v524 = vld [vmem:[#allocation7 + $0x590] sm:$0xff]
    %v525 = vld [vmem:[#allocation7 + $0x598] sm:$0xff]
    %v526 = vld [vmem:[#allocation7 + $0x5a0] sm:$0xff]
    %v527 = vld [vmem:[#allocation7 + $0x5a8] sm:$0xff]
    %v528 = vld [vmem:[#allocation7 + $0x5b0] sm:$0xff]
    %v529 = vld [vmem:[#allocation7 + $0x5b8] sm:$0xff]
    %v530 = vld [vmem:[#allocation7 + $0x5c0] sm:$0xff]
    %v531 = vld [vmem:[#allocation7 + $0x5c8] sm:$0xff]
    %v532 = vld [vmem:[#allocation7 + $0x5d0] sm:$0xff]
    %v533 = vld [vmem:[#allocation7 + $0x5d8] sm:$0xff]
    %v534 = vld [vmem:[#allocation7 + $0x5e0] sm:$0xff]
    %v535 = vld [vmem:[#allocation7 + $0x5e8] sm:$0xff]
    %v536 = vld [vmem:[#allocation7 + $0x5f0] sm:$0xff]
    %v537 = vld [vmem:[#allocation7 + $0x5f8] sm:$0xff]
    %v538 = vld [vmem:[#allocation7 + $0x600] sm:$0xff]
    %v539 = vld [vmem:[#allocation7 + $0x608] sm:$0xff]
    %v540 = vld [vmem:[#allocation7 + $0x610] sm:$0xff]
    %v541 = vld [vmem:[#allocation7 + $0x618] sm:$0xff]
    %v542 = vld [vmem:[#allocation7 + $0x620] sm:$0xff]
    %v543 = vld [vmem:[#allocation7 + $0x628] sm:$0xff]
    %v544 = vld [vmem:[#allocation7 + $0x630] sm:$0xff]
    %v545 = vld [vmem:[#allocation7 + $0x638] sm:$0xff]
    %v546 = vld [vmem:[#allocation7 + $0x640] sm:$0xff]
    %v547 = vld [vmem:[#allocation7 + $0x648] sm:$0xff]
    %v548 = vld [vmem:[#allocation7 + $0x650] sm:$0xff]
    %v549 = vld [vmem:[#allocation7 + $0x658] sm:$0xff]
    %v550 = vld [vmem:[#allocation7 + $0x660] sm:$0xff]
    %v551 = vld [vmem:[#allocation7 + $0x668] sm:$0xff]
    %v552 = vld [vmem:[#allocation7 + $0x670] sm:$0xff]
    %v553 = vld [vmem:[#allocation7 + $0x678] sm:$0xff]
    %v554 = vld [vmem:[#allocation7 + $0x680] sm:$0xff]
    %v555 = vld [vmem:[#allocation7 + $0x688] sm:$0xff]
    %v556 = vld [vmem:[#allocation7 + $0x690] sm:$0xff]
    %v557 = vld [vmem:[#allocation7 + $0x698] sm:$0xff]
    %v558 = vld [vmem:[#allocation7 + $0x6a0] sm:$0xff]
    %v559 = vld [vmem:[#allocation7 + $0x6a8] sm:$0xff]
    %v560 = vld [vmem:[#allocation7 + $0x6b0] sm:$0xff]
    %v561 = vld [vmem:[#allocation7 + $0x6b8] sm:$0xff]
    %v562 = vld [vmem:[#allocation7 + $0x6c0] sm:$0xff]
    %v563 = vld [vmem:[#allocation7 + $0x6c8] sm:$0xff]
    %v564 = vld [vmem:[#allocation7 + $0x6d0] sm:$0xff]
    %v565 = vld [vmem:[#allocation7 + $0x6d8] sm:$0xff]
    %v566 = vld [vmem:[#allocation7 + $0x6e0] sm:$0xff]
    %v567 = vld [vmem:[#allocation7 + $0x6e8] sm:$0xff]
    %v568 = vld [vmem:[#allocation7 + $0x6f0] sm:$0xff]
    %v569 = vld [vmem:[#allocation7 + $0x6f8] sm:$0xff]
    %v570 = vld [vmem:[#allocation7 + $0x700] sm:$0xff]
    %v571 = vld [vmem:[#allocation7 + $0x708] sm:$0xff]
    %v572 = vld [vmem:[#allocation7 + $0x710] sm:$0xff]
    %v573 = vld [vmem:[#allocation7 + $0x718] sm:$0xff]
    %v574 = vld [vmem:[#allocation7 + $0x720] sm:$0xff]
    %v575 = vld [vmem:[#allocation7 + $0x728] sm:$0xff]
    %v576 = vld [vmem:[#allocation7 + $0x730] sm:$0xff]
    %v577 = vld [vmem:[#allocation7 + $0x738] sm:$0xff]
    %v578 = vld [vmem:[#allocation7 + $0x740] sm:$0xff]
    %v579 = vld [vmem:[#allocation7 + $0x748] sm:$0xff]
    %v580 = vld [vmem:[#allocation7 + $0x750] sm:$0xff]
    %v581 = vld [vmem:[#allocation7 + $0x758] sm:$0xff]
    %v582 = vld [vmem:[#allocation7 + $0x760] sm:$0xff]
    %v583 = vld [vmem:[#allocation7 + $0x768] sm:$0xff]
    %v584 = vld [vmem:[#allocation7 + $0x770] sm:$0xff]
    %v585 = vld [vmem:[#allocation7 + $0x778] sm:$0xff]
    %v586 = vld [vmem:[#allocation7 + $0x780] sm:$0xff]
    %v587 = vld [vmem:[#allocation7 + $0x788] sm:$0xff]
    %v588 = vld [vmem:[#allocation7 + $0x790] sm:$0xff]
    %v589 = vld [vmem:[#allocation7 + $0x798] sm:$0xff]
    %v590 = vld [vmem:[#allocation7 + $0x7a0] sm:$0xff]
    %v591 = vld [vmem:[#allocation7 + $0x7a8] sm:$0xff]
    %v592 = vld [vmem:[#allocation7 + $0x7b0] sm:$0xff]
    %v593 = vld [vmem:[#allocation7 + $0x7b8] sm:$0xff]
    %v594 = vld [vmem:[#allocation7 + $0x7c0] sm:$0xff]
    %v595 = vld [vmem:[#allocation7 + $0x7c8] sm:$0xff]
    %v596 = vld [vmem:[#allocation7 + $0x7d0] sm:$0xff]
    %v597 = vld [vmem:[#allocation7 + $0x7d8] sm:$0xff]
    %v598 = vld [vmem:[#allocation7 + $0x7e0] sm:$0xff]
    %v599 = vld [vmem:[#allocation7 + $0x7e8] sm:$0xff]
    %v600 = vld [vmem:[#allocation7 + $0x7f0] sm:$0xff]
    %v601 = vld [vmem:[#allocation7 + $0x7f8] sm:$0xff]
    %v602 = vld [vmem:[%s4] sm:$0xf]
    %v604 = vlaneseq
    %v605 = vshrl.u32 %v604, 7
    %v606 = vsub.s32 0, %v605
    %v607 = vrot.slane %v602, %v606
    %v608 = vlaneseq
    %v609 = vshrl.u32 %v608, 7
    %v610 = vsub.s32 1, %v609
    %v611 = vrot.slane %v602, %v610
    %v612 = vlaneseq
    %v613 = vshrl.u32 %v612, 7
    %v614 = vsub.s32 2, %v613
    %v615 = vrot.slane %v602, %v614
    %v616 = vlaneseq
    %v617 = vshrl.u32 %v616, 7
    %v618 = vsub.s32 3, %v617
    %v619 = vrot.slane %v602, %v618
    %624 = vmatprep.subr.mxu0 %v347
    %625 = vmatpush1.msra.mxu0 %v346
    %626 = vmatprep.subr.mxu0 %v351
    %627 = vmatpush1.msra.mxu0 %v350
    %628 = vmatprep.subr.mxu0 %v355
    %629 = vmatpush1.msra.mxu0 %v354
    %630 = vmatprep.subr.mxu0 %v359
    %631 = vmatpush1.msra.mxu0 %v358
    %632 = vmatprep.subr.mxu0 %v363
    %633 = vmatpush1.msra.mxu0 %v362
    %634 = vmatprep.subr.mxu0 %v367
    %635 = vmatpush1.msra.mxu0 %v366
    %636 = vmatprep.subr.mxu0 %v371
    %637 = vmatpush1.msra.mxu0 %v370
    %638 = vmatprep.subr.mxu0 %v375
    %639 = vmatpush1.msra.mxu0 %v374
    %640 = vmatprep.subr.mxu0 %v379
    %641 = vmatpush1.msra.mxu0 %v378
    %642 = vmatprep.subr.mxu0 %v383
    %643 = vmatpush1.msra.mxu0 %v382
    %644 = vmatprep.subr.mxu0 %v387
    %645 = vmatpush1.msra.mxu0 %v386
    %646 = vmatprep.subr.mxu0 %v391
    %647 = vmatpush1.msra.mxu0 %v390
    %648 = vmatprep.subr.mxu0 %v395
    %649 = vmatpush1.msra.mxu0 %v394
    %650 = vmatprep.subr.mxu0 %v399
    %651 = vmatpush1.msra.mxu0 %v398
    %652 = vmatprep.subr.mxu0 %v403
    %653 = vmatpush1.msra.mxu0 %v402
    %654 = vmatprep.subr.mxu0 %v407
    %655 = vmatpush1.msra.mxu0 %v406
    %656 = vmatprep.subr.mxu0 %v411
    %657 = vmatpush1.msra.mxu0 %v410
    %658 = vmatprep.subr.mxu0 %v415
    %659 = vmatpush1.msra.mxu0 %v414
    %660 = vmatprep.subr.mxu0 %v419
    %661 = vmatpush1.msra.mxu0 %v418
    %662 = vmatprep.subr.mxu0 %v423
    %663 = vmatpush1.msra.mxu0 %v422
    %664 = vmatprep.subr.mxu0 %v427
    %665 = vmatpush1.msra.mxu0 %v426
    %666 = vmatprep.subr.mxu0 %v431
    %667 = vmatpush1.msra.mxu0 %v430
    %668 = vmatprep.subr.mxu0 %v435
    %669 = vmatpush1.msra.mxu0 %v434
    %670 = vmatprep.subr.mxu0 %v439
    %671 = vmatpush1.msra.mxu0 %v438
    %672 = vmatprep.subr.mxu0 %v443
    %673 = vmatpush1.msra.mxu0 %v442
    %674 = vmatprep.subr.mxu0 %v447
    %675 = vmatpush1.msra.mxu0 %v446
    %676 = vmatprep.subr.mxu0 %v451
    %677 = vmatpush1.msra.mxu0 %v450
    %678 = vmatprep.subr.mxu0 %v455
    %679 = vmatpush1.msra.mxu0 %v454
    %680 = vmatprep.subr.mxu0 %v459
    %681 = vmatpush1.msra.mxu0 %v458
    %682 = vmatprep.subr.mxu0 %v463
    %683 = vmatpush1.msra.mxu0 %v462
    %684 = vmatprep.subr.mxu0 %v467
    %685 = vmatpush1.msra.mxu0 %v466
    %686 = vmatprep.subr.mxu0 %v471
    %687 = vmatpush1.msra.mxu0 %v470
    %688 = vmatprep.mubr.f32.mxu0 %v339
    %689 = vmatmul.mubr.f32.gmra.mrb[0].mxu0 %v338
    %v690 = vpop.f32.mrb[0].mxu0
    %v691 = vadd.f32 %v607, %v690
    %v692 = vpop.f32.mrb[0].mxu0
    %v693 = vadd.f32 %v611, %v692
    %694 = vmatprep.mubr.f32.mxu0 %v343
    %695 = vmatmul.mubr.f32.gmra.mrb[0].mxu0 %v342
    %v696 = vpop.f32.mrb[0].mxu0
    %v697 = vadd.f32 %v607, %v696
    %v698 = vpop.f32.mrb[0].mxu0
    %v699 = vadd.f32 %v611, %v698
    %700 = vdwg.mxu0
    %701 = vmatprep.subr.mxu0 %v475
    %702 = vmatpush1.msra.mxu0 %v474
    %703 = vmatprep.subr.mxu0 %v479
    %704 = vmatpush1.msra.mxu0 %v478
    %705 = vmatprep.subr.mxu0 %v483
    %706 = vmatpush1.msra.mxu0 %v482
    %707 = vmatprep.subr.mxu0 %v487
    %708 = vmatpush1.msra.mxu0 %v486
    %709 = vmatprep.subr.mxu0 %v491
    %710 = vmatpush1.msra.mxu0 %v490
    %711 = vmatprep.subr.mxu0 %v495
    %712 = vmatpush1.msra.mxu0 %v494
    %713 = vmatprep.subr.mxu0 %v499
    %714 = vmatpush1.msra.mxu0 %v498
    %715 = vmatprep.subr.mxu0 %v503
    %716 = vmatpush1.msra.mxu0 %v502
    %717 = vmatprep.subr.mxu0 %v507
    %718 = vmatpush1.msra.mxu0 %v506
    %719 = vmatprep.subr.mxu0 %v511
    %720 = vmatpush1.msra.mxu0 %v510
    %721 = vmatprep.subr.mxu0 %v515
    %722 = vmatpush1.msra.mxu0 %v514
    %723 = vmatprep.subr.mxu0 %v519
    %724 = vmatpush1.msra.mxu0 %v518
    %725 = vmatprep.subr.mxu0 %v523
    %726 = vmatpush1.msra.mxu0 %v522
    %727 = vmatprep.subr.mxu0 %v527
    %728 = vmatpush1.msra.mxu0 %v526
    %729 = vmatprep.subr.mxu0 %v531
    %730 = vmatpush1.msra.mxu0 %v530
    %731 = vmatprep.subr.mxu0 %v535
    %732 = vmatpush1.msra.mxu0 %v534
    %733 = vmatprep.subr.mxu0 %v539
    %734 = vmatpush1.msra.mxu0 %v538
    %735 = vmatprep.subr.mxu0 %v543
    %736 = vmatpush1.msra.mxu0 %v542
    %737 = vmatprep.subr.mxu0 %v547
    %738 = vmatpush1.msra.mxu0 %v546
    %739 = vmatprep.subr.mxu0 %v551
    %740 = vmatpush1.msra.mxu0 %v550
    %741 = vmatprep.subr.mxu0 %v555
    %742 = vmatpush1.msra.mxu0 %v554
    %743 = vmatprep.subr.mxu0 %v559
    %744 = vmatpush1.msra.mxu0 %v558
    %745 = vmatprep.subr.mxu0 %v563
    %746 = vmatpush1.msra.mxu0 %v562
    %747 = vmatprep.subr.mxu0 %v567
    %748 = vmatpush1.msra.mxu0 %v566
    %749 = vmatprep.subr.mxu0 %v571
    %750 = vmatpush1.msra.mxu0 %v570
    %751 = vmatprep.subr.mxu0 %v575
    %752 = vmatpush1.msra.mxu0 %v574
    %753 = vmatprep.subr.mxu0 %v579
    %754 = vmatpush1.msra.mxu0 %v578
    %755 = vmatprep.subr.mxu0 %v583
    %756 = vmatpush1.msra.mxu0 %v582
    %757 = vmatprep.subr.mxu0 %v587
    %758 = vmatpush1.msra.mxu0 %v586
    %759 = vmatprep.subr.mxu0 %v591
    %760 = vmatpush1.msra.mxu0 %v590
    %761 = vmatprep.subr.mxu0 %v595
    %762 = vmatpush1.msra.mxu0 %v594
    %763 = vmatprep.subr.mxu0 %v599
    %764 = vmatpush1.msra.mxu0 %v598
    %765 = vmatprep.mubr.f32.mxu0 %v341
    %766 = vmatmul.mubr.f32.gmra.mrb[0].mxu0 %v340
    %v767 = vpop.f32.mrb[0].mxu0
    %v768 = vadd.f32 %v691, %v767
    %v769 = vpop.f32.mrb[0].mxu0
    %v770 = vadd.f32 %v693, %v769
    %771 = vmatprep.mubr.f32.mxu0 %v345
    %772 = vmatmul.mubr.f32.gmra.mrb[0].mxu0 %v344
    %v773 = vpop.f32.mrb[0].mxu0
    %v774 = vadd.f32 %v697, %v773
    %v775 = vpop.f32.mrb[0].mxu0
    %v776 = vadd.f32 %v699, %v775
    %777 = vdwg.mxu0
    %778 = vmatprep.subr.mxu0 %v349
    %779 = vmatpush1.msra.mxu0 %v348
    %780 = vmatprep.subr.mxu0 %v353
    %781 = vmatpush1.msra.mxu0 %v352
    %782 = vmatprep.subr.mxu0 %v357
    %783 = vmatpush1.msra.mxu0 %v356
    %784 = vmatprep.subr.mxu0 %v361
    %785 = vmatpush1.msra.mxu0 %v360
    %786 = vmatprep.subr.mxu0 %v365
    %787 = vmatpush1.msra.mxu0 %v364
    %788 = vmatprep.subr.mxu0 %v369
    %789 = vmatpush1.msra.mxu0 %v368
    %790 = vmatprep.subr.mxu0 %v373
    %791 = vmatpush1.msra.mxu0 %v372
    %792 = vmatprep.subr.mxu0 %v377
    %793 = vmatpush1.msra.mxu0 %v376
    %794 = vmatprep.subr.mxu0 %v381
    %795 = vmatpush1.msra.mxu0 %v380
    %796 = vmatprep.subr.mxu0 %v385
    %797 = vmatpush1.msra.mxu0 %v384
    %798 = vmatprep.subr.mxu0 %v389
    %799 = vmatpush1.msra.mxu0 %v388
    %800 = vmatprep.subr.mxu0 %v393
    %801 = vmatpush1.msra.mxu0 %v392
    %802 = vmatprep.subr.mxu0 %v397
    %803 = vmatpush1.msra.mxu0 %v396
    %804 = vmatprep.subr.mxu0 %v401
    %805 = vmatpush1.msra.mxu0 %v400
    %806 = vmatprep.subr.mxu0 %v405
    %807 = vmatpush1.msra.mxu0 %v404
    %808 = vmatprep.subr.mxu0 %v409
    %809 = vmatpush1.msra.mxu0 %v408
    %810 = vmatprep.subr.mxu0 %v413
    %811 = vmatpush1.msra.mxu0 %v412
    %812 = vmatprep.subr.mxu0 %v417
    %813 = vmatpush1.msra.mxu0 %v416
    %814 = vmatprep.subr.mxu0 %v421
    %815 = vmatpush1.msra.mxu0 %v420
    %816 = vmatprep.subr.mxu0 %v425
    %817 = vmatpush1.msra.mxu0 %v424
    %818 = vmatprep.subr.mxu0 %v429
    %819 = vmatpush1.msra.mxu0 %v428
    %820 = vmatprep.subr.mxu0 %v433
    %821 = vmatpush1.msra.mxu0 %v432
    %822 = vmatprep.subr.mxu0 %v437
    %823 = vmatpush1.msra.mxu0 %v436
    %824 = vmatprep.subr.mxu0 %v441
    %825 = vmatpush1.msra.mxu0 %v440
    %826 = vmatprep.subr.mxu0 %v445
    %827 = vmatpush1.msra.mxu0 %v444
    %828 = vmatprep.subr.mxu0 %v449
    %829 = vmatpush1.msra.mxu0 %v448
    %830 = vmatprep.subr.mxu0 %v453
    %831 = vmatpush1.msra.mxu0 %v452
    %832 = vmatprep.subr.mxu0 %v457
    %833 = vmatpush1.msra.mxu0 %v456
    %834 = vmatprep.subr.mxu0 %v461
    %835 = vmatpush1.msra.mxu0 %v460
    %836 = vmatprep.subr.mxu0 %v465
    %837 = vmatpush1.msra.mxu0 %v464
    %838 = vmatprep.subr.mxu0 %v469
    %839 = vmatpush1.msra.mxu0 %v468
    %840 = vmatprep.subr.mxu0 %v473
    %841 = vmatpush1.msra.mxu0 %v472
    %842 = vmatprep.mubr.f32.mxu0 %v339
    %843 = vmatmul.mubr.f32.gmra.mrb[0].mxu0 %v338
    %v844 = vpop.f32.mrb[0].mxu0
    %v845 = vadd.f32 %v615, %v844
    %v846 = vpop.f32.mrb[0].mxu0
    %v847 = vadd.f32 %v619, %v846
    %848 = vmatprep.mubr.f32.mxu0 %v343
    %849 = vmatmul.mubr.f32.gmra.mrb[0].mxu0 %v342
    %v850 = vpop.f32.mrb[0].mxu0
    %v851 = vadd.f32 %v615, %v850
    %v852 = vpop.f32.mrb[0].mxu0
    %v853 = vadd.f32 %v619, %v852
    %854 = vdwg.mxu0
    %855 = vmatprep.subr.mxu0 %v477
    %856 = vmatpush1.msra.mxu0 %v476
    %857 = vmatprep.subr.mxu0 %v481
    %858 = vmatpush1.msra.mxu0 %v480
    %859 = vmatprep.subr.mxu0 %v485
    %860 = vmatpush1.msra.mxu0 %v484
    %861 = vmatprep.subr.mxu0 %v489
    %862 = vmatpush1.msra.mxu0 %v488
    %863 = vmatprep.subr.mxu0 %v493
    %864 = vmatpush1.msra.mxu0 %v492
    %865 = vmatprep.subr.mxu0 %v497
    %866 = vmatpush1.msra.mxu0 %v496
    %867 = vmatprep.subr.mxu0 %v501
    %868 = vmatpush1.msra.mxu0 %v500
    %869 = vmatprep.subr.mxu0 %v505
    %870 = vmatpush1.msra.mxu0 %v504
    %871 = vmatprep.subr.mxu0 %v509
    %872 = vmatpush1.msra.mxu0 %v508
    %873 = vmatprep.subr.mxu0 %v513
    %874 = vmatpush1.msra.mxu0 %v512
    %875 = vmatprep.subr.mxu0 %v517
    %876 = vmatpush1.msra.mxu0 %v516
    %877 = vmatprep.subr.mxu0 %v521
    %878 = vmatpush1.msra.mxu0 %v520
    %879 = vmatprep.subr.mxu0 %v525
    %880 = vmatpush1.msra.mxu0 %v524
    %881 = vmatprep.subr.mxu0 %v529
    %882 = vmatpush1.msra.mxu0 %v528
    %883 = vmatprep.subr.mxu0 %v533
    %884 = vmatpush1.msra.mxu0 %v532
    %885 = vmatprep.subr.mxu0 %v537
    %886 = vmatpush1.msra.mxu0 %v536
    %887 = vmatprep.subr.mxu0 %v541
    %888 = vmatpush1.msra.mxu0 %v540
    %889 = vmatprep.subr.mxu0 %v545
    %890 = vmatpush1.msra.mxu0 %v544
    %891 = vmatprep.subr.mxu0 %v549
    %892 = vmatpush1.msra.mxu0 %v548
    %893 = vmatprep.subr.mxu0 %v553
    %894 = vmatpush1.msra.mxu0 %v552
    %895 = vmatprep.subr.mxu0 %v557
    %896 = vmatpush1.msra.mxu0 %v556
    %897 = vmatprep.subr.mxu0 %v561
    %898 = vmatpush1.msra.mxu0 %v560
    %899 = vmatprep.subr.mxu0 %v565
    %900 = vmatpush1.msra.mxu0 %v564
    %901 = vmatprep.subr.mxu0 %v569
    %902 = vmatpush1.msra.mxu0 %v568
    %903 = vmatprep.subr.mxu0 %v573
    %904 = vmatpush1.msra.mxu0 %v572
    %905 = vmatprep.subr.mxu0 %v577
    %906 = vmatpush1.msra.mxu0 %v576
    %907 = vmatprep.subr.mxu0 %v581
    %908 = vmatpush1.msra.mxu0 %v580
    %909 = vmatprep.subr.mxu0 %v585
    %910 = vmatpush1.msra.mxu0 %v584
    %911 = vmatprep.subr.mxu0 %v589
    %912 = vmatpush1.msra.mxu0 %v588
    %913 = vmatprep.subr.mxu0 %v593
    %914 = vmatpush1.msra.mxu0 %v592
    %915 = vmatprep.subr.mxu0 %v597
    %916 = vmatpush1.msra.mxu0 %v596
    %917 = vmatprep.subr.mxu0 %v601
    %918 = vmatpush1.msra.mxu0 %v600
    %919 = vmatprep.mubr.f32.mxu0 %v341
    %920 = vmatmul.mubr.f32.gmra.mrb[0].mxu0 %v340
    %v921 = vpop.f32.mrb[0].mxu0
    %v922 = vadd.f32 %v845, %v921
    %v923 = vpop.f32.mrb[0].mxu0
    %v924 = vadd.f32 %v847, %v923
    %925 = vmatprep.mubr.f32.mxu0 %v345
    %926 = vmatmul.mubr.f32.gmra.mrb[0].mxu0 %v344
    %v927 = vpop.f32.mrb[0].mxu0
    %v928 = vadd.f32 %v851, %v927
    %v929 = vpop.f32.mrb[0].mxu0
    %v930 = vadd.f32 %v853, %v929
    %931 = vdwg.mxu0
    %vm932 = vcmp.gt.f32.partialorder %v768, 0.0
    %vm933 = vcmp.gt.f32.partialorder %v770, 0.0
    %vm934 = vcmp.gt.f32.partialorder %v922, 0.0
    %vm935 = vcmp.gt.f32.partialorder %v924, 0.0
    %vm936 = vcmp.gt.f32.partialorder %v774, 0.0
    %vm937 = vcmp.gt.f32.partialorder %v776, 0.0
    %vm938 = vcmp.gt.f32.partialorder %v928, 0.0
    %vm939 = vcmp.gt.f32.partialorder %v930, 0.0
    %v940 = vmul.f32 %v768, 0.01
    %v941 = vmul.f32 %v770, 0.01
    %v942 = vmul.f32 %v922, 0.01
    %v943 = vmul.f32 %v924, 0.01
    %v944 = vmul.f32 %v774, 0.01
    %v945 = vmul.f32 %v776, 0.01
    %v946 = vmul.f32 %v928, 0.01
    %v947 = vmul.f32 %v930, 0.01
    %v948 = vsel %vm932, %v768, %v940
    %v949 = vsel %vm933, %v770, %v941
    %v950 = vsel %vm934, %v922, %v942
    %v951 = vsel %vm935, %v924, %v943
    %v952 = vsel %vm936, %v774, %v944
    %v953 = vsel %vm937, %v776, %v945
    %v954 = vsel %vm938, %v928, %v946
    %v955 = vsel %vm939, %v930, %v947
    %v956 = vld [vmem:[#allocation8] sm:$0xff]
    %v957 = vld [vmem:[#allocation8 + $0x8] sm:$0xff]
    %v958 = vld [vmem:[#allocation8 + $0x10] sm:$0xff]
    %v959 = vld [vmem:[#allocation8 + $0x18] sm:$0xff]
    %v960 = vld [vmem:[#allocation8 + $0x20] sm:$0xff]
    %v961 = vld [vmem:[#allocation8 + $0x28] sm:$0xff]
    %v962 = vld [vmem:[#allocation8 + $0x30] sm:$0xff]
    %v963 = vld [vmem:[#allocation8 + $0x38] sm:$0xff]
    %v964 = vld [vmem:[#allocation8 + $0x40] sm:$0xff]
    %v965 = vld [vmem:[#allocation8 + $0x48] sm:$0xff]
    %v966 = vld [vmem:[#allocation8 + $0x50] sm:$0xff]
    %v967 = vld [vmem:[#allocation8 + $0x58] sm:$0xff]
    %v968 = vld [vmem:[#allocation8 + $0x60] sm:$0xff]
    %v969 = vld [vmem:[#allocation8 + $0x68] sm:$0xff]
    %v970 = vld [vmem:[#allocation8 + $0x70] sm:$0xff]
    %v971 = vld [vmem:[#allocation8 + $0x78] sm:$0xff]
    %v972 = vld [vmem:[#allocation8 + $0x80] sm:$0xff]
    %v973 = vld [vmem:[#allocation8 + $0x88] sm:$0xff]
    %v974 = vld [vmem:[#allocation8 + $0x90] sm:$0xff]
    %v975 = vld [vmem:[#allocation8 + $0x98] sm:$0xff]
    %v976 = vld [vmem:[#allocation8 + $0xa0] sm:$0xff]
    %v977 = vld [vmem:[#allocation8 + $0xa8] sm:$0xff]
    %v978 = vld [vmem:[#allocation8 + $0xb0] sm:$0xff]
    %v979 = vld [vmem:[#allocation8 + $0xb8] sm:$0xff]
    %v980 = vld [vmem:[#allocation8 + $0xc0] sm:$0xff]
    %v981 = vld [vmem:[#allocation8 + $0xc8] sm:$0xff]
    %v982 = vld [vmem:[#allocation8 + $0xd0] sm:$0xff]
    %v983 = vld [vmem:[#allocation8 + $0xd8] sm:$0xff]
    %v984 = vld [vmem:[#allocation8 + $0xe0] sm:$0xff]
    %v985 = vld [vmem:[#allocation8 + $0xe8] sm:$0xff]
    %v986 = vld [vmem:[#allocation8 + $0xf0] sm:$0xff]
    %v987 = vld [vmem:[#allocation8 + $0xf8] sm:$0xff]
    %v988 = vld [vmem:[#allocation8 + $0x100] sm:$0xff]
    %v989 = vld [vmem:[#allocation8 + $0x108] sm:$0xff]
    %v990 = vld [vmem:[#allocation8 + $0x110] sm:$0xff]
    %v991 = vld [vmem:[#allocation8 + $0x118] sm:$0xff]
    %v992 = vld [vmem:[#allocation8 + $0x120] sm:$0xff]
    %v993 = vld [vmem:[#allocation8 + $0x128] sm:$0xff]
    %v994 = vld [vmem:[#allocation8 + $0x130] sm:$0xff]
    %v995 = vld [vmem:[#allocation8 + $0x138] sm:$0xff]
    %v996 = vld [vmem:[#allocation8 + $0x140] sm:$0xff]
    %v997 = vld [vmem:[#allocation8 + $0x148] sm:$0xff]
    %v998 = vld [vmem:[#allocation8 + $0x150] sm:$0xff]
    %v999 = vld [vmem:[#allocation8 + $0x158] sm:$0xff]
    %v1000 = vld [vmem:[#allocation8 + $0x160] sm:$0xff]
    %v1001 = vld [vmem:[#allocation8 + $0x168] sm:$0xff]
    %v1002 = vld [vmem:[#allocation8 + $0x170] sm:$0xff]
    %v1003 = vld [vmem:[#allocation8 + $0x178] sm:$0xff]
    %v1004 = vld [vmem:[#allocation8 + $0x180] sm:$0xff]
    %v1005 = vld [vmem:[#allocation8 + $0x188] sm:$0xff]
    %v1006 = vld [vmem:[#allocation8 + $0x190] sm:$0xff]
    %v1007 = vld [vmem:[#allocation8 + $0x198] sm:$0xff]
    %v1008 = vld [vmem:[#allocation8 + $0x1a0] sm:$0xff]
    %v1009 = vld [vmem:[#allocation8 + $0x1a8] sm:$0xff]
    %v1010 = vld [vmem:[#allocation8 + $0x1b0] sm:$0xff]
    %v1011 = vld [vmem:[#allocation8 + $0x1b8] sm:$0xff]
    %v1012 = vld [vmem:[#allocation8 + $0x1c0] sm:$0xff]
    %v1013 = vld [vmem:[#allocation8 + $0x1c8] sm:$0xff]
    %v1014 = vld [vmem:[#allocation8 + $0x1d0] sm:$0xff]
    %v1015 = vld [vmem:[#allocation8 + $0x1d8] sm:$0xff]
    %v1016 = vld [vmem:[#allocation8 + $0x1e0] sm:$0xff]
    %v1017 = vld [vmem:[#allocation8 + $0x1e8] sm:$0xff]
    %v1018 = vld [vmem:[#allocation8 + $0x1f0] sm:$0xff]
    %v1019 = vld [vmem:[#allocation8 + $0x1f8] sm:$0xff]
    %v1020 = vld [vmem:[#allocation8 + $0x200] sm:$0xff]
    %v1021 = vld [vmem:[#allocation8 + $0x208] sm:$0xff]
    %v1022 = vld [vmem:[#allocation8 + $0x210] sm:$0xff]
    %v1023 = vld [vmem:[#allocation8 + $0x218] sm:$0xff]
    %v1024 = vld [vmem:[#allocation8 + $0x220] sm:$0xff]
    %v1025 = vld [vmem:[#allocation8 + $0x228] sm:$0xff]
    %v1026 = vld [vmem:[#allocation8 + $0x230] sm:$0xff]
    %v1027 = vld [vmem:[#allocation8 + $0x238] sm:$0xff]
    %v1028 = vld [vmem:[#allocation8 + $0x240] sm:$0xff]
    %v1029 = vld [vmem:[#allocation8 + $0x248] sm:$0xff]
    %v1030 = vld [vmem:[#allocation8 + $0x250] sm:$0xff]
    %v1031 = vld [vmem:[#allocation8 + $0x258] sm:$0xff]
    %v1032 = vld [vmem:[#allocation8 + $0x260] sm:$0xff]
    %v1033 = vld [vmem:[#allocation8 + $0x268] sm:$0xff]
    %v1034 = vld [vmem:[#allocation8 + $0x270] sm:$0xff]
    %v1035 = vld [vmem:[#allocation8 + $0x278] sm:$0xff]
    %v1036 = vld [vmem:[#allocation8 + $0x280] sm:$0xff]
    %v1037 = vld [vmem:[#allocation8 + $0x288] sm:$0xff]
    %v1038 = vld [vmem:[#allocation8 + $0x290] sm:$0xff]
    %v1039 = vld [vmem:[#allocation8 + $0x298] sm:$0xff]
    %v1040 = vld [vmem:[#allocation8 + $0x2a0] sm:$0xff]
    %v1041 = vld [vmem:[#allocation8 + $0x2a8] sm:$0xff]
    %v1042 = vld [vmem:[#allocation8 + $0x2b0] sm:$0xff]
    %v1043 = vld [vmem:[#allocation8 + $0x2b8] sm:$0xff]
    %v1044 = vld [vmem:[#allocation8 + $0x2c0] sm:$0xff]
    %v1045 = vld [vmem:[#allocation8 + $0x2c8] sm:$0xff]
    %v1046 = vld [vmem:[#allocation8 + $0x2d0] sm:$0xff]
    %v1047 = vld [vmem:[#allocation8 + $0x2d8] sm:$0xff]
    %v1048 = vld [vmem:[#allocation8 + $0x2e0] sm:$0xff]
    %v1049 = vld [vmem:[#allocation8 + $0x2e8] sm:$0xff]
    %v1050 = vld [vmem:[#allocation8 + $0x2f0] sm:$0xff]
    %v1051 = vld [vmem:[#allocation8 + $0x2f8] sm:$0xff]
    %v1052 = vld [vmem:[#allocation8 + $0x300] sm:$0xff]
    %v1053 = vld [vmem:[#allocation8 + $0x308] sm:$0xff]
    %v1054 = vld [vmem:[#allocation8 + $0x310] sm:$0xff]
    %v1055 = vld [vmem:[#allocation8 + $0x318] sm:$0xff]
    %v1056 = vld [vmem:[#allocation8 + $0x320] sm:$0xff]
    %v1057 = vld [vmem:[#allocation8 + $0x328] sm:$0xff]
    %v1058 = vld [vmem:[#allocation8 + $0x330] sm:$0xff]
    %v1059 = vld [vmem:[#allocation8 + $0x338] sm:$0xff]
    %v1060 = vld [vmem:[#allocation8 + $0x340] sm:$0xff]
    %v1061 = vld [vmem:[#allocation8 + $0x348] sm:$0xff]
    %v1062 = vld [vmem:[#allocation8 + $0x350] sm:$0xff]
    %v1063 = vld [vmem:[#allocation8 + $0x358] sm:$0xff]
    %v1064 = vld [vmem:[#allocation8 + $0x360] sm:$0xff]
    %v1065 = vld [vmem:[#allocation8 + $0x368] sm:$0xff]
    %v1066 = vld [vmem:[#allocation8 + $0x370] sm:$0xff]
    %v1067 = vld [vmem:[#allocation8 + $0x378] sm:$0xff]
    %v1068 = vld [vmem:[#allocation8 + $0x380] sm:$0xff]
    %v1069 = vld [vmem:[#allocation8 + $0x388] sm:$0xff]
    %v1070 = vld [vmem:[#allocation8 + $0x390] sm:$0xff]
    %v1071 = vld [vmem:[#allocation8 + $0x398] sm:$0xff]
    %v1072 = vld [vmem:[#allocation8 + $0x3a0] sm:$0xff]
    %v1073 = vld [vmem:[#allocation8 + $0x3a8] sm:$0xff]
    %v1074 = vld [vmem:[#allocation8 + $0x3b0] sm:$0xff]
    %v1075 = vld [vmem:[#allocation8 + $0x3b8] sm:$0xff]
    %v1076 = vld [vmem:[#allocation8 + $0x3c0] sm:$0xff]
    %v1077 = vld [vmem:[#allocation8 + $0x3c8] sm:$0xff]
    %v1078 = vld [vmem:[#allocation8 + $0x3d0] sm:$0xff]
    %v1079 = vld [vmem:[#allocation8 + $0x3d8] sm:$0xff]
    %v1080 = vld [vmem:[#allocation8 + $0x3e0] sm:$0xff]
    %v1081 = vld [vmem:[#allocation8 + $0x3e8] sm:$0xff]
    %v1082 = vld [vmem:[#allocation8 + $0x3f0] sm:$0xff]
    %v1083 = vld [vmem:[#allocation8 + $0x3f8] sm:$0xff]
    %v1084 = vld [vmem:[%s6] sm:$0x3]
    %v1086 = vlaneseq
    %v1087 = vshrl.u32 %v1086, 7
    %v1088 = vsub.s32 0, %v1087
    %v1089 = vrot.slane %v1084, %v1088
    %v1090 = vlaneseq
    %v1091 = vshrl.u32 %v1090, 7
    %v1092 = vsub.s32 1, %v1091
    %v1093 = vrot.slane %v1084, %v1092
    %1096 = vmatprep.subr.mxu0 %v957
    %1097 = vmatpush1.msra.mxu0 %v956
    %1098 = vmatprep.subr.mxu0 %v959
    %1099 = vmatpush1.msra.mxu0 %v958
    %1100 = vmatprep.subr.mxu0 %v961
    %1101 = vmatpush1.msra.mxu0 %v960
    %1102 = vmatprep.subr.mxu0 %v963
    %1103 = vmatpush1.msra.mxu0 %v962
    %1104 = vmatprep.subr.mxu0 %v965
    %1105 = vmatpush1.msra.mxu0 %v964
    %1106 = vmatprep.subr.mxu0 %v967
    %1107 = vmatpush1.msra.mxu0 %v966
    %1108 = vmatprep.subr.mxu0 %v969
    %1109 = vmatpush1.msra.mxu0 %v968
    %1110 = vmatprep.subr.mxu0 %v971
    %1111 = vmatpush1.msra.mxu0 %v970
    %1112 = vmatprep.subr.mxu0 %v973
    %1113 = vmatpush1.msra.mxu0 %v972
    %1114 = vmatprep.subr.mxu0 %v975
    %1115 = vmatpush1.msra.mxu0 %v974
    %1116 = vmatprep.subr.mxu0 %v977
    %1117 = vmatpush1.msra.mxu0 %v976
    %1118 = vmatprep.subr.mxu0 %v979
    %1119 = vmatpush1.msra.mxu0 %v978
    %1120 = vmatprep.subr.mxu0 %v981
    %1121 = vmatpush1.msra.mxu0 %v980
    %1122 = vmatprep.subr.mxu0 %v983
    %1123 = vmatpush1.msra.mxu0 %v982
    %1124 = vmatprep.subr.mxu0 %v985
    %1125 = vmatpush1.msra.mxu0 %v984
    %1126 = vmatprep.subr.mxu0 %v987
    %1127 = vmatpush1.msra.mxu0 %v986
    %1128 = vmatprep.subr.mxu0 %v989
    %1129 = vmatpush1.msra.mxu0 %v988
    %1130 = vmatprep.subr.mxu0 %v991
    %1131 = vmatpush1.msra.mxu0 %v990
    %1132 = vmatprep.subr.mxu0 %v993
    %1133 = vmatpush1.msra.mxu0 %v992
    %1134 = vmatprep.subr.mxu0 %v995
    %1135 = vmatpush1.msra.mxu0 %v994
    %1136 = vmatprep.subr.mxu0 %v997
    %1137 = vmatpush1.msra.mxu0 %v996
    %1138 = vmatprep.subr.mxu0 %v999
    %1139 = vmatpush1.msra.mxu0 %v998
    %1140 = vmatprep.subr.mxu0 %v1001
    %1141 = vmatpush1.msra.mxu0 %v1000
    %1142 = vmatprep.subr.mxu0 %v1003
    %1143 = vmatpush1.msra.mxu0 %v1002
    %1144 = vmatprep.subr.mxu0 %v1005
    %1145 = vmatpush1.msra.mxu0 %v1004
    %1146 = vmatprep.subr.mxu0 %v1007
    %1147 = vmatpush1.msra.mxu0 %v1006
    %1148 = vmatprep.subr.mxu0 %v1009
    %1149 = vmatpush1.msra.mxu0 %v1008
    %1150 = vmatprep.subr.mxu0 %v1011
    %1151 = vmatpush1.msra.mxu0 %v1010
    %1152 = vmatprep.subr.mxu0 %v1013
    %1153 = vmatpush1.msra.mxu0 %v1012
    %1154 = vmatprep.subr.mxu0 %v1015
    %1155 = vmatpush1.msra.mxu0 %v1014
    %1156 = vmatprep.subr.mxu0 %v1017
    %1157 = vmatpush1.msra.mxu0 %v1016
    %1158 = vmatprep.subr.mxu0 %v1019
    %1159 = vmatpush1.msra.mxu0 %v1018
    %1160 = vmatprep.mubr.f32.mxu0 %v949
    %1161 = vmatmul.mubr.f32.gmra.mrb[0].mxu0 %v948
    %v1162 = vpop.f32.mrb[0].mxu0
    %v1163 = vadd.f32 %v1089, %v1162
    %v1164 = vpop.f32.mrb[0].mxu0
    %v1165 = vadd.f32 %v1093, %v1164
    %1166 = vmatprep.mubr.f32.mxu0 %v953
    %1167 = vmatmul.mubr.f32.gmra.mrb[0].mxu0 %v952
    %v1168 = vpop.f32.mrb[0].mxu0
    %v1169 = vadd.f32 %v1089, %v1168
    %v1170 = vpop.f32.mrb[0].mxu0
    %v1171 = vadd.f32 %v1093, %v1170
    %1172 = vdwg.mxu0
    %1173 = vmatprep.subr.mxu0 %v1021
    %1174 = vmatpush1.msra.mxu0 %v1020
    %1175 = vmatprep.subr.mxu0 %v1023
    %1176 = vmatpush1.msra.mxu0 %v1022
    %1177 = vmatprep.subr.mxu0 %v1025
    %1178 = vmatpush1.msra.mxu0 %v1024
    %1179 = vmatprep.subr.mxu0 %v1027
    %1180 = vmatpush1.msra.mxu0 %v1026
    %1181 = vmatprep.subr.mxu0 %v1029
    %1182 = vmatpush1.msra.mxu0 %v1028
    %1183 = vmatprep.subr.mxu0 %v1031
    %1184 = vmatpush1.msra.mxu0 %v1030
    %1185 = vmatprep.subr.mxu0 %v1033
    %1186 = vmatpush1.msra.mxu0 %v1032
    %1187 = vmatprep.subr.mxu0 %v1035
    %1188 = vmatpush1.msra.mxu0 %v1034
    %1189 = vmatprep.subr.mxu0 %v1037
    %1190 = vmatpush1.msra.mxu0 %v1036
    %1191 = vmatprep.subr.mxu0 %v1039
    %1192 = vmatpush1.msra.mxu0 %v1038
    %1193 = vmatprep.subr.mxu0 %v1041
    %1194 = vmatpush1.msra.mxu0 %v1040
    %1195 = vmatprep.subr.mxu0 %v1043
    %1196 = vmatpush1.msra.mxu0 %v1042
    %1197 = vmatprep.subr.mxu0 %v1045
    %1198 = vmatpush1.msra.mxu0 %v1044
    %1199 = vmatprep.subr.mxu0 %v1047
    %1200 = vmatpush1.msra.mxu0 %v1046
    %1201 = vmatprep.subr.mxu0 %v1049
    %1202 = vmatpush1.msra.mxu0 %v1048
    %1203 = vmatprep.subr.mxu0 %v1051
    %1204 = vmatpush1.msra.mxu0 %v1050
    %1205 = vmatprep.subr.mxu0 %v1053
    %1206 = vmatpush1.msra.mxu0 %v1052
    %1207 = vmatprep.subr.mxu0 %v1055
    %1208 = vmatpush1.msra.mxu0 %v1054
    %1209 = vmatprep.subr.mxu0 %v1057
    %1210 = vmatpush1.msra.mxu0 %v1056
    %1211 = vmatprep.subr.mxu0 %v1059
    %1212 = vmatpush1.msra.mxu0 %v1058
    %1213 = vmatprep.subr.mxu0 %v1061
    %1214 = vmatpush1.msra.mxu0 %v1060
    %1215 = vmatprep.subr.mxu0 %v1063
    %1216 = vmatpush1.msra.mxu0 %v1062
    %1217 = vmatprep.subr.mxu0 %v1065
    %1218 = vmatpush1.msra.mxu0 %v1064
    %1219 = vmatprep.subr.mxu0 %v1067
    %1220 = vmatpush1.msra.mxu0 %v1066
    %1221 = vmatprep.subr.mxu0 %v1069
    %1222 = vmatpush1.msra.mxu0 %v1068
    %1223 = vmatprep.subr.mxu0 %v1071
    %1224 = vmatpush1.msra.mxu0 %v1070
    %1225 = vmatprep.subr.mxu0 %v1073
    %1226 = vmatpush1.msra.mxu0 %v1072
    %1227 = vmatprep.subr.mxu0 %v1075
    %1228 = vmatpush1.msra.mxu0 %v1074
    %1229 = vmatprep.subr.mxu0 %v1077
    %1230 = vmatpush1.msra.mxu0 %v1076
    %1231 = vmatprep.subr.mxu0 %v1079
    %1232 = vmatpush1.msra.mxu0 %v1078
    %1233 = vmatprep.subr.mxu0 %v1081
    %1234 = vmatpush1.msra.mxu0 %v1080
    %1235 = vmatprep.subr.mxu0 %v1083
    %1236 = vmatpush1.msra.mxu0 %v1082
    %1237 = vmatprep.mubr.f32.mxu0 %v951
    %1238 = vmatmul.mubr.f32.gmra.mrb[0].mxu0 %v950
    %v1239 = vpop.f32.mrb[0].mxu0
    %v1240 = vadd.f32 %v1163, %v1239
    %v1241 = vpop.f32.mrb[0].mxu0
    %v1242 = vadd.f32 %v1165, %v1241
    %1243 = vmatprep.mubr.f32.mxu0 %v955
    %1244 = vmatmul.mubr.f32.gmra.mrb[0].mxu0 %v954
    %v1245 = vpop.f32.mrb[0].mxu0
    %v1246 = vadd.f32 %v1169, %v1245
    %v1247 = vpop.f32.mrb[0].mxu0
    %v1248 = vadd.f32 %v1171, %v1247
    %1249 = vdwg.mxu0
    %vm1250 = vcmp.gt.f32.partialorder %v1240, 0.0
    %vm1251 = vcmp.gt.f32.partialorder %v1242, 0.0
    %vm1252 = vcmp.gt.f32.partialorder %v1246, 0.0
    %vm1253 = vcmp.gt.f32.partialorder %v1248, 0.0
    %v1254 = vmul.f32 %v1240, 0.01
    %v1255 = vmul.f32 %v1242, 0.01
    %v1256 = vmul.f32 %v1246, 0.01
    %v1257 = vmul.f32 %v1248, 0.01
    %v1258 = vsel %vm1250, %v1240, %v1254
    %v1259 = vsel %vm1251, %v1242, %v1255
    %v1260 = vsel %vm1252, %v1246, %v1256
    %v1261 = vsel %vm1253, %v1248, %v1257
    %v1262 = vld [vmem:[%s7] sm:$0x3]
    %v1264 = vlaneseq
    %v1265 = vshrl.u32 %v1264, 7
    %v1266 = vsub.s32 0, %v1265
    %v1267 = vrot.slane %v1262, %v1266
    %v1268 = vlaneseq
    %v1269 = vshrl.u32 %v1268, 7
    %v1270 = vsub.s32 1, %v1269
    %v1271 = vrot.slane %v1262, %v1270
    %v1274 = vmul.f32 %v1258, %v1267
    %v1275 = vmul.f32 %v1259, %v1271
    %v1276 = vmul.f32 %v1260, %v1267
    %v1277 = vmul.f32 %v1261, %v1271
    %v1278 = vadd.f32 %v1274, %v1275
    %1279 = vadd.xlane.f32.xlu0 %v1278
    %v1280 = vpop.xlane.xlu0 %1279
    %v1281 = vadd.f32 %v1276, %v1277
    %1282 = vadd.xlane.f32.xlu0 %v1281
    %v1283 = vpop.xlane.xlu0 %1282
    %v1284 = vld [vmem:[#allocation2] sm:$0x1]
    %v1286 = vlaneseq
    %v1287 = vshrl.u32 %v1286, 7
    %v1288 = vsub.s32 0, %v1287
    %v1289 = vrot.slane %v1284, %v1288
    %v1291 = vadd.f32 %v1280, %v1289
    %v1292 = vadd.f32 %v1283, %v1289
    %vm1293 = vcmask 7168
    %1294 = vst.msk [vmem:[%s9] sm:$0xff] %vm1293, %v1291
    %1295 = vst.msk [vmem:[%s9 + $0x8] sm:$0xff] %vm1293, %v1292
    // Predicated region
    $region54: #{tpu_custom_call.1} parent=1 // pred_check
      _
    $region55: #{tpu_custom_call.1} parent=1 // pred_check_branch
      %1297 = sbr.rel (0) target = $region57
    $region56: #{tpu_custom_call.1} parent=1 // pred_region
      _
    $region57: #{tpu_custom_call.1} parent=1 // pred_fallthru
      _
    // Predicated region
    $region58: #{tpu_custom_call.1} parent=1 // pred_check
      _
    $region59: #{tpu_custom_call.1} parent=1 // pred_check_branch
      %1299 = sbr.rel (0) target = $region61
    $region60: #{tpu_custom_call.1} parent=1 // pred_region
      _
    $region61: #{tpu_custom_call.1} parent=1 // pred_fallthru
      _
    %1300 = vsyncpa [#allocation4], 1
    %1301 = vsyncpa [#allocation6], 1
    %1302 = vsyncpa [#allocation9], 1

// kernel: tpu_custom_call.1
$region0: #{tpu_custom_call.1}
  #allocation0 [shape = 'u32[]', space=smem, size = 0x4, offset = 0x4, fixed_abs, tag = 'smem constant byte address 0x4 - core index']
  #allocation1 [shape = 'u32[144,128]{1,0:T(1,128)}', space=vmem, size = 0x12000, scoped, tag = 'internal scratch']
  #allocation2 [shape = 'f32[1,1]{1,0:T(1,128)S(1)}', space=vmem, size = 0x200, scoped, tag = 'scoped memory for tpu_custom_call.1']
  %s0 = inlined_call_operand.hbm [shape: f32[16,96], index: 0, kind: input, shape index: {}]
  %s1 = inlined_call_operand.hbm [shape: f32[96,512], index: 1, kind: input, shape index: {}]
  %s2 = inlined_call_operand.vmem [shape: f32[1,512], index: 2, kind: input, shape index: {}]
  %s3 = inlined_call_operand.hbm [shape: f32[512,512], index: 3, kind: input, shape index: {}]
  %s4 = inlined_call_operand.vmem [shape: f32[1,512], index: 4, kind: input, shape index: {}]
  %s5 = inlined_call_operand.hbm [shape: f32[512,256], index: 5, kind: input, shape index: {}]
  %s6 = inlined_call_operand.vmem [shape: f32[1,256], index: 6, kind: input, shape index: {}]
  %s7 = inlined_call_operand.vmem [shape: f32[1,256], index: 7, kind: input, shape index: {}]
  %s8 = inlined_call_operand.<no memory space> [shape: f32[1,1], index: 8, kind: input, shape index: {}]
  %s9 = inlined_call_operand.vmem [shape: f32[16,1], index: 9, kind: output, shape index: {}]
  %s10 = sld [smem:[#allocation0]]
  $region62: #{tpu_custom_call.1} parent=0
    _
  %s12 = ssub.s32 1, %s10
  %s13 = scalar_select 0, %s12, %s10
  %v14 = vstv %s8
  %15 = vst [vmem:[#allocation2] sm:$0x1] %v14
  $region1: #{tpu_custom_call.1} parent=0
    #allocation3 [shape = 'u8[8192]{0}', space=vmem, size = 0x2000, scoped, tag = 'input window, operand 0, single buffered']
    #allocation4 [shape = 's32[1]{0}', space=sflag, size = 0x4, scoped, tag = 'scoped memory for tpu_custom_call.1']
    #allocation5 [shape = 'u8[196608]{0}', space=vmem, size = 0x30000, scoped, tag = 'input window, operand 1, single buffered']
    #allocation6 [shape = 's32[1]{0}', space=sflag, size = 0x4, scoped, tag = 'scoped memory for tpu_custom_call.1']
    #allocation7 [shape = 'u8[1048576]{0}', space=vmem, size = 0x100000, scoped, tag = 'input window, operand 3, single buffered']
    #allocation8 [shape = 'u8[524288]{0}', space=vmem, size = 0x80000, scoped, tag = 'input window, operand 5, single buffered']
    #allocation9 [shape = 's32[1]{0}', space=sflag, size = 0x4, scoped, tag = 'scoped memory for tpu_custom_call.1']
    %16 = vsyncpa [#allocation4], 0
    %17 = vsyncpa [#allocation6], 0
    %18 = vsyncpa [#allocation9], 0
    // Predicated region
    $region2: #{tpu_custom_call.1} parent=1 // pred_check
      _
    $region3: #{tpu_custom_call.1} parent=1 // pred_check_branch
      %20 = sbr.rel (0) target = $region5
    $region4: #{tpu_custom_call.1} parent=1 // pred_region
      %s22 = ssub.s32 256, 256
      %23 = vsyncadd [#allocation4], %s22
      %s24 = sshll.u32 [#allocation3], 4
      %s25 = int_to_ptr.vmem [resolvable:$true] %s24
      %30 = dma.hbm_to_vmem [thread:$0]  %s0, 256, %s25, [#allocation4], 128, 128, 8
    $region5: #{tpu_custom_call.1} parent=1 // pred_fallthru
      _
    // Predicated region
    $region6: #{tpu_custom_call.1} parent=1 // pred_check
      _
    $region7: #{tpu_custom_call.1} parent=1 // pred_check_branch
      %32 = sbr.rel (0) target = $region9
    $region8: #{tpu_custom_call.1} parent=1 // pred_region
      %s34 = ssub.s32 6144, 6144
      %35 = vsyncadd [#allocation6], %s34
      %s36 = sshll.u32 [#allocation5], 4
      %s37 = int_to_ptr.vmem [resolvable:$true] %s36
      %42 = dma.hbm_to_vmem [thread:$0]  %s1, 6144, %s37, [#allocation6], 512, 512, 32
    $region9: #{tpu_custom_call.1} parent=1 // pred_fallthru
      _
    // Predicated region
    $region10: #{tpu_custom_call.1} parent=1 // pred_check
      _
    $region11: #{tpu_custom_call.1} parent=1 // pred_check_branch
      %44 = sbr.rel (0) target = $region13
    $region12: #{tpu_custom_call.1} parent=1 // pred_region
      _
    $region13: #{tpu_custom_call.1} parent=1 // pred_fallthru
      _
    // Predicated region
    $region14: #{tpu_custom_call.1} parent=1 // pred_check
      _
    $region15: #{tpu_custom_call.1} parent=1 // pred_check_branch
      %46 = sbr.rel (0) target = $region17
    $region16: #{tpu_custom_call.1} parent=1 // pred_region
      %s48 = ssub.s32 32768, 32768
      %49 = vsyncadd [#allocation6], %s48
      %s50 = sshll.u32 [#allocation7], 4
      %s51 = int_to_ptr.vmem [resolvable:$true] %s50
      %56 = dma.hbm_to_vmem [thread:$0]  %s3, 32768, %s51, [#allocation6], 512, 512, 32
    $region17: #{tpu_custom_call.1} parent=1 // pred_fallthru
      _
    // Predicated region
    $region18: #{tpu_custom_call.1} parent=1 // pred_check
      _
    $region19: #{tpu_custom_call.1} parent=1 // pred_check_branch
      %58 = sbr.rel (0) target = $region21
    $region20: #{tpu_custom_call.1} parent=1 // pred_region
      _
    $region21: #{tpu_custom_call.1} parent=1 // pred_fallthru
      _
    // Predicated region
    $region22: #{tpu_custom_call.1} parent=1 // pred_check
      _
    $region23: #{tpu_custom_call.1} parent=1 // pred_check_branch
      %60 = sbr.rel (0) target = $region25
    $region24: #{tpu_custom_call.1} parent=1 // pred_region
      %s62 = ssub.s32 16384, 16384
      %63 = vsyncadd [#allocation9], %s62
      %s64 = sshll.u32 [#allocation8], 4
      %s65 = int_to_ptr.vmem [resolvable:$true] %s64
      %70 = dma.hbm_to_vmem [thread:$0]  %s5, 16384, %s65, [#allocation9], 256, 256, 16
    $region25: #{tpu_custom_call.1} parent=1 // pred_fallthru
      _
    // Predicated region
    $region26: #{tpu_custom_call.1} parent=1 // pred_check
      _
    $region27: #{tpu_custom_call.1} parent=1 // pred_check_branch
      %72 = sbr.rel (0) target = $region29
    $region28: #{tpu_custom_call.1} parent=1 // pred_region
      _
    $region29: #{tpu_custom_call.1} parent=1 // pred_fallthru
      _
    // Predicated region
    $region30: #{tpu_custom_call.1} parent=1 // pred_check
      _
    $region31: #{tpu_custom_call.1} parent=1 // pred_check_branch
      %74 = sbr.rel (0) target = $region33
    $region32: #{tpu_custom_call.1} parent=1 // pred_region
      _
    $region33: #{tpu_custom_call.1} parent=1 // pred_fallthru
      _
    // Predicated region
    $region34: #{tpu_custom_call.1} parent=1 // pred_check
      _
    $region35: #{tpu_custom_call.1} parent=1 // pred_check_branch
      %76 = sbr.rel (0) target = $region37
    $region36: #{tpu_custom_call.1} parent=1 // pred_region
      _
    $region37: #{tpu_custom_call.1} parent=1 // pred_fallthru
      _
    // Predicated region
    $region38: #{tpu_custom_call.1} parent=1 // pred_check
      _
    $region39: #{tpu_custom_call.1} parent=1 // pred_check_branch
      %78 = sbr.rel (0) target = $region41
    $region40: #{tpu_custom_call.1} parent=1 // pred_region
      %79 = dma.done [#allocation4], 256
    $region41: #{tpu_custom_call.1} parent=1 // pred_fallthru
      _
    // Predicated region
    $region42: #{tpu_custom_call.1} parent=1 // pred_check
      _
    $region43: #{tpu_custom_call.1} parent=1 // pred_check_branch
      %81 = sbr.rel (0) target = $region45
    $region44: #{tpu_custom_call.1} parent=1 // pred_region
      %82 = dma.done [#allocation6], 6144
    $region45: #{tpu_custom_call.1} parent=1 // pred_fallthru
      _
    // Predicated region
    $region46: #{tpu_custom_call.1} parent=1 // pred_check
      _
    $region47: #{tpu_custom_call.1} parent=1 // pred_check_branch
      %84 = sbr.rel (0) target = $region49
    $region48: #{tpu_custom_call.1} parent=1 // pred_region
      %85 = dma.done [#allocation6], 32768
    $region49: #{tpu_custom_call.1} parent=1 // pred_fallthru
      _
    // Predicated region
    $region50: #{tpu_custom_call.1} parent=1 // pred_check
      _
    $region51: #{tpu_custom_call.1} parent=1 // pred_check_branch
      %87 = sbr.rel (0) target = $region53
    $region52: #{tpu_custom_call.1} parent=1 // pred_region
      %88 = dma.done [#allocation9], 16384
    $region53: #{tpu_custom_call.1} parent=1 // pred_fallthru
      _
    %v89 = vld [vmem:[#allocation3] sm:$0xff]
    %v90 = vld [vmem:[#allocation3 + $0x8] sm:$0xff]
    %v91 = vld [vmem:[#allocation5] sm:$0xff]
    %v92 = vld [vmem:[#allocation5 + $0x8] sm:$0xff]
    %v93 = vld [vmem:[#allocation5 + $0x10] sm:$0xff]
    %v94 = vld [vmem:[#allocation5 + $0x18] sm:$0xff]
    %v95 = vld [vmem:[#allocation5 + $0x20] sm:$0xff]
    %v96 = vld [vmem:[#allocation5 + $0x28] sm:$0xff]
    %v97 = vld [vmem:[#allocation5 + $0x30] sm:$0xff]
    %v98 = vld [vmem:[#allocation5 + $0x38] sm:$0xff]
    %v99 = vld [vmem:[#allocation5 + $0x40] sm:$0xff]
    %v100 = vld [vmem:[#allocation5 + $0x48] sm:$0xff]
    %v101 = vld [vmem:[#allocation5 + $0x50] sm:$0xff]
    %v102 = vld [vmem:[#allocation5 + $0x58] sm:$0xff]
    %v103 = vld [vmem:[#allocation5 + $0x60] sm:$0xff]
    %v104 = vld [vmem:[#allocation5 + $0x68] sm:$0xff]
    %v105 = vld [vmem:[#allocation5 + $0x70] sm:$0xff]
    %v106 = vld [vmem:[#allocation5 + $0x78] sm:$0xff]
    %v107 = vld [vmem:[#allocation5 + $0x80] sm:$0xff]
    %v108 = vld [vmem:[#allocation5 + $0x88] sm:$0xff]
    %v109 = vld [vmem:[#allocation5 + $0x90] sm:$0xff]
    %v110 = vld [vmem:[#allocation5 + $0x98] sm:$0xff]
    %v111 = vld [vmem:[#allocation5 + $0xa0] sm:$0xff]
    %v112 = vld [vmem:[#allocation5 + $0xa8] sm:$0xff]
    %v113 = vld [vmem:[#allocation5 + $0xb0] sm:$0xff]
    %v114 = vld [vmem:[#allocation5 + $0xb8] sm:$0xff]
    %v115 = vld [vmem:[#allocation5 + $0xc0] sm:$0xff]
    %v116 = vld [vmem:[#allocation5 + $0xc8] sm:$0xff]
    %v117 = vld [vmem:[#allocation5 + $0xd0] sm:$0xff]
    %v118 = vld [vmem:[#allocation5 + $0xd8] sm:$0xff]
    %v119 = vld [vmem:[#allocation5 + $0xe0] sm:$0xff]
    %v120 = vld [vmem:[#allocation5 + $0xe8] sm:$0xff]
    %v121 = vld [vmem:[#allocation5 + $0xf0] sm:$0xff]
    %v122 = vld [vmem:[#allocation5 + $0xf8] sm:$0xff]
    %v123 = vld [vmem:[#allocation5 + $0x100] sm:$0xff]
    %v124 = vld [vmem:[#allocation5 + $0x108] sm:$0xff]
    %v125 = vld [vmem:[#allocation5 + $0x110] sm:$0xff]
    %v126 = vld [vmem:[#allocation5 + $0x118] sm:$0xff]
    %v127 = vld [vmem:[#allocation5 + $0x120] sm:$0xff]
    %v128 = vld [vmem:[#allocation5 + $0x128] sm:$0xff]
    %v129 = vld [vmem:[#allocation5 + $0x130] sm:$0xff]
    %v130 = vld [vmem:[#allocation5 + $0x138] sm:$0xff]
    %v131 = vld [vmem:[#allocation5 + $0x140] sm:$0xff]
    %v132 = vld [vmem:[#allocation5 + $0x148] sm:$0xff]
    %v133 = vld [vmem:[#allocation5 + $0x150] sm:$0xff]
    %v134 = vld [vmem:[#allocation5 + $0x158] sm:$0xff]
    %v135 = vld [vmem:[#allocation5 + $0x160] sm:$0xff]
    %v136 = vld [vmem:[#allocation5 + $0x168] sm:$0xff]
    %v137 = vld [vmem:[#allocation5 + $0x170] sm:$0xff]
    %v138 = vld [vmem:[#allocation5 + $0x178] sm:$0xff]
    %v139 = vld [vmem:[%s2] sm:$0xf]
    %v141 = vlaneseq
    %v142 = vshrl.u32 %v141, 7
    %v143 = vsub.s32 0, %v142
    %v144 = vrot.slane %v139, %v143
    %v145 = vlaneseq
    %v146 = vshrl.u32 %v145, 7
    %v147 = vsub.s32 1, %v146
    %v148 = vrot.slane %v139, %v147
    %v149 = vlaneseq
    %v150 = vshrl.u32 %v149, 7
    %v151 = vsub.s32 2, %v150
    %v152 = vrot.slane %v139, %v151
    %v153 = vlaneseq
    %v154 = vshrl.u32 %v153, 7
    %v155 = vsub.s32 3, %v154
    %v156 = vrot.slane %v139, %v155
    %vm161 = vcmask 785408
    %v163 = vsel %vm161, %v89, 0
    %v166 = vsel %vm161, %v90, 0
    %168 = vmatprep.subr.mxu0 %v92
    %169 = vmatpush1.msra.mxu0 %v91
    %170 = vmatprep.subr.mxu0 %v96
    %171 = vmatpush1.msra.mxu0 %v95
    %172 = vmatprep.subr.mxu0 %v100
    %173 = vmatpush1.msra.mxu0 %v99
    %174 = vmatprep.subr.mxu0 %v104
    %175 = vmatpush1.msra.mxu0 %v103
    %176 = vmatprep.subr.mxu0 %v108
    %177 = vmatpush1.msra.mxu0 %v107
    %178 = vmatprep.subr.mxu0 %v112
    %179 = vmatpush1.msra.mxu0 %v111
    %180 = vmatprep.subr.mxu0 %v116
    %181 = vmatpush1.msra.mxu0 %v115
    %182 = vmatprep.subr.mxu0 %v120
    %183 = vmatpush1.msra.mxu0 %v119
    %184 = vmatprep.subr.mxu0 %v124
    %185 = vmatpush1.msra.mxu0 %v123
    %186 = vmatprep.subr.mxu0 %v128
    %187 = vmatpush1.msra.mxu0 %v127
    %188 = vmatprep.subr.mxu0 %v132
    %189 = vmatpush1.msra.mxu0 %v131
    %190 = vmatprep.subr.mxu0 %v136
    %191 = vmatpush1.msra.mxu0 %v135
    %192 = vmatprep.subr.mxu0 0.0
    %193 = vmatpush1.msra.mxu0 0.0
    %194 = vmatprep.subr.mxu0 0.0
    %195 = vmatpush1.msra.mxu0 0.0
    %196 = vmatprep.subr.mxu0 0.0
    %197 = vmatpush1.msra.mxu0 0.0
    %198 = vmatprep.subr.mxu0 0.0
    %199 = vmatpush1.msra.mxu0 0.0
    %200 = vmatprep.subr.mxu0 0.0
    %201 = vmatpush1.msra.mxu0 0.0
    %202 = vmatprep.subr.mxu0 0.0
    %203 = vmatpush1.msra.mxu0 0.0
    %204 = vmatprep.subr.mxu0 0.0
    %205 = vmatpush1.msra.mxu0 0.0
    %206 = vmatprep.subr.mxu0 0.0
    %207 = vmatpush1.msra.mxu0 0.0
    %208 = vmatprep.subr.mxu0 0.0
    %209 = vmatpush1.msra.mxu0 0.0
    %210 = vmatprep.subr.mxu0 0.0
    %211 = vmatpush1.msra.mxu0 0.0
    %212 = vmatprep.subr.mxu0 0.0
    %213 = vmatpush1.msra.mxu0 0.0
    %214 = vmatprep.subr.mxu0 0.0
    %215 = vmatpush1.msra.mxu0 0.0
    %216 = vmatprep.subr.mxu0 0.0
    %217 = vmatpush1.msra.mxu0 0.0
    %218 = vmatprep.subr.mxu0 0.0
    %219 = vmatpush1.msra.mxu0 0.0
    %220 = vmatprep.subr.mxu0 0.0
    %221 = vmatpush1.msra.mxu0 0.0
    %222 = vmatprep.subr.mxu0 0.0
    %223 = vmatpush1.msra.mxu0 0.0
    %224 = vmatprep.subr.mxu0 0.0
    %225 = vmatpush1.msra.mxu0 0.0
    %226 = vmatprep.subr.mxu0 0.0
    %227 = vmatpush1.msra.mxu0 0.0
    %228 = vmatprep.subr.mxu0 0.0
    %229 = vmatpush1.msra.mxu0 0.0
    %230 = vmatprep.subr.mxu0 0.0
    %231 = vmatpush1.msra.mxu0 0.0
    %232 = vmatprep.mubr.f32.mxu0 0.0
    %233 = vmatmul.mubr.f32.gmra.mrb[0].mxu0 %v163
    %v234 = vpop.f32.mrb[0].mxu0
    %v235 = vadd.f32 %v144, %v234
    %v236 = vpop.f32.mrb[0].mxu0
    %v237 = vadd.f32 %v148, %v236
    %238 = vmatprep.mubr.f32.mxu0 0.0
    %239 = vmatmul.mubr.f32.gmra.mrb[0].mxu0 %v166
    %v240 = vpop.f32.mrb[0].mxu0
    %v241 = vadd.f32 %v144, %v240
    %v242 = vpop.f32.mrb[0].mxu0
    %v243 = vadd.f32 %v148, %v242
    %244 = vdwg.mxu0
    %245 = vmatprep.subr.mxu0 %v94
    %246 = vmatpush1.msra.mxu0 %v93
    %247 = vmatprep.subr.mxu0 %v98
    %248 = vmatpush1.msra.mxu0 %v97
    %249 = vmatprep.subr.mxu0 %v102
    %250 = vmatpush1.msra.mxu0 %v101
    %251 = vmatprep.subr.mxu0 %v106
    %252 = vmatpush1.msra.mxu0 %v105
    %253 = vmatprep.subr.mxu0 %v110
    %254 = vmatpush1.msra.mxu0 %v109
    %255 = vmatprep.subr.mxu0 %v114
    %256 = vmatpush1.msra.mxu0 %v113
    %257 = vmatprep.subr.mxu0 %v118
    %258 = vmatpush1.msra.mxu0 %v117
    %259 = vmatprep.subr.mxu0 %v122
    %260 = vmatpush1.msra.mxu0 %v121
    %261 = vmatprep.subr.mxu0 %v126
    %262 = vmatpush1.msra.mxu0 %v125
    %263 = vmatprep.subr.mxu0 %v130
    %264 = vmatpush1.msra.mxu0 %v129
    %265 = vmatprep.subr.mxu0 %v134
    %266 = vmatpush1.msra.mxu0 %v133
    %267 = vmatprep.subr.mxu0 %v138
    %268 = vmatpush1.msra.mxu0 %v137
    %269 = vmatprep.subr.mxu0 0.0
    %270 = vmatpush1.msra.mxu0 0.0
    %271 = vmatprep.subr.mxu0 0.0
    %272 = vmatpush1.msra.mxu0 0.0
    %273 = vmatprep.subr.mxu0 0.0
    %274 = vmatpush1.msra.mxu0 0.0
    %275 = vmatprep.subr.mxu0 0.0
    %276 = vmatpush1.msra.mxu0 0.0
    %277 = vmatprep.subr.mxu0 0.0
    %278 = vmatpush1.msra.mxu0 0.0
    %279 = vmatprep.subr.mxu0 0.0
    %280 = vmatpush1.msra.mxu0 0.0
    %281 = vmatprep.subr.mxu0 0.0
    %282 = vmatpush1.msra.mxu0 0.0
    %283 = vmatprep.subr.mxu0 0.0
    %284 = vmatpush1.msra.mxu0 0.0
    %285 = vmatprep.subr.mxu0 0.0
    %286 = vmatpush1.msra.mxu0 0.0
    %287 = vmatprep.subr.mxu0 0.0
    %288 = vmatpush1.msra.mxu0 0.0
    %289 = vmatprep.subr.mxu0 0.0
    %290 = vmatpush1.msra.mxu0 0.0
    %291 = vmatprep.subr.mxu0 0.0
    %292 = vmatpush1.msra.mxu0 0.0
    %293 = vmatprep.subr.mxu0 0.0
    %294 = vmatpush1.msra.mxu0 0.0
    %295 = vmatprep.subr.mxu0 0.0
    %296 = vmatpush1.msra.mxu0 0.0
    %297 = vmatprep.subr.mxu0 0.0
    %298 = vmatpush1.msra.mxu0 0.0
    %299 = vmatprep.subr.mxu0 0.0
    %300 = vmatpush1.msra.mxu0 0.0
    %301 = vmatprep.subr.mxu0 0.0
    %302 = vmatpush1.msra.mxu0 0.0
    %303 = vmatprep.subr.mxu0 0.0
    %304 = vmatpush1.msra.mxu0 0.0
    %305 = vmatprep.subr.mxu0 0.0
    %306 = vmatpush1.msra.mxu0 0.0
    %307 = vmatprep.subr.mxu0 0.0
    %308 = vmatpush1.msra.mxu0 0.0
    %309 = vmatprep.mubr.f32.mxu0 0.0
    %310 = vmatmul.mubr.f32.gmra.mrb[0].mxu0 %v163
    %v311 = vpop.f32.mrb[0].mxu0
    %v312 = vadd.f32 %v152, %v311
    %v313 = vpop.f32.mrb[0].mxu0
    %v314 = vadd.f32 %v156, %v313
    %315 = vmatprep.mubr.f32.mxu0 0.0
    %316 = vmatmul.mubr.f32.gmra.mrb[0].mxu0 %v166
    %v317 = vpop.f32.mrb[0].mxu0
    %v318 = vadd.f32 %v152, %v317
    %v319 = vpop.f32.mrb[0].mxu0
    %v320 = vadd.f32 %v156, %v319
    %321 = vdwg.mxu0
    %vm322 = vcmp.gt.f32.partialorder %v235, 0.0
    %vm323 = vcmp.gt.f32.partialorder %v237, 0.0
    %vm324 = vcmp.gt.f32.partialorder %v312, 0.0
    %vm325 = vcmp.gt.f32.partialorder %v314, 0.0
    %vm326 = vcmp.gt.f32.partialorder %v241, 0.0
    %vm327 = vcmp.gt.f32.partialorder %v243, 0.0
    %vm328 = vcmp.gt.f32.partialorder %v318, 0.0
    %vm329 = vcmp.gt.f32.partialorder %v320, 0.0
    %v330 = vmul.f32 %v235, 0.01
    %v331 = vmul.f32 %v237, 0.01
    %v332 = vmul.f32 %v312, 0.01
    %v333 = vmul.f32 %v314, 0.01
    %v334 = vmul.f32 %v241, 0.01
    %v335 = vmul.f32 %v243, 0.01
    %v336 = vmul.f32 %v318, 0.01
    %v337 = vmul.f32 %v320, 0.01
    %v338 = vsel %vm322, %v235, %v330
    %v339 = vsel %vm323, %v237, %v331
    %v340 = vsel %vm324, %v312, %v332
    %v341 = vsel %vm325, %v314, %v333
    %v342 = vsel %vm326, %v241, %v334
    %v343 = vsel %vm327, %v243, %v335
    %v344 = vsel %vm328, %v318, %v336
    %v345 = vsel %vm329, %v320, %v337
    %v346 = vld [vmem:[#allocation7] sm:$0xff]
    %v347 = vld [vmem:[#allocation7 + $0x8] sm:$0xff]
    %v348 = vld [vmem:[#allocation7 + $0x10] sm:$0xff]
    %v349 = vld [vmem:[#allocation7 + $0x18] sm:$0xff]
    %v350 = vld [vmem:[#allocation7 + $0x20] sm:$0xff]
    %v351 = vld [vmem:[#allocation7 + $0x28] sm:$0xff]
    %v352 = vld [vmem:[#allocation7 + $0x30] sm:$0xff]
    %v353 = vld [vmem:[#allocation7 + $0x38] sm:$0xff]
    %v354 = vld [vmem:[#allocation7 + $0x40] sm:$0xff]
    %v355 = vld [vmem:[#allocation7 + $0x48] sm:$0xff]
    %v356 = vld [vmem:[#allocation7 + $0x50] sm:$0xff]
    %v357 = vld [vmem:[#allocation7 + $0x58] sm:$0xff]
    %v358 = vld [vmem:[#allocation7 + $0x60] sm:$0xff]
    %v359 = vld [vmem:[#allocation7 + $0x68] sm:$0xff]
    %v360 = vld [vmem:[#allocation7 + $0x70] sm:$0xff]
    %v361 = vld [vmem:[#allocation7 + $0x78] sm:$0xff]
    %v362 = vld [vmem:[#allocation7 + $0x80] sm:$0xff]
    %v363 = vld [vmem:[#allocation7 + $0x88] sm:$0xff]
    %v364 = vld [vmem:[#allocation7 + $0x90] sm:$0xff]
    %v365 = vld [vmem:[#allocation7 + $0x98] sm:$0xff]
    %v366 = vld [vmem:[#allocation7 + $0xa0] sm:$0xff]
    %v367 = vld [vmem:[#allocation7 + $0xa8] sm:$0xff]
    %v368 = vld [vmem:[#allocation7 + $0xb0] sm:$0xff]
    %v369 = vld [vmem:[#allocation7 + $0xb8] sm:$0xff]
    %v370 = vld [vmem:[#allocation7 + $0xc0] sm:$0xff]
    %v371 = vld [vmem:[#allocation7 + $0xc8] sm:$0xff]
    %v372 = vld [vmem:[#allocation7 + $0xd0] sm:$0xff]
    %v373 = vld [vmem:[#allocation7 + $0xd8] sm:$0xff]
    %v374 = vld [vmem:[#allocation7 + $0xe0] sm:$0xff]
    %v375 = vld [vmem:[#allocation7 + $0xe8] sm:$0xff]
    %v376 = vld [vmem:[#allocation7 + $0xf0] sm:$0xff]
    %v377 = vld [vmem:[#allocation7 + $0xf8] sm:$0xff]
    %v378 = vld [vmem:[#allocation7 + $0x100] sm:$0xff]
    %v379 = vld [vmem:[#allocation7 + $0x108] sm:$0xff]
    %v380 = vld [vmem:[#allocation7 + $0x110] sm:$0xff]
    %v381 = vld [vmem:[#allocation7 + $0x118] sm:$0xff]
    %v382 = vld [vmem:[#allocation7 + $0x120] sm:$0xff]
    %v383 = vld [vmem:[#allocation7 + $0x128] sm:$0xff]
    %v384 = vld [vmem:[#allocation7 + $0x130] sm:$0xff]
    %v385 = vld [vmem:[#allocation7 + $0x138] sm:$0xff]
    %v386 = vld [vmem:[#allocation7 + $0x140] sm:$0xff]
    %v387 = vld [vmem:[#allocation7 + $0x148] sm:$0xff]
    %v388 = vld [vmem:[#allocation7 + $0x150] sm:$0xff]
    %v389 = vld [vmem:[#allocation7 + $0x158] sm:$0xff]
    %v390 = vld [vmem:[#allocation7 + $0x160] sm:$0xff]
    %v391 = vld [vmem:[#allocation7 + $0x168] sm:$0xff]
    %v392 = vld [vmem:[#allocation7 + $0x170] sm:$0xff]
    %v393 = vld [vmem:[#allocation7 + $0x178] sm:$0xff]
    %v394 = vld [vmem:[#allocation7 + $0x180] sm:$0xff]
    %v395 = vld [vmem:[#allocation7 + $0x188] sm:$0xff]
    %v396 = vld [vmem:[#allocation7 + $0x190] sm:$0xff]
    %v397 = vld [vmem:[#allocation7 + $0x198] sm:$0xff]
    %v398 = vld [vmem:[#allocation7 + $0x1a0] sm:$0xff]
    %v399 = vld [vmem:[#allocation7 + $0x1a8] sm:$0xff]
    %v400 = vld [vmem:[#allocation7 + $0x1b0] sm:$0xff]
    %v401 = vld [vmem:[#allocation7 + $0x1b8] sm:$0xff]
    %v402 = vld [vmem:[#allocation7 + $0x1c0] sm:$0xff]
    %v403 = vld [vmem:[#allocation7 + $0x1c8] sm:$0xff]
    %v404 = vld [vmem:[#allocation7 + $0x1d0] sm:$0xff]
    %v405 = vld [vmem:[#allocation7 + $0x1d8] sm:$0xff]
    %v406 = vld [vmem:[#allocation7 + $0x1e0] sm:$0xff]
    %v407 = vld [vmem:[#allocation7 + $0x1e8] sm:$0xff]
    %v408 = vld [vmem:[#allocation7 + $0x1f0] sm:$0xff]
    %v409 = vld [vmem:[#allocation7 + $0x1f8] sm:$0xff]
    %v410 = vld [vmem:[#allocation7 + $0x200] sm:$0xff]
    %v411 = vld [vmem:[#allocation7 + $0x208] sm:$0xff]
    %v412 = vld [vmem:[#allocation7 + $0x210] sm:$0xff]
    %v413 = vld [vmem:[#allocation7 + $0x218] sm:$0xff]
    %v414 = vld [vmem:[#allocation7 + $0x220] sm:$0xff]
    %v415 = vld [vmem:[#allocation7 + $0x228] sm:$0xff]
    %v416 = vld [vmem:[#allocation7 + $0x230] sm:$0xff]
    %v417 = vld [vmem:[#allocation7 + $0x238] sm:$0xff]
    %v418 = vld [vmem:[#allocation7 + $0x240] sm:$0xff]
    %v419 = vld [vmem:[#allocation7 + $0x248] sm:$0xff]
    %v420 = vld [vmem:[#allocation7 + $0x250] sm:$0xff]
    %v421 = vld [vmem:[#allocation7 + $0x258] sm:$0xff]
    %v422 = vld [vmem:[#allocation7 + $0x260] sm:$0xff]
    %v423 = vld [vmem:[#allocation7 + $0x268] sm:$0xff]
    %v424 = vld [vmem:[#allocation7 + $0x270] sm:$0xff]
    %v425 = vld [vmem:[#allocation7 + $0x278] sm:$0xff]
    %v426 = vld [vmem:[#allocation7 + $0x280] sm:$0xff]
    %v427 = vld [vmem:[#allocation7 + $0x288] sm:$0xff]
    %v428 = vld [vmem:[#allocation7 + $0x290] sm:$0xff]
    %v429 = vld [vmem:[#allocation7 + $0x298] sm:$0xff]
    %v430 = vld [vmem:[#allocation7 + $0x2a0] sm:$0xff]
    %v431 = vld [vmem:[#allocation7 + $0x2a8] sm:$0xff]
    %v432 = vld [vmem:[#allocation7 + $0x2b0] sm:$0xff]
    %v433 = vld [vmem:[#allocation7 + $0x2b8] sm:$0xff]
    %v434 = vld [vmem:[#allocation7 + $0x2c0] sm:$0xff]
    %v435 = vld [vmem:[#allocation7 + $0x2c8] sm:$0xff]
    %v436 = vld [vmem:[#allocation7 + $0x2d0] sm:$0xff]
    %v437 = vld [vmem:[#allocation7 + $0x2d8] sm:$0xff]
    %v438 = vld [vmem:[#allocation7 + $0x2e0] sm:$0xff]
    %v439 = vld [vmem:[#allocation7 + $0x2e8] sm:$0xff]
    %v440 = vld [vmem:[#allocation7 + $0x2f0] sm:$0xff]
    %v441 = vld [vmem:[#allocation7 + $0x2f8] sm:$0xff]
    %v442 = vld [vmem:[#allocation7 + $0x300] sm:$0xff]
    %v443 = vld [vmem:[#allocation7 + $0x308] sm:$0xff]
    %v444 = vld [vmem:[#allocation7 + $0x310] sm:$0xff]
    %v445 = vld [vmem:[#allocation7 + $0x318] sm:$0xff]
    %v446 = vld [vmem:[#allocation7 + $0x320] sm:$0xff]
    %v447 = vld [vmem:[#allocation7 + $0x328] sm:$0xff]
    %v448 = vld [vmem:[#allocation7 + $0x330] sm:$0xff]
    %v449 = vld [vmem:[#allocation7 + $0x338] sm:$0xff]
    %v450 = vld [vmem:[#allocation7 + $0x340] sm:$0xff]
    %v451 = vld [vmem:[#allocation7 + $0x348] sm:$0xff]
    %v452 = vld [vmem:[#allocation7 + $0x350] sm:$0xff]
    %v453 = vld [vmem:[#allocation7 + $0x358] sm:$0xff]
    %v454 = vld [vmem:[#allocation7 + $0x360] sm:$0xff]
    %v455 = vld [vmem:[#allocation7 + $0x368] sm:$0xff]
    %v456 = vld [vmem:[#allocation7 + $0x370] sm:$0xff]
    %v457 = vld [vmem:[#allocation7 + $0x378] sm:$0xff]
    %v458 = vld [vmem:[#allocation7 + $0x380] sm:$0xff]
    %v459 = vld [vmem:[#allocation7 + $0x388] sm:$0xff]
    %v460 = vld [vmem:[#allocation7 + $0x390] sm:$0xff]
    %v461 = vld [vmem:[#allocation7 + $0x398] sm:$0xff]
    %v462 = vld [vmem:[#allocation7 + $0x3a0] sm:$0xff]
    %v463 = vld [vmem:[#allocation7 + $0x3a8] sm:$0xff]
    %v464 = vld [vmem:[#allocation7 + $0x3b0] sm:$0xff]
    %v465 = vld [vmem:[#allocation7 + $0x3b8] sm:$0xff]
    %v466 = vld [vmem:[#allocation7 + $0x3c0] sm:$0xff]
    %v467 = vld [vmem:[#allocation7 + $0x3c8] sm:$0xff]
    %v468 = vld [vmem:[#allocation7 + $0x3d0] sm:$0xff]
    %v469 = vld [vmem:[#allocation7 + $0x3d8] sm:$0xff]
    %v470 = vld [vmem:[#allocation7 + $0x3e0] sm:$0xff]
    %v471 = vld [vmem:[#allocation7 + $0x3e8] sm:$0xff]
    %v472 = vld [vmem:[#allocation7 + $0x3f0] sm:$0xff]
    %v473 = vld [vmem:[#allocation7 + $0x3f8] sm:$0xff]
    %v474 = vld [vmem:[#allocation7 + $0x400] sm:$0xff]
    %v475 = vld [vmem:[#allocation7 + $0x408] sm:$0xff]
    %v476 = vld [vmem:[#allocation7 + $0x410] sm:$0xff]
    %v477 = vld [vmem:[#allocation7 + $0x418] sm:$0xff]
    %v478 = vld [vmem:[#allocation7 + $0x420] sm:$0xff]
    %v479 = vld [vmem:[#allocation7 + $0x428] sm:$0xff]
    %v480 = vld [vmem:[#allocation7 + $0x430] sm:$0xff]
    %v481 = vld [vmem:[#allocation7 + $0x438] sm:$0xff]
    %v482 = vld [vmem:[#allocation7 + $0x440] sm:$0xff]
    %v483 = vld [vmem:[#allocation7 + $0x448] sm:$0xff]
    %v484 = vld [vmem:[#allocation7 + $0x450] sm:$0xff]
    %v485 = vld [vmem:[#allocation7 + $0x458] sm:$0xff]
    %v486 = vld [vmem:[#allocation7 + $0x460] sm:$0xff]
    %v487 = vld [vmem:[#allocation7 + $0x468] sm:$0xff]
    %v488 = vld [vmem:[#allocation7 + $0x470] sm:$0xff]
    %v489 = vld [vmem:[#allocation7 + $0x478] sm:$0xff]
    %v490 = vld [vmem:[#allocation7 + $0x480] sm:$0xff]
    %v491 = vld [vmem:[#allocation7 + $0x488] sm:$0xff]
    %v492 = vld [vmem:[#allocation7 + $0x490] sm:$0xff]
    %v493 = vld [vmem:[#allocation7 + $0x498] sm:$0xff]
    %v494 = vld [vmem:[#allocation7 + $0x4a0] sm:$0xff]
    %v495 = vld [vmem:[#allocation7 + $0x4a8] sm:$0xff]
    %v496 = vld [vmem:[#allocation7 + $0x4b0] sm:$0xff]
    %v497 = vld [vmem:[#allocation7 + $0x4b8] sm:$0xff]
    %v498 = vld [vmem:[#allocation7 + $0x4c0] sm:$0xff]
    %v499 = vld [vmem:[#allocation7 + $0x4c8] sm:$0xff]
    %v500 = vld [vmem:[#allocation7 + $0x4d0] sm:$0xff]
    %v501 = vld [vmem:[#allocation7 + $0x4d8] sm:$0xff]
    %v502 = vld [vmem:[#allocation7 + $0x4e0] sm:$0xff]
    %v503 = vld [vmem:[#allocation7 + $0x4e8] sm:$0xff]
    %v504 = vld [vmem:[#allocation7 + $0x4f0] sm:$0xff]
    %v505 = vld [vmem:[#allocation7 + $0x4f8] sm:$0xff]
    %v506 = vld [vmem:[#allocation7 + $0x500] sm:$0xff]
    %v507 = vld [vmem:[#allocation7 + $0x508] sm:$0xff]
    %v508 = vld [vmem:[#allocation7 + $0x510] sm:$0xff]
    %v509 = vld [vmem:[#allocation7 + $0x518] sm:$0xff]
    %v510 = vld [vmem:[#allocation7 + $0x520] sm:$0xff]
    %v511 = vld [vmem:[#allocation7 + $0x528] sm:$0xff]
    %v512 = vld [vmem:[#allocation7 + $0x530] sm:$0xff]
    %v513 = vld [vmem:[#allocation7 + $0x538] sm:$0xff]
    %v514 = vld [vmem:[#allocation7 + $0x540] sm:$0xff]
    %v515 = vld [vmem:[#allocation7 + $0x548] sm:$0xff]
    %v516 = vld [vmem:[#allocation7 + $0x550] sm:$0xff]
    %v517 = vld [vmem:[#allocation7 + $0x558] sm:$0xff]
    %v518 = vld [vmem:[#allocation7 + $0x560] sm:$0xff]
    %v519 = vld [vmem:[#allocation7 + $0x568] sm:$0xff]
    %v520 = vld [vmem:[#allocation7 + $0x570] sm:$0xff]
    %v521 = vld [vmem:[#allocation7 + $0x578] sm:$0xff]
    %v522 = vld [vmem:[#allocation7 + $0x580] sm:$0xff]
    %v523 = vld [vmem:[#allocation7 + $0x588] sm:$0xff]
    %v524 = vld [vmem:[#allocation7 + $0x590] sm:$0xff]
    %v525 = vld [vmem:[#allocation7 + $0x598] sm:$0xff]
    %v526 = vld [vmem:[#allocation7 + $0x5a0] sm:$0xff]
    %v527 = vld [vmem:[#allocation7 + $0x5a8] sm:$0xff]
    %v528 = vld [vmem:[#allocation7 + $0x5b0] sm:$0xff]
    %v529 = vld [vmem:[#allocation7 + $0x5b8] sm:$0xff]
    %v530 = vld [vmem:[#allocation7 + $0x5c0] sm:$0xff]
    %v531 = vld [vmem:[#allocation7 + $0x5c8] sm:$0xff]
    %v532 = vld [vmem:[#allocation7 + $0x5d0] sm:$0xff]
    %v533 = vld [vmem:[#allocation7 + $0x5d8] sm:$0xff]
    %v534 = vld [vmem:[#allocation7 + $0x5e0] sm:$0xff]
    %v535 = vld [vmem:[#allocation7 + $0x5e8] sm:$0xff]
    %v536 = vld [vmem:[#allocation7 + $0x5f0] sm:$0xff]
    %v537 = vld [vmem:[#allocation7 + $0x5f8] sm:$0xff]
    %v538 = vld [vmem:[#allocation7 + $0x600] sm:$0xff]
    %v539 = vld [vmem:[#allocation7 + $0x608] sm:$0xff]
    %v540 = vld [vmem:[#allocation7 + $0x610] sm:$0xff]
    %v541 = vld [vmem:[#allocation7 + $0x618] sm:$0xff]
    %v542 = vld [vmem:[#allocation7 + $0x620] sm:$0xff]
    %v543 = vld [vmem:[#allocation7 + $0x628] sm:$0xff]
    %v544 = vld [vmem:[#allocation7 + $0x630] sm:$0xff]
    %v545 = vld [vmem:[#allocation7 + $0x638] sm:$0xff]
    %v546 = vld [vmem:[#allocation7 + $0x640] sm:$0xff]
    %v547 = vld [vmem:[#allocation7 + $0x648] sm:$0xff]
    %v548 = vld [vmem:[#allocation7 + $0x650] sm:$0xff]
    %v549 = vld [vmem:[#allocation7 + $0x658] sm:$0xff]
    %v550 = vld [vmem:[#allocation7 + $0x660] sm:$0xff]
    %v551 = vld [vmem:[#allocation7 + $0x668] sm:$0xff]
    %v552 = vld [vmem:[#allocation7 + $0x670] sm:$0xff]
    %v553 = vld [vmem:[#allocation7 + $0x678] sm:$0xff]
    %v554 = vld [vmem:[#allocation7 + $0x680] sm:$0xff]
    %v555 = vld [vmem:[#allocation7 + $0x688] sm:$0xff]
    %v556 = vld [vmem:[#allocation7 + $0x690] sm:$0xff]
    %v557 = vld [vmem:[#allocation7 + $0x698] sm:$0xff]
    %v558 = vld [vmem:[#allocation7 + $0x6a0] sm:$0xff]
    %v559 = vld [vmem:[#allocation7 + $0x6a8] sm:$0xff]
    %v560 = vld [vmem:[#allocation7 + $0x6b0] sm:$0xff]
    %v561 = vld [vmem:[#allocation7 + $0x6b8] sm:$0xff]
    %v562 = vld [vmem:[#allocation7 + $0x6c0] sm:$0xff]
    %v563 = vld [vmem:[#allocation7 + $0x6c8] sm:$0xff]
    %v564 = vld [vmem:[#allocation7 + $0x6d0] sm:$0xff]
    %v565 = vld [vmem:[#allocation7 + $0x6d8] sm:$0xff]
    %v566 = vld [vmem:[#allocation7 + $0x6e0] sm:$0xff]
    %v567 = vld [vmem:[#allocation7 + $0x6e8] sm:$0xff]
    %v568 = vld [vmem:[#allocation7 + $0x6f0] sm:$0xff]
    %v569 = vld [vmem:[#allocation7 + $0x6f8] sm:$0xff]
    %v570 = vld [vmem:[#allocation7 + $0x700] sm:$0xff]
    %v571 = vld [vmem:[#allocation7 + $0x708] sm:$0xff]
    %v572 = vld [vmem:[#allocation7 + $0x710] sm:$0xff]
    %v573 = vld [vmem:[#allocation7 + $0x718] sm:$0xff]
    %v574 = vld [vmem:[#allocation7 + $0x720] sm:$0xff]
    %v575 = vld [vmem:[#allocation7 + $0x728] sm:$0xff]
    %v576 = vld [vmem:[#allocation7 + $0x730] sm:$0xff]
    %v577 = vld [vmem:[#allocation7 + $0x738] sm:$0xff]
    %v578 = vld [vmem:[#allocation7 + $0x740] sm:$0xff]
    %v579 = vld [vmem:[#allocation7 + $0x748] sm:$0xff]
    %v580 = vld [vmem:[#allocation7 + $0x750] sm:$0xff]
    %v581 = vld [vmem:[#allocation7 + $0x758] sm:$0xff]
    %v582 = vld [vmem:[#allocation7 + $0x760] sm:$0xff]
    %v583 = vld [vmem:[#allocation7 + $0x768] sm:$0xff]
    %v584 = vld [vmem:[#allocation7 + $0x770] sm:$0xff]
    %v585 = vld [vmem:[#allocation7 + $0x778] sm:$0xff]
    %v586 = vld [vmem:[#allocation7 + $0x780] sm:$0xff]
    %v587 = vld [vmem:[#allocation7 + $0x788] sm:$0xff]
    %v588 = vld [vmem:[#allocation7 + $0x790] sm:$0xff]
    %v589 = vld [vmem:[#allocation7 + $0x798] sm:$0xff]
    %v590 = vld [vmem:[#allocation7 + $0x7a0] sm:$0xff]
    %v591 = vld [vmem:[#allocation7 + $0x7a8] sm:$0xff]
    %v592 = vld [vmem:[#allocation7 + $0x7b0] sm:$0xff]
    %v593 = vld [vmem:[#allocation7 + $0x7b8] sm:$0xff]
    %v594 = vld [vmem:[#allocation7 + $0x7c0] sm:$0xff]
    %v595 = vld [vmem:[#allocation7 + $0x7c8] sm:$0xff]
    %v596 = vld [vmem:[#allocation7 + $0x7d0] sm:$0xff]
    %v597 = vld [vmem:[#allocation7 + $0x7d8] sm:$0xff]
    %v598 = vld [vmem:[#allocation7 + $0x7e0] sm:$0xff]
    %v599 = vld [vmem:[#allocation7 + $0x7e8] sm:$0xff]
    %v600 = vld [vmem:[#allocation7 + $0x7f0] sm:$0xff]
    %v601 = vld [vmem:[#allocation7 + $0x7f8] sm:$0xff]
    %v602 = vld [vmem:[%s4] sm:$0xf]
    %v604 = vlaneseq
    %v605 = vshrl.u32 %v604, 7
    %v606 = vsub.s32 0, %v605
    %v607 = vrot.slane %v602, %v606
    %v608 = vlaneseq
    %v609 = vshrl.u32 %v608, 7
    %v610 = vsub.s32 1, %v609
    %v611 = vrot.slane %v602, %v610
    %v612 = vlaneseq
    %v613 = vshrl.u32 %v612, 7
    %v614 = vsub.s32 2, %v613
    %v615 = vrot.slane %v602, %v614
    %v616 = vlaneseq
    %v617 = vshrl.u32 %v616, 7
    %v618 = vsub.s32 3, %v617
    %v619 = vrot.slane %v602, %v618
    %624 = vmatprep.subr.mxu0 %v347
    %625 = vmatpush1.msra.mxu0 %v346
    %626 = vmatprep.subr.mxu0 %v351
    %627 = vmatpush1.msra.mxu0 %v350
    %628 = vmatprep.subr.mxu0 %v355
    %629 = vmatpush1.msra.mxu0 %v354
    %630 = vmatprep.subr.mxu0 %v359
    %631 = vmatpush1.msra.mxu0 %v358
    %632 = vmatprep.subr.mxu0 %v363
    %633 = vmatpush1.msra.mxu0 %v362
    %634 = vmatprep.subr.mxu0 %v367
    %635 = vmatpush1.msra.mxu0 %v366
    %636 = vmatprep.subr.mxu0 %v371
    %637 = vmatpush1.msra.mxu0 %v370
    %638 = vmatprep.subr.mxu0 %v375
    %639 = vmatpush1.msra.mxu0 %v374
    %640 = vmatprep.subr.mxu0 %v379
    %641 = vmatpush1.msra.mxu0 %v378
    %642 = vmatprep.subr.mxu0 %v383
    %643 = vmatpush1.msra.mxu0 %v382
    %644 = vmatprep.subr.mxu0 %v387
    %645 = vmatpush1.msra.mxu0 %v386
    %646 = vmatprep.subr.mxu0 %v391
    %647 = vmatpush1.msra.mxu0 %v390
    %648 = vmatprep.subr.mxu0 %v395
    %649 = vmatpush1.msra.mxu0 %v394
    %650 = vmatprep.subr.mxu0 %v399
    %651 = vmatpush1.msra.mxu0 %v398
    %652 = vmatprep.subr.mxu0 %v403
    %653 = vmatpush1.msra.mxu0 %v402
    %654 = vmatprep.subr.mxu0 %v407
    %655 = vmatpush1.msra.mxu0 %v406
    %656 = vmatprep.subr.mxu0 %v411
    %657 = vmatpush1.msra.mxu0 %v410
    %658 = vmatprep.subr.mxu0 %v415
    %659 = vmatpush1.msra.mxu0 %v414
    %660 = vmatprep.subr.mxu0 %v419
    %661 = vmatpush1.msra.mxu0 %v418
    %662 = vmatprep.subr.mxu0 %v423
    %663 = vmatpush1.msra.mxu0 %v422
    %664 = vmatprep.subr.mxu0 %v427
    %665 = vmatpush1.msra.mxu0 %v426
    %666 = vmatprep.subr.mxu0 %v431
    %667 = vmatpush1.msra.mxu0 %v430
    %668 = vmatprep.subr.mxu0 %v435
    %669 = vmatpush1.msra.mxu0 %v434
    %670 = vmatprep.subr.mxu0 %v439
    %671 = vmatpush1.msra.mxu0 %v438
    %672 = vmatprep.subr.mxu0 %v443
    %673 = vmatpush1.msra.mxu0 %v442
    %674 = vmatprep.subr.mxu0 %v447
    %675 = vmatpush1.msra.mxu0 %v446
    %676 = vmatprep.subr.mxu0 %v451
    %677 = vmatpush1.msra.mxu0 %v450
    %678 = vmatprep.subr.mxu0 %v455
    %679 = vmatpush1.msra.mxu0 %v454
    %680 = vmatprep.subr.mxu0 %v459
    %681 = vmatpush1.msra.mxu0 %v458
    %682 = vmatprep.subr.mxu0 %v463
    %683 = vmatpush1.msra.mxu0 %v462
    %684 = vmatprep.subr.mxu0 %v467
    %685 = vmatpush1.msra.mxu0 %v466
    %686 = vmatprep.subr.mxu0 %v471
    %687 = vmatpush1.msra.mxu0 %v470
    %688 = vmatprep.mubr.f32.mxu0 %v339
    %689 = vmatmul.mubr.f32.gmra.mrb[0].mxu0 %v338
    %v690 = vpop.f32.mrb[0].mxu0
    %v691 = vadd.f32 %v607, %v690
    %v692 = vpop.f32.mrb[0].mxu0
    %v693 = vadd.f32 %v611, %v692
    %694 = vmatprep.mubr.f32.mxu0 %v343
    %695 = vmatmul.mubr.f32.gmra.mrb[0].mxu0 %v342
    %v696 = vpop.f32.mrb[0].mxu0
    %v697 = vadd.f32 %v607, %v696
    %v698 = vpop.f32.mrb[0].mxu0
    %v699 = vadd.f32 %v611, %v698
    %700 = vdwg.mxu0
    %701 = vmatprep.subr.mxu0 %v475
    %702 = vmatpush1.msra.mxu0 %v474
    %703 = vmatprep.subr.mxu0 %v479
    %704 = vmatpush1.msra.mxu0 %v478
    %705 = vmatprep.subr.mxu0 %v483
    %706 = vmatpush1.msra.mxu0 %v482
    %707 = vmatprep.subr.mxu0 %v487
    %708 = vmatpush1.msra.mxu0 %v486
    %709 = vmatprep.subr.mxu0 %v491
    %710 = vmatpush1.msra.mxu0 %v490
    %711 = vmatprep.subr.mxu0 %v495
    %712 = vmatpush1.msra.mxu0 %v494
    %713 = vmatprep.subr.mxu0 %v499
    %714 = vmatpush1.msra.mxu0 %v498
    %715 = vmatprep.subr.mxu0 %v503
    %716 = vmatpush1.msra.mxu0 %v502
    %717 = vmatprep.subr.mxu0 %v507
    %718 = vmatpush1.msra.mxu0 %v506
    %719 = vmatprep.subr.mxu0 %v511
    %720 = vmatpush1.msra.mxu0 %v510
    %721 = vmatprep.subr.mxu0 %v515
    %722 = vmatpush1.msra.mxu0 %v514
    %723 = vmatprep.subr.mxu0 %v519
    %724 = vmatpush1.msra.mxu0 %v518
    %725 = vmatprep.subr.mxu0 %v523
    %726 = vmatpush1.msra.mxu0 %v522
    %727 = vmatprep.subr.mxu0 %v527
    %728 = vmatpush1.msra.mxu0 %v526
    %729 = vmatprep.subr.mxu0 %v531
    %730 = vmatpush1.msra.mxu0 %v530
    %731 = vmatprep.subr.mxu0 %v535
    %732 = vmatpush1.msra.mxu0 %v534
    %733 = vmatprep.subr.mxu0 %v539
    %734 = vmatpush1.msra.mxu0 %v538
    %735 = vmatprep.subr.mxu0 %v543
    %736 = vmatpush1.msra.mxu0 %v542
    %737 = vmatprep.subr.mxu0 %v547
    %738 = vmatpush1.msra.mxu0 %v546
    %739 = vmatprep.subr.mxu0 %v551
    %740 = vmatpush1.msra.mxu0 %v550
    %741 = vmatprep.subr.mxu0 %v555
    %742 = vmatpush1.msra.mxu0 %v554
    %743 = vmatprep.subr.mxu0 %v559
    %744 = vmatpush1.msra.mxu0 %v558
    %745 = vmatprep.subr.mxu0 %v563
    %746 = vmatpush1.msra.mxu0 %v562
    %747 = vmatprep.subr.mxu0 %v567
    %748 = vmatpush1.msra.mxu0 %v566
    %749 = vmatprep.subr.mxu0 %v571
    %750 = vmatpush1.msra.mxu0 %v570
    %751 = vmatprep.subr.mxu0 %v575
    %752 = vmatpush1.msra.mxu0 %v574
    %753 = vmatprep.subr.mxu0 %v579
    %754 = vmatpush1.msra.mxu0 %v578
    %755 = vmatprep.subr.mxu0 %v583
    %756 = vmatpush1.msra.mxu0 %v582
    %757 = vmatprep.subr.mxu0 %v587
    %758 = vmatpush1.msra.mxu0 %v586
    %759 = vmatprep.subr.mxu0 %v591
    %760 = vmatpush1.msra.mxu0 %v590
    %761 = vmatprep.subr.mxu0 %v595
    %762 = vmatpush1.msra.mxu0 %v594
    %763 = vmatprep.subr.mxu0 %v599
    %764 = vmatpush1.msra.mxu0 %v598
    %765 = vmatprep.mubr.f32.mxu0 %v341
    %766 = vmatmul.mubr.f32.gmra.mrb[0].mxu0 %v340
    %v767 = vpop.f32.mrb[0].mxu0
    %v768 = vadd.f32 %v691, %v767
    %v769 = vpop.f32.mrb[0].mxu0
    %v770 = vadd.f32 %v693, %v769
    %771 = vmatprep.mubr.f32.mxu0 %v345
    %772 = vmatmul.mubr.f32.gmra.mrb[0].mxu0 %v344
    %v773 = vpop.f32.mrb[0].mxu0
    %v774 = vadd.f32 %v697, %v773
    %v775 = vpop.f32.mrb[0].mxu0
    %v776 = vadd.f32 %v699, %v775
    %777 = vdwg.mxu0
    %778 = vmatprep.subr.mxu0 %v349
    %779 = vmatpush1.msra.mxu0 %v348
    %780 = vmatprep.subr.mxu0 %v353
    %781 = vmatpush1.msra.mxu0 %v352
    %782 = vmatprep.subr.mxu0 %v357
    %783 = vmatpush1.msra.mxu0 %v356
    %784 = vmatprep.subr.mxu0 %v361
    %785 = vmatpush1.msra.mxu0 %v360
    %786 = vmatprep.subr.mxu0 %v365
    %787 = vmatpush1.msra.mxu0 %v364
    %788 = vmatprep.subr.mxu0 %v369
    %789 = vmatpush1.msra.mxu0 %v368
    %790 = vmatprep.subr.mxu0 %v373
    %791 = vmatpush1.msra.mxu0 %v372
    %792 = vmatprep.subr.mxu0 %v377
    %793 = vmatpush1.msra.mxu0 %v376
    %794 = vmatprep.subr.mxu0 %v381
    %795 = vmatpush1.msra.mxu0 %v380
    %796 = vmatprep.subr.mxu0 %v385
    %797 = vmatpush1.msra.mxu0 %v384
    %798 = vmatprep.subr.mxu0 %v389
    %799 = vmatpush1.msra.mxu0 %v388
    %800 = vmatprep.subr.mxu0 %v393
    %801 = vmatpush1.msra.mxu0 %v392
    %802 = vmatprep.subr.mxu0 %v397
    %803 = vmatpush1.msra.mxu0 %v396
    %804 = vmatprep.subr.mxu0 %v401
    %805 = vmatpush1.msra.mxu0 %v400
    %806 = vmatprep.subr.mxu0 %v405
    %807 = vmatpush1.msra.mxu0 %v404
    %808 = vmatprep.subr.mxu0 %v409
    %809 = vmatpush1.msra.mxu0 %v408
    %810 = vmatprep.subr.mxu0 %v413
    %811 = vmatpush1.msra.mxu0 %v412
    %812 = vmatprep.subr.mxu0 %v417
    %813 = vmatpush1.msra.mxu0 %v416
    %814 = vmatprep.subr.mxu0 %v421
    %815 = vmatpush1.msra.mxu0 %v420
    %816 = vmatprep.subr.mxu0 %v425
    %817 = vmatpush1.msra.mxu0 %v424
    %818 = vmatprep.subr.mxu0 %v429
    %819 = vmatpush1.msra.mxu0 %v428
    %820 = vmatprep.subr.mxu0 %v433
    %821 = vmatpush1.msra.mxu0 %v432
    %822 = vmatprep.subr.mxu0 %v437
    %823 = vmatpush1.msra.mxu0 %v436
    %824 = vmatprep.subr.mxu0 %v441
    %825 = vmatpush1.msra.mxu0 %v440
    %826 = vmatprep.subr.mxu0 %v445
    %827 = vmatpush1.msra.mxu0 %v444
    %828 = vmatprep.subr.mxu0 %v449
    %829 = vmatpush1.msra.mxu0 %v448
    %830 = vmatprep.subr.mxu0 %v453
    %831 = vmatpush1.msra.mxu0 %v452
    %832 = vmatprep.subr.mxu0 %v457
    %833 = vmatpush1.msra.mxu0 %v456
    %834 = vmatprep.subr.mxu0 %v461
    %835 = vmatpush1.msra.mxu0 %v460
    %836 = vmatprep.subr.mxu0 %v465
    %837 = vmatpush1.msra.mxu0 %v464
    %838 = vmatprep.subr.mxu0 %v469
    %839 = vmatpush1.msra.mxu0 %v468
    %840 = vmatprep.subr.mxu0 %v473
    %841 = vmatpush1.msra.mxu0 %v472
    %842 = vmatprep.mubr.f32.mxu0 %v339
    %843 = vmatmul.mubr.f32.gmra.mrb[0].mxu0 %v338
    %v844 = vpop.f32.mrb[0].mxu0
    %v845 = vadd.f32 %v615, %v844
    %v846 = vpop.f32.mrb[0].mxu0
    %v847 = vadd.f32 %v619, %v846
    %848 = vmatprep.mubr.f32.mxu0 %v343
    %849 = vmatmul.mubr.f32.gmra.mrb[0].mxu0 %v342
    %v850 = vpop.f32.mrb[0].mxu0
    %v851 = vadd.f32 %v615, %v850
    %v852 = vpop.f32.mrb[0].mxu0
    %v853 = vadd.f32 %v619, %v852
    %854 = vdwg.mxu0
    %855 = vmatprep.subr.mxu0 %v477
    %856 = vmatpush1.msra.mxu0 %v476
    %857 = vmatprep.subr.mxu0 %v481
    %858 = vmatpush1.msra.mxu0 %v480
    %859 = vmatprep.subr.mxu0 %v485
    %860 = vmatpush1.msra.mxu0 %v484
    %861 = vmatprep.subr.mxu0 %v489
    %862 = vmatpush1.msra.mxu0 %v488
    %863 = vmatprep.subr.mxu0 %v493
    %864 = vmatpush1.msra.mxu0 %v492
    %865 = vmatprep.subr.mxu0 %v497
    %866 = vmatpush1.msra.mxu0 %v496
    %867 = vmatprep.subr.mxu0 %v501
    %868 = vmatpush1.msra.mxu0 %v500
    %869 = vmatprep.subr.mxu0 %v505
    %870 = vmatpush1.msra.mxu0 %v504
    %871 = vmatprep.subr.mxu0 %v509
    %872 = vmatpush1.msra.mxu0 %v508
    %873 = vmatprep.subr.mxu0 %v513
    %874 = vmatpush1.msra.mxu0 %v512
    %875 = vmatprep.subr.mxu0 %v517
    %876 = vmatpush1.msra.mxu0 %v516
    %877 = vmatprep.subr.mxu0 %v521
    %878 = vmatpush1.msra.mxu0 %v520
    %879 = vmatprep.subr.mxu0 %v525
    %880 = vmatpush1.msra.mxu0 %v524
    %881 = vmatprep.subr.mxu0 %v529
    %882 = vmatpush1.msra.mxu0 %v528
    %883 = vmatprep.subr.mxu0 %v533
    %884 = vmatpush1.msra.mxu0 %v532
    %885 = vmatprep.subr.mxu0 %v537
    %886 = vmatpush1.msra.mxu0 %v536
    %887 = vmatprep.subr.mxu0 %v541
    %888 = vmatpush1.msra.mxu0 %v540
    %889 = vmatprep.subr.mxu0 %v545
    %890 = vmatpush1.msra.mxu0 %v544
    %891 = vmatprep.subr.mxu0 %v549
    %892 = vmatpush1.msra.mxu0 %v548
    %893 = vmatprep.subr.mxu0 %v553
    %894 = vmatpush1.msra.mxu0 %v552
    %895 = vmatprep.subr.mxu0 %v557
    %896 = vmatpush1.msra.mxu0 %v556
    %897 = vmatprep.subr.mxu0 %v561
    %898 = vmatpush1.msra.mxu0 %v560
    %899 = vmatprep.subr.mxu0 %v565
    %900 = vmatpush1.msra.mxu0 %v564
    %901 = vmatprep.subr.mxu0 %v569
    %902 = vmatpush1.msra.mxu0 %v568
    %903 = vmatprep.subr.mxu0 %v573
    %904 = vmatpush1.msra.mxu0 %v572
    %905 = vmatprep.subr.mxu0 %v577
    %906 = vmatpush1.msra.mxu0 %v576
    %907 = vmatprep.subr.mxu0 %v581
    %908 = vmatpush1.msra.mxu0 %v580
    %909 = vmatprep.subr.mxu0 %v585
    %910 = vmatpush1.msra.mxu0 %v584
    %911 = vmatprep.subr.mxu0 %v589
    %912 = vmatpush1.msra.mxu0 %v588
    %913 = vmatprep.subr.mxu0 %v593
    %914 = vmatpush1.msra.mxu0 %v592
    %915 = vmatprep.subr.mxu0 %v597
    %916 = vmatpush1.msra.mxu0 %v596
    %917 = vmatprep.subr.mxu0 %v601
    %918 = vmatpush1.msra.mxu0 %v600
    %919 = vmatprep.mubr.f32.mxu0 %v341
    %920 = vmatmul.mubr.f32.gmra.mrb[0].mxu0 %v340
    %v921 = vpop.f32.mrb[0].mxu0
    %v922 = vadd.f32 %v845, %v921
    %v923 = vpop.f32.mrb[0].mxu0
    %v924 = vadd.f32 %v847, %v923
    %925 = vmatprep.mubr.f32.mxu0 %v345
    %926 = vmatmul.mubr.f32.gmra.mrb[0].mxu0 %v344
    %v927 = vpop.f32.mrb[0].mxu0
    %v928 = vadd.f32 %v851, %v927
    %v929 = vpop.f32.mrb[0].mxu0
    %v930 = vadd.f32 %v853, %v929
    %931 = vdwg.mxu0
    %vm932 = vcmp.gt.f32.partialorder %v768, 0.0
    %vm933 = vcmp.gt.f32.partialorder %v770, 0.0
    %vm934 = vcmp.gt.f32.partialorder %v922, 0.0
    %vm935 = vcmp.gt.f32.partialorder %v924, 0.0
    %vm936 = vcmp.gt.f32.partialorder %v774, 0.0
    %vm937 = vcmp.gt.f32.partialorder %v776, 0.0
    %vm938 = vcmp.gt.f32.partialorder %v928, 0.0
    %vm939 = vcmp.gt.f32.partialorder %v930, 0.0
    %v940 = vmul.f32 %v768, 0.01
    %v941 = vmul.f32 %v770, 0.01
    %v942 = vmul.f32 %v922, 0.01
    %v943 = vmul.f32 %v924, 0.01
    %v944 = vmul.f32 %v774, 0.01
    %v945 = vmul.f32 %v776, 0.01
    %v946 = vmul.f32 %v928, 0.01
    %v947 = vmul.f32 %v930, 0.01
    %v948 = vsel %vm932, %v768, %v940
    %v949 = vsel %vm933, %v770, %v941
    %v950 = vsel %vm934, %v922, %v942
    %v951 = vsel %vm935, %v924, %v943
    %v952 = vsel %vm936, %v774, %v944
    %v953 = vsel %vm937, %v776, %v945
    %v954 = vsel %vm938, %v928, %v946
    %v955 = vsel %vm939, %v930, %v947
    %v956 = vld [vmem:[#allocation8] sm:$0xff]
    %v957 = vld [vmem:[#allocation8 + $0x8] sm:$0xff]
    %v958 = vld [vmem:[#allocation8 + $0x10] sm:$0xff]
    %v959 = vld [vmem:[#allocation8 + $0x18] sm:$0xff]
    %v960 = vld [vmem:[#allocation8 + $0x20] sm:$0xff]
    %v961 = vld [vmem:[#allocation8 + $0x28] sm:$0xff]
    %v962 = vld [vmem:[#allocation8 + $0x30] sm:$0xff]
    %v963 = vld [vmem:[#allocation8 + $0x38] sm:$0xff]
    %v964 = vld [vmem:[#allocation8 + $0x40] sm:$0xff]
    %v965 = vld [vmem:[#allocation8 + $0x48] sm:$0xff]
    %v966 = vld [vmem:[#allocation8 + $0x50] sm:$0xff]
    %v967 = vld [vmem:[#allocation8 + $0x58] sm:$0xff]
    %v968 = vld [vmem:[#allocation8 + $0x60] sm:$0xff]
    %v969 = vld [vmem:[#allocation8 + $0x68] sm:$0xff]
    %v970 = vld [vmem:[#allocation8 + $0x70] sm:$0xff]
    %v971 = vld [vmem:[#allocation8 + $0x78] sm:$0xff]
    %v972 = vld [vmem:[#allocation8 + $0x80] sm:$0xff]
    %v973 = vld [vmem:[#allocation8 + $0x88] sm:$0xff]
    %v974 = vld [vmem:[#allocation8 + $0x90] sm:$0xff]
    %v975 = vld [vmem:[#allocation8 + $0x98] sm:$0xff]
    %v976 = vld [vmem:[#allocation8 + $0xa0] sm:$0xff]
    %v977 = vld [vmem:[#allocation8 + $0xa8] sm:$0xff]
    %v978 = vld [vmem:[#allocation8 + $0xb0] sm:$0xff]
    %v979 = vld [vmem:[#allocation8 + $0xb8] sm:$0xff]
    %v980 = vld [vmem:[#allocation8 + $0xc0] sm:$0xff]
    %v981 = vld [vmem:[#allocation8 + $0xc8] sm:$0xff]
    %v982 = vld [vmem:[#allocation8 + $0xd0] sm:$0xff]
    %v983 = vld [vmem:[#allocation8 + $0xd8] sm:$0xff]
    %v984 = vld [vmem:[#allocation8 + $0xe0] sm:$0xff]
    %v985 = vld [vmem:[#allocation8 + $0xe8] sm:$0xff]
    %v986 = vld [vmem:[#allocation8 + $0xf0] sm:$0xff]
    %v987 = vld [vmem:[#allocation8 + $0xf8] sm:$0xff]
    %v988 = vld [vmem:[#allocation8 + $0x100] sm:$0xff]
    %v989 = vld [vmem:[#allocation8 + $0x108] sm:$0xff]
    %v990 = vld [vmem:[#allocation8 + $0x110] sm:$0xff]
    %v991 = vld [vmem:[#allocation8 + $0x118] sm:$0xff]
    %v992 = vld [vmem:[#allocation8 + $0x120] sm:$0xff]
    %v993 = vld [vmem:[#allocation8 + $0x128] sm:$0xff]
    %v994 = vld [vmem:[#allocation8 + $0x130] sm:$0xff]
    %v995 = vld [vmem:[#allocation8 + $0x138] sm:$0xff]
    %v996 = vld [vmem:[#allocation8 + $0x140] sm:$0xff]
    %v997 = vld [vmem:[#allocation8 + $0x148] sm:$0xff]
    %v998 = vld [vmem:[#allocation8 + $0x150] sm:$0xff]
    %v999 = vld [vmem:[#allocation8 + $0x158] sm:$0xff]
    %v1000 = vld [vmem:[#allocation8 + $0x160] sm:$0xff]
    %v1001 = vld [vmem:[#allocation8 + $0x168] sm:$0xff]
    %v1002 = vld [vmem:[#allocation8 + $0x170] sm:$0xff]
    %v1003 = vld [vmem:[#allocation8 + $0x178] sm:$0xff]
    %v1004 = vld [vmem:[#allocation8 + $0x180] sm:$0xff]
    %v1005 = vld [vmem:[#allocation8 + $0x188] sm:$0xff]
    %v1006 = vld [vmem:[#allocation8 + $0x190] sm:$0xff]
    %v1007 = vld [vmem:[#allocation8 + $0x198] sm:$0xff]
    %v1008 = vld [vmem:[#allocation8 + $0x1a0] sm:$0xff]
    %v1009 = vld [vmem:[#allocation8 + $0x1a8] sm:$0xff]
    %v1010 = vld [vmem:[#allocation8 + $0x1b0] sm:$0xff]
    %v1011 = vld [vmem:[#allocation8 + $0x1b8] sm:$0xff]
    %v1012 = vld [vmem:[#allocation8 + $0x1c0] sm:$0xff]
    %v1013 = vld [vmem:[#allocation8 + $0x1c8] sm:$0xff]
    %v1014 = vld [vmem:[#allocation8 + $0x1d0] sm:$0xff]
    %v1015 = vld [vmem:[#allocation8 + $0x1d8] sm:$0xff]
    %v1016 = vld [vmem:[#allocation8 + $0x1e0] sm:$0xff]
    %v1017 = vld [vmem:[#allocation8 + $0x1e8] sm:$0xff]
    %v1018 = vld [vmem:[#allocation8 + $0x1f0] sm:$0xff]
    %v1019 = vld [vmem:[#allocation8 + $0x1f8] sm:$0xff]
    %v1020 = vld [vmem:[#allocation8 + $0x200] sm:$0xff]
    %v1021 = vld [vmem:[#allocation8 + $0x208] sm:$0xff]
    %v1022 = vld [vmem:[#allocation8 + $0x210] sm:$0xff]
    %v1023 = vld [vmem:[#allocation8 + $0x218] sm:$0xff]
    %v1024 = vld [vmem:[#allocation8 + $0x220] sm:$0xff]
    %v1025 = vld [vmem:[#allocation8 + $0x228] sm:$0xff]
    %v1026 = vld [vmem:[#allocation8 + $0x230] sm:$0xff]
    %v1027 = vld [vmem:[#allocation8 + $0x238] sm:$0xff]
    %v1028 = vld [vmem:[#allocation8 + $0x240] sm:$0xff]
    %v1029 = vld [vmem:[#allocation8 + $0x248] sm:$0xff]
    %v1030 = vld [vmem:[#allocation8 + $0x250] sm:$0xff]
    %v1031 = vld [vmem:[#allocation8 + $0x258] sm:$0xff]
    %v1032 = vld [vmem:[#allocation8 + $0x260] sm:$0xff]
    %v1033 = vld [vmem:[#allocation8 + $0x268] sm:$0xff]
    %v1034 = vld [vmem:[#allocation8 + $0x270] sm:$0xff]
    %v1035 = vld [vmem:[#allocation8 + $0x278] sm:$0xff]
    %v1036 = vld [vmem:[#allocation8 + $0x280] sm:$0xff]
    %v1037 = vld [vmem:[#allocation8 + $0x288] sm:$0xff]
    %v1038 = vld [vmem:[#allocation8 + $0x290] sm:$0xff]
    %v1039 = vld [vmem:[#allocation8 + $0x298] sm:$0xff]
    %v1040 = vld [vmem:[#allocation8 + $0x2a0] sm:$0xff]
    %v1041 = vld [vmem:[#allocation8 + $0x2a8] sm:$0xff]
    %v1042 = vld [vmem:[#allocation8 + $0x2b0] sm:$0xff]
    %v1043 = vld [vmem:[#allocation8 + $0x2b8] sm:$0xff]
    %v1044 = vld [vmem:[#allocation8 + $0x2c0] sm:$0xff]
    %v1045 = vld [vmem:[#allocation8 + $0x2c8] sm:$0xff]
    %v1046 = vld [vmem:[#allocation8 + $0x2d0] sm:$0xff]
    %v1047 = vld [vmem:[#allocation8 + $0x2d8] sm:$0xff]
    %v1048 = vld [vmem:[#allocation8 + $0x2e0] sm:$0xff]
    %v1049 = vld [vmem:[#allocation8 + $0x2e8] sm:$0xff]
    %v1050 = vld [vmem:[#allocation8 + $0x2f0] sm:$0xff]
    %v1051 = vld [vmem:[#allocation8 + $0x2f8] sm:$0xff]
    %v1052 = vld [vmem:[#allocation8 + $0x300] sm:$0xff]
    %v1053 = vld [vmem:[#allocation8 + $0x308] sm:$0xff]
    %v1054 = vld [vmem:[#allocation8 + $0x310] sm:$0xff]
    %v1055 = vld [vmem:[#allocation8 + $0x318] sm:$0xff]
    %v1056 = vld [vmem:[#allocation8 + $0x320] sm:$0xff]
    %v1057 = vld [vmem:[#allocation8 + $0x328] sm:$0xff]
    %v1058 = vld [vmem:[#allocation8 + $0x330] sm:$0xff]
    %v1059 = vld [vmem:[#allocation8 + $0x338] sm:$0xff]
    %v1060 = vld [vmem:[#allocation8 + $0x340] sm:$0xff]
    %v1061 = vld [vmem:[#allocation8 + $0x348] sm:$0xff]
    %v1062 = vld [vmem:[#allocation8 + $0x350] sm:$0xff]
    %v1063 = vld [vmem:[#allocation8 + $0x358] sm:$0xff]
    %v1064 = vld [vmem:[#allocation8 + $0x360] sm:$0xff]
    %v1065 = vld [vmem:[#allocation8 + $0x368] sm:$0xff]
    %v1066 = vld [vmem:[#allocation8 + $0x370] sm:$0xff]
    %v1067 = vld [vmem:[#allocation8 + $0x378] sm:$0xff]
    %v1068 = vld [vmem:[#allocation8 + $0x380] sm:$0xff]
    %v1069 = vld [vmem:[#allocation8 + $0x388] sm:$0xff]
    %v1070 = vld [vmem:[#allocation8 + $0x390] sm:$0xff]
    %v1071 = vld [vmem:[#allocation8 + $0x398] sm:$0xff]
    %v1072 = vld [vmem:[#allocation8 + $0x3a0] sm:$0xff]
    %v1073 = vld [vmem:[#allocation8 + $0x3a8] sm:$0xff]
    %v1074 = vld [vmem:[#allocation8 + $0x3b0] sm:$0xff]
    %v1075 = vld [vmem:[#allocation8 + $0x3b8] sm:$0xff]
    %v1076 = vld [vmem:[#allocation8 + $0x3c0] sm:$0xff]
    %v1077 = vld [vmem:[#allocation8 + $0x3c8] sm:$0xff]
    %v1078 = vld [vmem:[#allocation8 + $0x3d0] sm:$0xff]
    %v1079 = vld [vmem:[#allocation8 + $0x3d8] sm:$0xff]
    %v1080 = vld [vmem:[#allocation8 + $0x3e0] sm:$0xff]
    %v1081 = vld [vmem:[#allocation8 + $0x3e8] sm:$0xff]
    %v1082 = vld [vmem:[#allocation8 + $0x3f0] sm:$0xff]
    %v1083 = vld [vmem:[#allocation8 + $0x3f8] sm:$0xff]
    %v1084 = vld [vmem:[%s6] sm:$0x3]
    %v1086 = vlaneseq
    %v1087 = vshrl.u32 %v1086, 7
    %v1088 = vsub.s32 0, %v1087
    %v1089 = vrot.slane %v1084, %v1088
    %v1090 = vlaneseq
    %v1091 = vshrl.u32 %v1090, 7
    %v1092 = vsub.s32 1, %v1091
    %v1093 = vrot.slane %v1084, %v1092
    %1096 = vmatprep.subr.mxu0 %v957
    %1097 = vmatpush1.msra.mxu0 %v956
    %1098 = vmatprep.subr.mxu0 %v959
    %1099 = vmatpush1.msra.mxu0 %v958
    %1100 = vmatprep.subr.mxu0 %v961
    %1101 = vmatpush1.msra.mxu0 %v960
    %1102 = vmatprep.subr.mxu0 %v963
    %1103 = vmatpush1.msra.mxu0 %v962
    %1104 = vmatprep.subr.mxu0 %v965
    %1105 = vmatpush1.msra.mxu0 %v964
    %1106 = vmatprep.subr.mxu0 %v967
    %1107 = vmatpush1.msra.mxu0 %v966
    %1108 = vmatprep.subr.mxu0 %v969
    %1109 = vmatpush1.msra.mxu0 %v968
    %1110 = vmatprep.subr.mxu0 %v971
    %1111 = vmatpush1.msra.mxu0 %v970
    %1112 = vmatprep.subr.mxu0 %v973
    %1113 = vmatpush1.msra.mxu0 %v972
    %1114 = vmatprep.subr.mxu0 %v975
    %1115 = vmatpush1.msra.mxu0 %v974
    %1116 = vmatprep.subr.mxu0 %v977
    %1117 = vmatpush1.msra.mxu0 %v976
    %1118 = vmatprep.subr.mxu0 %v979
    %1119 = vmatpush1.msra.mxu0 %v978
    %1120 = vmatprep.subr.mxu0 %v981
    %1121 = vmatpush1.msra.mxu0 %v980
    %1122 = vmatprep.subr.mxu0 %v983
    %1123 = vmatpush1.msra.mxu0 %v982
    %1124 = vmatprep.subr.mxu0 %v985
    %1125 = vmatpush1.msra.mxu0 %v984
    %1126 = vmatprep.subr.mxu0 %v987
    %1127 = vmatpush1.msra.mxu0 %v986
    %1128 = vmatprep.subr.mxu0 %v989
    %1129 = vmatpush1.msra.mxu0 %v988
    %1130 = vmatprep.subr.mxu0 %v991
    %1131 = vmatpush1.msra.mxu0 %v990
    %1132 = vmatprep.subr.mxu0 %v993
    %1133 = vmatpush1.msra.mxu0 %v992
    %1134 = vmatprep.subr.mxu0 %v995
    %1135 = vmatpush1.msra.mxu0 %v994
    %1136 = vmatprep.subr.mxu0 %v997
    %1137 = vmatpush1.msra.mxu0 %v996
    %1138 = vmatprep.subr.mxu0 %v999
    %1139 = vmatpush1.msra.mxu0 %v998
    %1140 = vmatprep.subr.mxu0 %v1001
    %1141 = vmatpush1.msra.mxu0 %v1000
    %1142 = vmatprep.subr.mxu0 %v1003
    %1143 = vmatpush1.msra.mxu0 %v1002
    %1144 = vmatprep.subr.mxu0 %v1005
    %1145 = vmatpush1.msra.mxu0 %v1004
    %1146 = vmatprep.subr.mxu0 %v1007
    %1147 = vmatpush1.msra.mxu0 %v1006
    %1148 = vmatprep.subr.mxu0 %v1009
    %1149 = vmatpush1.msra.mxu0 %v1008
    %1150 = vmatprep.subr.mxu0 %v1011
    %1151 = vmatpush1.msra.mxu0 %v1010
    %1152 = vmatprep.subr.mxu0 %v1013
    %1153 = vmatpush1.msra.mxu0 %v1012
    %1154 = vmatprep.subr.mxu0 %v1015
    %1155 = vmatpush1.msra.mxu0 %v1014
    %1156 = vmatprep.subr.mxu0 %v1017
    %1157 = vmatpush1.msra.mxu0 %v1016
    %1158 = vmatprep.subr.mxu0 %v1019
    %1159 = vmatpush1.msra.mxu0 %v1018
    %1160 = vmatprep.mubr.f32.mxu0 %v949
    %1161 = vmatmul.mubr.f32.gmra.mrb[0].mxu0 %v948
    %v1162 = vpop.f32.mrb[0].mxu0
    %v1163 = vadd.f32 %v1089, %v1162
    %v1164 = vpop.f32.mrb[0].mxu0
    %v1165 = vadd.f32 %v1093, %v1164
    %1166 = vmatprep.mubr.f32.mxu0 %v953
    %1167 = vmatmul.mubr.f32.gmra.mrb[0].mxu0 %v952
    %v1168 = vpop.f32.mrb[0].mxu0
    %v1169 = vadd.f32 %v1089, %v1168
    %v1170 = vpop.f32.mrb[0].mxu0
    %v1171 = vadd.f32 %v1093, %v1170
    %1172 = vdwg.mxu0
    %1173 = vmatprep.subr.mxu0 %v1021
    %1174 = vmatpush1.msra.mxu0 %v1020
    %1175 = vmatprep.subr.mxu0 %v1023
    %1176 = vmatpush1.msra.mxu0 %v1022
    %1177 = vmatprep.subr.mxu0 %v1025
    %1178 = vmatpush1.msra.mxu0 %v1024
    %1179 = vmatprep.subr.mxu0 %v1027
    %1180 = vmatpush1.msra.mxu0 %v1026
    %1181 = vmatprep.subr.mxu0 %v1029
    %1182 = vmatpush1.msra.mxu0 %v1028
    %1183 = vmatprep.subr.mxu0 %v1031
    %1184 = vmatpush1.msra.mxu0 %v1030
    %1185 = vmatprep.subr.mxu0 %v1033
    %1186 = vmatpush1.msra.mxu0 %v1032
    %1187 = vmatprep.subr.mxu0 %v1035
    %1188 = vmatpush1.msra.mxu0 %v1034
    %1189 = vmatprep.subr.mxu0 %v1037
    %1190 = vmatpush1.msra.mxu0 %v1036
    %1191 = vmatprep.subr.mxu0 %v1039
    %1192 = vmatpush1.msra.mxu0 %v1038
    %1193 = vmatprep.subr.mxu0 %v1041
    %1194 = vmatpush1.msra.mxu0 %v1040
    %1195 = vmatprep.subr.mxu0 %v1043
    %1196 = vmatpush1.msra.mxu0 %v1042
    %1197 = vmatprep.subr.mxu0 %v1045
    %1198 = vmatpush1.msra.mxu0 %v1044
    %1199 = vmatprep.subr.mxu0 %v1047
    %1200 = vmatpush1.msra.mxu0 %v1046
    %1201 = vmatprep.subr.mxu0 %v1049
    %1202 = vmatpush1.msra.mxu0 %v1048
    %1203 = vmatprep.subr.mxu0 %v1051
    %1204 = vmatpush1.msra.mxu0 %v1050
    %1205 = vmatprep.subr.mxu0 %v1053
    %1206 = vmatpush1.msra.mxu0 %v1052
    %1207 = vmatprep.subr.mxu0 %v1055
    %1208 = vmatpush1.msra.mxu0 %v1054
    %1209 = vmatprep.subr.mxu0 %v1057
    %1210 = vmatpush1.msra.mxu0 %v1056
    %1211 = vmatprep.subr.mxu0 %v1059
    %1212 = vmatpush1.msra.mxu0 %v1058
    %1213 = vmatprep.subr.mxu0 %v1061
    %1214 = vmatpush1.msra.mxu0 %v1060
    %1215 = vmatprep.subr.mxu0 %v1063
    %1216 = vmatpush1.msra.mxu0 %v1062
    %1217 = vmatprep.subr.mxu0 %v1065
    %1218 = vmatpush1.msra.mxu0 %v1064
    %1219 = vmatprep.subr.mxu0 %v1067
    %1220 = vmatpush1.msra.mxu0 %v1066
    %1221 = vmatprep.subr.mxu0 %v1069
    %1222 = vmatpush1.msra.mxu0 %v1068
    %1223 = vmatprep.subr.mxu0 %v1071
    %1224 = vmatpush1.msra.mxu0 %v1070
    %1225 = vmatprep.subr.mxu0 %v1073
    %1226 = vmatpush1.msra.mxu0 %v1072
    %1227 = vmatprep.subr.mxu0 %v1075
    %1228 = vmatpush1.msra.mxu0 %v1074
    %1229 = vmatprep.subr.mxu0 %v1077
    %1230 = vmatpush1.msra.mxu0 %v1076
    %1231 = vmatprep.subr.mxu0 %v1079
    %1232 = vmatpush1.msra.mxu0 %v1078
    %1233 = vmatprep.subr.mxu0 %v1081
    %1234 = vmatpush1.msra.mxu0 %v1080
    %1235 = vmatprep.subr.mxu0 %v1083
    %1236 = vmatpush1.msra.mxu0 %v1082
    %1237 = vmatprep.mubr.f32.mxu0 %v951
    %1238 = vmatmul.mubr.f32.gmra.mrb[0].mxu0 %v950
    %v1239 = vpop.f32.mrb[0].mxu0
    %v1240 = vadd.f32 %v1163, %v1239
    %v1241 = vpop.f32.mrb[0].mxu0
    %v1242 = vadd.f32 %v1165, %v1241
    %1243 = vmatprep.mubr.f32.mxu0 %v955
    %1244 = vmatmul.mubr.f32.gmra.mrb[0].mxu0 %v954
    %v1245 = vpop.f32.mrb[0].mxu0
    %v1246 = vadd.f32 %v1169, %v1245
    %v1247 = vpop.f32.mrb[0].mxu0
    %v1248 = vadd.f32 %v1171, %v1247
    %1249 = vdwg.mxu0
    %vm1250 = vcmp.gt.f32.partialorder %v1240, 0.0
    %vm1251 = vcmp.gt.f32.partialorder %v1242, 0.0
    %vm1252 = vcmp.gt.f32.partialorder %v1246, 0.0
    %vm1253 = vcmp.gt.f32.partialorder %v1248, 0.0
    %v1254 = vmul.f32 %v1240, 0.01
    %v1255 = vmul.f32 %v1242, 0.01
    %v1256 = vmul.f32 %v1246, 0.01
    %v1257 = vmul.f32 %v1248, 0.01
    %v1258 = vsel %vm1250, %v1240, %v1254
    %v1259 = vsel %vm1251, %v1242, %v1255
    %v1260 = vsel %vm1252, %v1246, %v1256
    %v1261 = vsel %vm1253, %v1248, %v1257
    %v1262 = vld [vmem:[%s7] sm:$0x3]
    %v1264 = vlaneseq
    %v1265 = vshrl.u32 %v1264, 7
    %v1266 = vsub.s32 0, %v1265
    %v1267 = vrot.slane %v1262, %v1266
    %v1268 = vlaneseq
    %v1269 = vshrl.u32 %v1268, 7
    %v1270 = vsub.s32 1, %v1269
    %v1271 = vrot.slane %v1262, %v1270
    %v1274 = vmul.f32 %v1258, %v1267
    %v1275 = vmul.f32 %v1259, %v1271
    %v1276 = vmul.f32 %v1260, %v1267
    %v1277 = vmul.f32 %v1261, %v1271
    %v1278 = vadd.f32 %v1274, %v1275
    %1279 = vadd.xlane.f32.xlu0 %v1278
    %v1280 = vpop.xlane.xlu0 %1279
    %v1281 = vadd.f32 %v1276, %v1277
    %1282 = vadd.xlane.f32.xlu0 %v1281
    %v1283 = vpop.xlane.xlu0 %1282
    %v1284 = vld [vmem:[#allocation2] sm:$0x1]
    %v1286 = vlaneseq
    %v1287 = vshrl.u32 %v1286, 7
    %v1288 = vsub.s32 0, %v1287
    %v1289 = vrot.slane %v1284, %v1288
    %v1291 = vadd.f32 %v1280, %v1289
    %v1292 = vadd.f32 %v1283, %v1289
    %vm1293 = vcmask 7168
    %1294 = vst.msk [vmem:[%s9] sm:$0xff] %vm1293, %v1291
    %1295 = vst.msk [vmem:[%s9 + $0x8] sm:$0xff] %vm1293, %v1292
    // Predicated region
    $region54: #{tpu_custom_call.1} parent=1 // pred_check
      _
    $region55: #{tpu_custom_call.1} parent=1 // pred_check_branch
      %1297 = sbr.rel (0) target = $region57
    $region56: #{tpu_custom_call.1} parent=1 // pred_region
      _
    $region57: #{tpu_custom_call.1} parent=1 // pred_fallthru
      _
    // Predicated region
    $region58: #{tpu_custom_call.1} parent=1 // pred_check
      _
    $region59: #{tpu_custom_call.1} parent=1 // pred_check_branch
      %1299 = sbr.rel (0) target = $region61
    $region60: #{tpu_custom_call.1} parent=1 // pred_region
      _
    $region61: #{tpu_custom_call.1} parent=1 // pred_fallthru
      _
    %1300 = vsyncpa [#allocation4], 1
    %1301 = vsyncpa [#allocation6], 1
    %1302 = vsyncpa [#allocation9], 1

</llo_original>
